<compile_context>
chip_gen: v6e
topology: v6e:2x2x1
jax: 0.10.0
libtpu: 0.0.40
codegen_flags: <defaults>
</compile_context>

<pallas_src>
import jax
import jax.numpy as jnp
from jax.experimental import pallas as pl
from jax.experimental.pallas import tpu as pltpu

_BN_EPS = 1e-5


def _double_dsconv_kernel(x_ref,
                          wdw1_ref, bdw1_ref, wpw1_ref, bpw1_ref,
                          wdw2_ref, bdw2_ref, wpw2_ref, bpw2_ref,
                          o_ref,
                          pad1_ref, pad2_ref):
    """Fused double_dsconv for one batch element, NHWC layout (channels on lanes).

    x_ref    : (1, H, W, Cin)   input tile
    wdw*_ref : (3, 3, C)        depthwise weights (BN scale folded in)
    bdw*_ref : (1, C)           depthwise bias (BN shift folded in)
    wpw*_ref : (C, Co)          pointwise weights (BN scale folded in)
    bpw*_ref : (1, Co)          pointwise bias (BN shift folded in)
    o_ref    : (1, H, W, Cout)
    pad1/2   : VMEM scratch (H+2, W+2, C) — zero-padded stage inputs
    """
    H = o_ref.shape[1]
    W = o_ref.shape[2]

    def dsconv_stage(pad_ref, x, wdw_ref, bdw_ref, wpw_ref, bpw_ref):
        # x: (H, W, C) f32 value (unpadded input of this stage).
        C = x.shape[-1]
        Co = wpw_ref.shape[-1]

        # Zero-pad into the VMEM scratch in-kernel (no HBM pad pass in the
        # wrapper).  Re-zeroed every grid step so "parallel" grid splitting
        # across TensorCores stays correct.
        pad_ref[...] = jnp.zeros_like(pad_ref)
        pad_ref[pl.ds(1, H), pl.ds(1, W), :] = x
        xp = pad_ref[...]                              # (H+2, W+2, C)

        # Depthwise 3x3 (per-channel), BN1 scale already folded into wdw:
        # 9 shifted windows, accumulated in f32 on the VPU.
        acc = jnp.zeros((H, W, C), jnp.float32)
        for kh in range(3):
            for kw in range(3):
                acc = acc + xp[kh:kh + H, kw:kw + W, :] * wdw_ref[kh, kw, :]
        a = jnp.maximum(acc + bdw_ref[0], 0.0)         # folded BN1 shift + ReLU

        # Pointwise 1x1 (+ folded BN2) as an MXU matmul over channels, + ReLU.
        y = jnp.dot(a.reshape(H * W, C), wpw_ref[...],
                    preferred_element_type=jnp.float32)
        y = jnp.maximum(y + bpw_ref[0], 0.0)
        return y.reshape(H, W, Co)

    x0 = x_ref[0].astype(jnp.float32)
    h1 = dsconv_stage(pad1_ref, x0, wdw1_ref, bdw1_ref, wpw1_ref, bpw1_ref)
    h2 = dsconv_stage(pad2_ref, h1, wdw2_ref, bdw2_ref, wpw2_ref, bpw2_ref)
    o_ref[0] = h2.astype(o_ref.dtype)


def _fold_dsconv_params(p):
    """Fold eval-mode BatchNorm into the conv weights/biases (kernel layout)."""
    g1 = p["bn1_g"] * jax.lax.rsqrt(p["bn1_v"] + _BN_EPS)
    g2 = p["bn2_g"] * jax.lax.rsqrt(p["bn2_v"] + _BN_EPS)
    # depthwise: PyTorch weight (C, 1, 3, 3) -> (3, 3, C), scaled per channel.
    wdw = jnp.transpose(p["dw_w"][:, 0], (1, 2, 0)) * g1[None, None, :]
    bdw = (g1 * (p["dw_b"] - p["bn1_m"]) + p["bn1_b"])[None, :]
    # pointwise: PyTorch weight (Co, C, 1, 1) -> (C, Co), scaled per out channel.
    wpw = jnp.transpose(p["pw_w"][:, :, 0, 0], (1, 0)) * g2[None, :]
    bpw = (g2 * (p["pw_b"] - p["bn2_m"]) + p["bn2_b"])[None, :]
    return wdw, bdw, wpw, bpw


def double_dsconv_forward(x, params):
    """x: (N, Cin, H, W) float32 NCHW.  Returns (N, Cout, H, W) float32."""
    N, Cin, H, W = x.shape
    wdw1, bdw1, wpw1, bpw1 = _fold_dsconv_params(params["block1"])
    wdw2, bdw2, wpw2, bpw2 = _fold_dsconv_params(params["block2"])
    Cmid = wpw1.shape[1]
    Cout = wpw2.shape[1]

    x_nhwc = jnp.transpose(x, (0, 2, 3, 1))    # channels onto the lane axis

    out_nhwc = pl.pallas_call(
        _double_dsconv_kernel,
        out_shape=jax.ShapeDtypeStruct((N, H, W, Cout), x.dtype),
        grid=(N,),
        in_specs=[
            pl.BlockSpec((1, H, W, Cin), lambda b: (b, 0, 0, 0)),
            pl.BlockSpec((3, 3, Cin), lambda b: (0, 0, 0)),
            pl.BlockSpec((1, Cin), lambda b: (0, 0)),
            pl.BlockSpec((Cin, Cmid), lambda b: (0, 0)),
            pl.BlockSpec((1, Cmid), lambda b: (0, 0)),
            pl.BlockSpec((3, 3, Cmid), lambda b: (0, 0, 0)),
            pl.BlockSpec((1, Cmid), lambda b: (0, 0)),
            pl.BlockSpec((Cmid, Cout), lambda b: (0, 0)),
            pl.BlockSpec((1, Cout), lambda b: (0, 0)),
        ],
        out_specs=pl.BlockSpec((1, H, W, Cout), lambda b: (b, 0, 0, 0)),
        scratch_shapes=[
            pltpu.VMEM((H + 2, W + 2, Cin), jnp.float32),
            pltpu.VMEM((H + 2, W + 2, Cmid), jnp.float32),
        ],
        compiler_params=pltpu.CompilerParams(
            dimension_semantics=("parallel",),
            vmem_limit_bytes=32 * 1024 * 1024,
        ),
    )(x_nhwc, wdw1, bdw1, wpw1, bpw1, wdw2, bdw2, wpw2, bpw2)

    return jnp.transpose(out_nhwc, (0, 3, 1, 2))   # back to NCHW


# ----------------------------- reference path ------------------------------

def _dsconv_reference(x, p):
    """One dsconv block in NCHW with explicit eval-mode BatchNorm (XLA convs)."""
    C = x.shape[1]
    y = jax.lax.conv_general_dilated(
        x, p["dw_w"], window_strides=(1, 1), padding=((1, 1), (1, 1)),
        dimension_numbers=("NCHW", "OIHW", "NCHW"), feature_group_count=C,
        precision=jax.lax.Precision.HIGHEST)
    y = y + p["dw_b"][None, :, None, None]
    y = (y - p["bn1_m"][None, :, None, None]) * jax.lax.rsqrt(
        p["bn1_v"][None, :, None, None] + _BN_EPS)
    y = y * p["bn1_g"][None, :, None, None] + p["bn1_b"][None, :, None, None]
    y = jnp.maximum(y, 0.0)
    z = jax.lax.conv_general_dilated(
        y, p["pw_w"], window_strides=(1, 1), padding=((0, 0), (0, 0)),
        dimension_numbers=("NCHW", "OIHW", "NCHW"),
        precision=jax.lax.Precision.HIGHEST)
    z = z + p["pw_b"][None, :, None, None]
    z = (z - p["bn2_m"][None, :, None, None]) * jax.lax.rsqrt(
        p["bn2_v"][None, :, None, None] + _BN_EPS)
    z = z * p["bn2_g"][None, :, None, None] + p["bn2_b"][None, :, None, None]
    return jnp.maximum(z, 0.0)


def double_dsconv_reference(x, params):
    return _dsconv_reference(_dsconv_reference(x, params["block1"]), params["block2"])


def init_dsconv_params(key, in_ch, out_ch):
    ks = jax.random.split(key, 12)
    n = jax.random.normal
    return {
        "dw_w": 0.3 * n(ks[0], (in_ch, 1, 3, 3), jnp.float32),   # PyTorch layout
        "dw_b": 0.1 * n(ks[1], (in_ch,), jnp.float32),
        "bn1_g": 1.0 + 0.1 * n(ks[2], (in_ch,), jnp.float32),
        "bn1_b": 0.1 * n(ks[3], (in_ch,), jnp.float32),
        "bn1_m": 0.1 * n(ks[4], (in_ch,), jnp.float32),
        "bn1_v": jax.random.uniform(ks[5], (in_ch,), jnp.float32, 0.5, 1.5),
        "pw_w": 0.3 * n(ks[6], (out_ch, in_ch, 1, 1), jnp.float32),
        "pw_b": 0.1 * n(ks[7], (out_ch,), jnp.float32),
        "bn2_g": 1.0 + 0.1 * n(ks[8], (out_ch,), jnp.float32),
        "bn2_b": 0.1 * n(ks[9], (out_ch,), jnp.float32),
        "bn2_m": 0.1 * n(ks[10], (out_ch,), jnp.float32),
        "bn2_v": jax.random.uniform(ks[11], (out_ch,), jnp.float32, 0.5, 1.5),
    }


if __name__ == "__main__":
    key = jax.random.PRNGKey(0)
    kx, k1, k2 = jax.random.split(key, 3)

    N, in_ch, out_ch, H, W = 2, 4, 8, 16, 16
    x = jax.random.normal(kx, (N, in_ch, H, W), jnp.float32)
    params = {
        "block1": init_dsconv_params(k1, in_ch, out_ch),   # dsconv(in_ch, out_ch)
        "block2": init_dsconv_params(k2, out_ch, out_ch),  # dsconv(out_ch, out_ch)
    }

    out = jax.block_until_ready(jax.jit(double_dsconv_forward)(x, params))
    ref = jax.block_until_ready(double_dsconv_reference(x, params))

    assert out.shape == (N, out_ch, H, W)
    assert jnp.allclose(out, ref, atol=1e-4, rtol=1e-4), "mismatch vs XLA reference"
    print("KERNEL_OK")
</pallas_src>

<mosaic_0001>
module attributes {stable_mosaic.version = 11 : i64} {
  func.func @_double_dsconv_kernel(%arg0: i32, %arg1: memref<1x16x16x4xf32, #tpu.memory_space<vmem>>, %arg2: memref<3x3x4xf32, #tpu.memory_space<vmem>>, %arg3: memref<1x4xf32, #tpu.memory_space<vmem>>, %arg4: memref<4x8xf32, #tpu.memory_space<vmem>>, %arg5: memref<1x8xf32, #tpu.memory_space<vmem>>, %arg6: memref<3x3x8xf32, #tpu.memory_space<vmem>>, %arg7: memref<1x8xf32, #tpu.memory_space<vmem>>, %arg8: memref<8x8xf32, #tpu.memory_space<vmem>>, %arg9: memref<1x8xf32, #tpu.memory_space<vmem>>, %arg10: memref<1x16x16x8xf32, #tpu.memory_space<vmem>>, %arg11: memref<18x18x4xf32, #tpu.memory_space<vmem>>, %arg12: memref<18x18x8xf32, #tpu.memory_space<vmem>>) attributes {dimension_semantics = [#tpu.dimension_semantics<parallel>], iteration_bounds = array<i64: 2>, scalar_prefetch = 0 : i64, scratch_operands = 2 : i64, tpu.core_type = #tpu.core_type<tc>, window_params = [{transform_indices = @transform_0, window_bounds = array<i64: 1, 16, 16, 4>}, {pipeline_mode = #tpu.pipeline_mode<synchronous>, transform_indices = @transform_1, window_bounds = array<i64: 3, 3, 4>}, {pipeline_mode = #tpu.pipeline_mode<synchronous>, transform_indices = @transform_2, window_bounds = array<i64: 1, 4>}, {pipeline_mode = #tpu.pipeline_mode<synchronous>, transform_indices = @transform_3, window_bounds = array<i64: 4, 8>}, {pipeline_mode = #tpu.pipeline_mode<synchronous>, transform_indices = @transform_4, window_bounds = array<i64: 1, 8>}, {pipeline_mode = #tpu.pipeline_mode<synchronous>, transform_indices = @transform_5, window_bounds = array<i64: 3, 3, 8>}, {pipeline_mode = #tpu.pipeline_mode<synchronous>, transform_indices = @transform_6, window_bounds = array<i64: 1, 8>}, {pipeline_mode = #tpu.pipeline_mode<synchronous>, transform_indices = @transform_7, window_bounds = array<i64: 8, 8>}, {pipeline_mode = #tpu.pipeline_mode<synchronous>, transform_indices = @transform_8, window_bounds = array<i64: 1, 8>}, {transform_indices = @transform_9, window_bounds = array<i64: 1, 16, 16, 8>}]} {
    %c0 = arith.constant 0 : index
    %c0_0 = arith.constant 0 : index
    %c0_1 = arith.constant 0 : index
    %c0_2 = arith.constant 0 : index
    %0 = vector.load %arg1[%c0, %c0_0, %c0_1, %c0_2] : memref<1x16x16x4xf32, #tpu.memory_space<vmem>>, vector<1x16x16x4xf32>
    %1 = vector.shape_cast %0 : vector<1x16x16x4xf32> to vector<16x16x4xf32>
    %cst = arith.constant 0.000000e+00 : f32
    %2 = vector.broadcast %cst : f32 to vector<18x18x4xf32>
    %c0_3 = arith.constant 0 : index
    %c0_4 = arith.constant 0 : index
    %c0_5 = arith.constant 0 : index
    %3 = vector.load %arg11[%c0_3, %c0_4, %c0_5] : memref<18x18x4xf32, #tpu.memory_space<vmem>>, vector<18x18x4xf32>
    tpu.vector_store %arg11[%c0_3, %c0_4, %c0_5], %2 {strides = array<i32>} : memref<18x18x4xf32, #tpu.memory_space<vmem>>, vector<18x18x4xf32>,
    %c1 = arith.constant 1 : index
    %c1_6 = arith.constant 1 : index
    %c0_7 = arith.constant 0 : index
    %4 = vector.load %arg11[%c1, %c1_6, %c0_7] : memref<18x18x4xf32, #tpu.memory_space<vmem>>, vector<16x16x4xf32>
    tpu.vector_store %arg11[%c1, %c1_6, %c0_7], %1 {strides = array<i32>} : memref<18x18x4xf32, #tpu.memory_space<vmem>>, vector<16x16x4xf32>,
    %c0_8 = arith.constant 0 : index
    %c0_9 = arith.constant 0 : index
    %c0_10 = arith.constant 0 : index
    %5 = vector.load %arg11[%c0_8, %c0_9, %c0_10] : memref<18x18x4xf32, #tpu.memory_space<vmem>>, vector<18x18x4xf32>
    %cst_11 = arith.constant 0.000000e+00 : f32
    %6 = vector.broadcast %cst_11 : f32 to vector<16x16x4xf32>
    %7 = vector.extract_strided_slice %5 {offsets = [0, 0, 0], sizes = [16, 16, 4], strides = [1, 1, 1]} : vector<18x18x4xf32> to vector<16x16x4xf32>
    %c0_12 = arith.constant 0 : index
    %c0_13 = arith.constant 0 : index
    %c0_14 = arith.constant 0 : index
    %8 = vector.load %arg2[%c0_12, %c0_13, %c0_14] : memref<3x3x4xf32, #tpu.memory_space<vmem>>, vector<1x1x4xf32>
    %9 = vector.shape_cast %8 : vector<1x1x4xf32> to vector<4xf32>
    %10 = vector.shape_cast %9 : vector<4xf32> to vector<1x1x4xf32>
    %11 = vector.broadcast %10 : vector<1x1x4xf32> to vector<16x16x4xf32>
    %12 = arith.mulf %7, %11 : vector<16x16x4xf32>
    %13 = arith.addf %6, %12 : vector<16x16x4xf32>
    %14 = vector.extract_strided_slice %5 {offsets = [0, 1, 0], sizes = [16, 16, 4], strides = [1, 1, 1]} : vector<18x18x4xf32> to vector<16x16x4xf32>
    %c0_15 = arith.constant 0 : index
    %c1_16 = arith.constant 1 : index
    %c0_17 = arith.constant 0 : index
    %15 = vector.load %arg2[%c0_15, %c1_16, %c0_17] : memref<3x3x4xf32, #tpu.memory_space<vmem>>, vector<1x1x4xf32>
    %16 = vector.shape_cast %15 : vector<1x1x4xf32> to vector<4xf32>
    %17 = vector.shape_cast %16 : vector<4xf32> to vector<1x1x4xf32>
    %18 = vector.broadcast %17 : vector<1x1x4xf32> to vector<16x16x4xf32>
    %19 = arith.mulf %14, %18 : vector<16x16x4xf32>
    %20 = arith.addf %13, %19 : vector<16x16x4xf32>
    %21 = vector.extract_strided_slice %5 {offsets = [0, 2, 0], sizes = [16, 16, 4], strides = [1, 1, 1]} : vector<18x18x4xf32> to vector<16x16x4xf32>
    %c0_18 = arith.constant 0 : index
    %c2 = arith.constant 2 : index
    %c0_19 = arith.constant 0 : index
    %22 = vector.load %arg2[%c0_18, %c2, %c0_19] : memref<3x3x4xf32, #tpu.memory_space<vmem>>, vector<1x1x4xf32>
    %23 = vector.shape_cast %22 : vector<1x1x4xf32> to vector<4xf32>
    %24 = vector.shape_cast %23 : vector<4xf32> to vector<1x1x4xf32>
    %25 = vector.broadcast %24 : vector<1x1x4xf32> to vector<16x16x4xf32>
    %26 = arith.mulf %21, %25 : vector<16x16x4xf32>
    %27 = arith.addf %20, %26 : vector<16x16x4xf32>
    %28 = vector.extract_strided_slice %5 {offsets = [1, 0, 0], sizes = [16, 16, 4], strides = [1, 1, 1]} : vector<18x18x4xf32> to vector<16x16x4xf32>
    %c1_20 = arith.constant 1 : index
    %c0_21 = arith.constant 0 : index
    %c0_22 = arith.constant 0 : index
    %29 = vector.load %arg2[%c1_20, %c0_21, %c0_22] : memref<3x3x4xf32, #tpu.memory_space<vmem>>, vector<1x1x4xf32>
    %30 = vector.shape_cast %29 : vector<1x1x4xf32> to vector<4xf32>
    %31 = vector.shape_cast %30 : vector<4xf32> to vector<1x1x4xf32>
    %32 = vector.broadcast %31 : vector<1x1x4xf32> to vector<16x16x4xf32>
    %33 = arith.mulf %28, %32 : vector<16x16x4xf32>
    %34 = arith.addf %27, %33 : vector<16x16x4xf32>
    %35 = vector.extract_strided_slice %5 {offsets = [1, 1, 0], sizes = [16, 16, 4], strides = [1, 1, 1]} : vector<18x18x4xf32> to vector<16x16x4xf32>
    %c1_23 = arith.constant 1 : index
    %c1_24 = arith.constant 1 : index
    %c0_25 = arith.constant 0 : index
    %36 = vector.load %arg2[%c1_23, %c1_24, %c0_25] : memref<3x3x4xf32, #tpu.memory_space<vmem>>, vector<1x1x4xf32>
    %37 = vector.shape_cast %36 : vector<1x1x4xf32> to vector<4xf32>
    %38 = vector.shape_cast %37 : vector<4xf32> to vector<1x1x4xf32>
    %39 = vector.broadcast %38 : vector<1x1x4xf32> to vector<16x16x4xf32>
    %40 = arith.mulf %35, %39 : vector<16x16x4xf32>
    %41 = arith.addf %34, %40 : vector<16x16x4xf32>
    %42 = vector.extract_strided_slice %5 {offsets = [1, 2, 0], sizes = [16, 16, 4], strides = [1, 1, 1]} : vector<18x18x4xf32> to vector<16x16x4xf32>
    %c1_26 = arith.constant 1 : index
    %c2_27 = arith.constant 2 : index
    %c0_28 = arith.constant 0 : index
    %43 = vector.load %arg2[%c1_26, %c2_27, %c0_28] : memref<3x3x4xf32, #tpu.memory_space<vmem>>, vector<1x1x4xf32>
    %44 = vector.shape_cast %43 : vector<1x1x4xf32> to vector<4xf32>
    %45 = vector.shape_cast %44 : vector<4xf32> to vector<1x1x4xf32>
    %46 = vector.broadcast %45 : vector<1x1x4xf32> to vector<16x16x4xf32>
    %47 = arith.mulf %42, %46 : vector<16x16x4xf32>
    %48 = arith.addf %41, %47 : vector<16x16x4xf32>
    %49 = vector.extract_strided_slice %5 {offsets = [2, 0, 0], sizes = [16, 16, 4], strides = [1, 1, 1]} : vector<18x18x4xf32> to vector<16x16x4xf32>
    %c2_29 = arith.constant 2 : index
    %c0_30 = arith.constant 0 : index
    %c0_31 = arith.constant 0 : index
    %50 = vector.load %arg2[%c2_29, %c0_30, %c0_31] : memref<3x3x4xf32, #tpu.memory_space<vmem>>, vector<1x1x4xf32>
    %51 = vector.shape_cast %50 : vector<1x1x4xf32> to vector<4xf32>
    %52 = vector.shape_cast %51 : vector<4xf32> to vector<1x1x4xf32>
    %53 = vector.broadcast %52 : vector<1x1x4xf32> to vector<16x16x4xf32>
    %54 = arith.mulf %49, %53 : vector<16x16x4xf32>
    %55 = arith.addf %48, %54 : vector<16x16x4xf32>
    %56 = vector.extract_strided_slice %5 {offsets = [2, 1, 0], sizes = [16, 16, 4], strides = [1, 1, 1]} : vector<18x18x4xf32> to vector<16x16x4xf32>
    %c2_32 = arith.constant 2 : index
    %c1_33 = arith.constant 1 : index
    %c0_34 = arith.constant 0 : index
    %57 = vector.load %arg2[%c2_32, %c1_33, %c0_34] : memref<3x3x4xf32, #tpu.memory_space<vmem>>, vector<1x1x4xf32>
    %58 = vector.shape_cast %57 : vector<1x1x4xf32> to vector<4xf32>
    %59 = vector.shape_cast %58 : vector<4xf32> to vector<1x1x4xf32>
    %60 = vector.broadcast %59 : vector<1x1x4xf32> to vector<16x16x4xf32>
    %61 = arith.mulf %56, %60 : vector<16x16x4xf32>
    %62 = arith.addf %55, %61 : vector<16x16x4xf32>
    %63 = vector.extract_strided_slice %5 {offsets = [2, 2, 0], sizes = [16, 16, 4], strides = [1, 1, 1]} : vector<18x18x4xf32> to vector<16x16x4xf32>
    %c2_35 = arith.constant 2 : index
    %c2_36 = arith.constant 2 : index
    %c0_37 = arith.constant 0 : index
    %64 = vector.load %arg2[%c2_35, %c2_36, %c0_37] : memref<3x3x4xf32, #tpu.memory_space<vmem>>, vector<1x1x4xf32>
    %65 = vector.shape_cast %64 : vector<1x1x4xf32> to vector<4xf32>
    %66 = vector.shape_cast %65 : vector<4xf32> to vector<1x1x4xf32>
    %67 = vector.broadcast %66 : vector<1x1x4xf32> to vector<16x16x4xf32>
    %68 = arith.mulf %63, %67 : vector<16x16x4xf32>
    %69 = arith.addf %62, %68 : vector<16x16x4xf32>
    %c0_38 = arith.constant 0 : index
    %c0_39 = arith.constant 0 : index
    %70 = vector.load %arg3[%c0_38, %c0_39] : memref<1x4xf32, #tpu.memory_space<vmem>>, vector<1x4xf32>
    %71 = vector.shape_cast %70 : vector<1x4xf32> to vector<4xf32>
    %72 = vector.shape_cast %71 : vector<4xf32> to vector<1x1x4xf32>
    %73 = vector.broadcast %72 : vector<1x1x4xf32> to vector<16x16x4xf32>
    %74 = arith.addf %69, %73 : vector<16x16x4xf32>
    %cst_40 = arith.constant 0.000000e+00 : f32
    %75 = vector.broadcast %cst_40 : f32 to vector<16x16x4xf32>
    %76 = arith.maximumf %74, %75 : vector<16x16x4xf32>
    %77 = vector.shape_cast %76 : vector<16x16x4xf32> to vector<256x4xf32>
    %c0_41 = arith.constant 0 : index
    %c0_42 = arith.constant 0 : index
    %78 = vector.load %arg4[%c0_41, %c0_42] : memref<4x8xf32, #tpu.memory_space<vmem>>, vector<4x8xf32>
    %cst_43 = arith.constant dense<0.000000e+00> : vector<256x8xf32>
    %79 = tpu.matmul %77, %78, %cst_43 {dimension_numbers = #tpu.dot_dimension_numbers<[1], [0], [0], [1], [0, 0, 1, 1], [], []>} : vector<256x4xf32>, vector<4x8xf32>, vector<256x8xf32> -> vector<256x8xf32>
    %c0_44 = arith.constant 0 : index
    %c0_45 = arith.constant 0 : index
    %80 = vector.load %arg5[%c0_44, %c0_45] : memref<1x8xf32, #tpu.memory_space<vmem>>, vector<1x8xf32>
    %81 = vector.shape_cast %80 : vector<1x8xf32> to vector<8xf32>
    %82 = vector.shape_cast %81 : vector<8xf32> to vector<1x8xf32>
    %83 = vector.broadcast %82 : vector<1x8xf32> to vector<256x8xf32>
    %84 = arith.addf %79, %83 : vector<256x8xf32>
    %cst_46 = arith.constant 0.000000e+00 : f32
    %85 = vector.broadcast %cst_46 : f32 to vector<256x8xf32>
    %86 = arith.maximumf %84, %85 : vector<256x8xf32>
    %87 = vector.shape_cast %86 : vector<256x8xf32> to vector<16x16x8xf32>
    %cst_47 = arith.constant 0.000000e+00 : f32
    %88 = vector.broadcast %cst_47 : f32 to vector<18x18x8xf32>
    %c0_48 = arith.constant 0 : index
    %c0_49 = arith.constant 0 : index
    %c0_50 = arith.constant 0 : index
    %89 = vector.load %arg12[%c0_48, %c0_49, %c0_50] : memref<18x18x8xf32, #tpu.memory_space<vmem>>, vector<18x18x8xf32>
    tpu.vector_store %arg12[%c0_48, %c0_49, %c0_50], %88 {strides = array<i32>} : memref<18x18x8xf32, #tpu.memory_space<vmem>>, vector<18x18x8xf32>,
    %c1_51 = arith.constant 1 : index
    %c1_52 = arith.constant 1 : index
    %c0_53 = arith.constant 0 : index
    %90 = vector.load %arg12[%c1_51, %c1_52, %c0_53] : memref<18x18x8xf32, #tpu.memory_space<vmem>>, vector<16x16x8xf32>
    tpu.vector_store %arg12[%c1_51, %c1_52, %c0_53], %87 {strides = array<i32>} : memref<18x18x8xf32, #tpu.memory_space<vmem>>, vector<16x16x8xf32>,
    %c0_54 = arith.constant 0 : index
    %c0_55 = arith.constant 0 : index
    %c0_56 = arith.constant 0 : index
    %91 = vector.load %arg12[%c0_54, %c0_55, %c0_56] : memref<18x18x8xf32, #tpu.memory_space<vmem>>, vector<18x18x8xf32>
    %cst_57 = arith.constant 0.000000e+00 : f32
    %92 = vector.broadcast %cst_57 : f32 to vector<16x16x8xf32>
    %93 = vector.extract_strided_slice %91 {offsets = [0, 0, 0], sizes = [16, 16, 8], strides = [1, 1, 1]} : vector<18x18x8xf32> to vector<16x16x8xf32>
    %c0_58 = arith.constant 0 : index
    %c0_59 = arith.constant 0 : index
    %c0_60 = arith.constant 0 : index
    %94 = vector.load %arg6[%c0_58, %c0_59, %c0_60] : memref<3x3x8xf32, #tpu.memory_space<vmem>>, vector<1x1x8xf32>
    %95 = vector.shape_cast %94 : vector<1x1x8xf32> to vector<8xf32>
    %96 = vector.shape_cast %95 : vector<8xf32> to vector<1x1x8xf32>
    %97 = vector.broadcast %96 : vector<1x1x8xf32> to vector<16x16x8xf32>
    %98 = arith.mulf %93, %97 : vector<16x16x8xf32>
    %99 = arith.addf %92, %98 : vector<16x16x8xf32>
    %100 = vector.extract_strided_slice %91 {offsets = [0, 1, 0], sizes = [16, 16, 8], strides = [1, 1, 1]} : vector<18x18x8xf32> to vector<16x16x8xf32>
    %c0_61 = arith.constant 0 : index
    %c1_62 = arith.constant 1 : index
    %c0_63 = arith.constant 0 : index
    %101 = vector.load %arg6[%c0_61, %c1_62, %c0_63] : memref<3x3x8xf32, #tpu.memory_space<vmem>>, vector<1x1x8xf32>
    %102 = vector.shape_cast %101 : vector<1x1x8xf32> to vector<8xf32>
    %103 = vector.shape_cast %102 : vector<8xf32> to vector<1x1x8xf32>
    %104 = vector.broadcast %103 : vector<1x1x8xf32> to vector<16x16x8xf32>
    %105 = arith.mulf %100, %104 : vector<16x16x8xf32>
    %106 = arith.addf %99, %105 : vector<16x16x8xf32>
    %107 = vector.extract_strided_slice %91 {offsets = [0, 2, 0], sizes = [16, 16, 8], strides = [1, 1, 1]} : vector<18x18x8xf32> to vector<16x16x8xf32>
    %c0_64 = arith.constant 0 : index
    %c2_65 = arith.constant 2 : index
    %c0_66 = arith.constant 0 : index
    %108 = vector.load %arg6[%c0_64, %c2_65, %c0_66] : memref<3x3x8xf32, #tpu.memory_space<vmem>>, vector<1x1x8xf32>
    %109 = vector.shape_cast %108 : vector<1x1x8xf32> to vector<8xf32>
    %110 = vector.shape_cast %109 : vector<8xf32> to vector<1x1x8xf32>
    %111 = vector.broadcast %110 : vector<1x1x8xf32> to vector<16x16x8xf32>
    %112 = arith.mulf %107, %111 : vector<16x16x8xf32>
    %113 = arith.addf %106, %112 : vector<16x16x8xf32>
    %114 = vector.extract_strided_slice %91 {offsets = [1, 0, 0], sizes = [16, 16, 8], strides = [1, 1, 1]} : vector<18x18x8xf32> to vector<16x16x8xf32>
    %c1_67 = arith.constant 1 : index
    %c0_68 = arith.constant 0 : index
    %c0_69 = arith.constant 0 : index
    %115 = vector.load %arg6[%c1_67, %c0_68, %c0_69] : memref<3x3x8xf32, #tpu.memory_space<vmem>>, vector<1x1x8xf32>
    %116 = vector.shape_cast %115 : vector<1x1x8xf32> to vector<8xf32>
    %117 = vector.shape_cast %116 : vector<8xf32> to vector<1x1x8xf32>
    %118 = vector.broadcast %117 : vector<1x1x8xf32> to vector<16x16x8xf32>
    %119 = arith.mulf %114, %118 : vector<16x16x8xf32>
    %120 = arith.addf %113, %119 : vector<16x16x8xf32>
    %121 = vector.extract_strided_slice %91 {offsets = [1, 1, 0], sizes = [16, 16, 8], strides = [1, 1, 1]} : vector<18x18x8xf32> to vector<16x16x8xf32>
    %c1_70 = arith.constant 1 : index
    %c1_71 = arith.constant 1 : index
    %c0_72 = arith.constant 0 : index
    %122 = vector.load %arg6[%c1_70, %c1_71, %c0_72] : memref<3x3x8xf32, #tpu.memory_space<vmem>>, vector<1x1x8xf32>
    %123 = vector.shape_cast %122 : vector<1x1x8xf32> to vector<8xf32>
    %124 = vector.shape_cast %123 : vector<8xf32> to vector<1x1x8xf32>
    %125 = vector.broadcast %124 : vector<1x1x8xf32> to vector<16x16x8xf32>
    %126 = arith.mulf %121, %125 : vector<16x16x8xf32>
    %127 = arith.addf %120, %126 : vector<16x16x8xf32>
    %128 = vector.extract_strided_slice %91 {offsets = [1, 2, 0], sizes = [16, 16, 8], strides = [1, 1, 1]} : vector<18x18x8xf32> to vector<16x16x8xf32>
    %c1_73 = arith.constant 1 : index
    %c2_74 = arith.constant 2 : index
    %c0_75 = arith.constant 0 : index
    %129 = vector.load %arg6[%c1_73, %c2_74, %c0_75] : memref<3x3x8xf32, #tpu.memory_space<vmem>>, vector<1x1x8xf32>
    %130 = vector.shape_cast %129 : vector<1x1x8xf32> to vector<8xf32>
    %131 = vector.shape_cast %130 : vector<8xf32> to vector<1x1x8xf32>
    %132 = vector.broadcast %131 : vector<1x1x8xf32> to vector<16x16x8xf32>
    %133 = arith.mulf %128, %132 : vector<16x16x8xf32>
    %134 = arith.addf %127, %133 : vector<16x16x8xf32>
    %135 = vector.extract_strided_slice %91 {offsets = [2, 0, 0], sizes = [16, 16, 8], strides = [1, 1, 1]} : vector<18x18x8xf32> to vector<16x16x8xf32>
    %c2_76 = arith.constant 2 : index
    %c0_77 = arith.constant 0 : index
    %c0_78 = arith.constant 0 : index
    %136 = vector.load %arg6[%c2_76, %c0_77, %c0_78] : memref<3x3x8xf32, #tpu.memory_space<vmem>>, vector<1x1x8xf32>
    %137 = vector.shape_cast %136 : vector<1x1x8xf32> to vector<8xf32>
    %138 = vector.shape_cast %137 : vector<8xf32> to vector<1x1x8xf32>
    %139 = vector.broadcast %138 : vector<1x1x8xf32> to vector<16x16x8xf32>
    %140 = arith.mulf %135, %139 : vector<16x16x8xf32>
    %141 = arith.addf %134, %140 : vector<16x16x8xf32>
    %142 = vector.extract_strided_slice %91 {offsets = [2, 1, 0], sizes = [16, 16, 8], strides = [1, 1, 1]} : vector<18x18x8xf32> to vector<16x16x8xf32>
    %c2_79 = arith.constant 2 : index
    %c1_80 = arith.constant 1 : index
    %c0_81 = arith.constant 0 : index
    %143 = vector.load %arg6[%c2_79, %c1_80, %c0_81] : memref<3x3x8xf32, #tpu.memory_space<vmem>>, vector<1x1x8xf32>
    %144 = vector.shape_cast %143 : vector<1x1x8xf32> to vector<8xf32>
    %145 = vector.shape_cast %144 : vector<8xf32> to vector<1x1x8xf32>
    %146 = vector.broadcast %145 : vector<1x1x8xf32> to vector<16x16x8xf32>
    %147 = arith.mulf %142, %146 : vector<16x16x8xf32>
    %148 = arith.addf %141, %147 : vector<16x16x8xf32>
    %149 = vector.extract_strided_slice %91 {offsets = [2, 2, 0], sizes = [16, 16, 8], strides = [1, 1, 1]} : vector<18x18x8xf32> to vector<16x16x8xf32>
    %c2_82 = arith.constant 2 : index
    %c2_83 = arith.constant 2 : index
    %c0_84 = arith.constant 0 : index
    %150 = vector.load %arg6[%c2_82, %c2_83, %c0_84] : memref<3x3x8xf32, #tpu.memory_space<vmem>>, vector<1x1x8xf32>
    %151 = vector.shape_cast %150 : vector<1x1x8xf32> to vector<8xf32>
    %152 = vector.shape_cast %151 : vector<8xf32> to vector<1x1x8xf32>
    %153 = vector.broadcast %152 : vector<1x1x8xf32> to vector<16x16x8xf32>
    %154 = arith.mulf %149, %153 : vector<16x16x8xf32>
    %155 = arith.addf %148, %154 : vector<16x16x8xf32>
    %c0_85 = arith.constant 0 : index
    %c0_86 = arith.constant 0 : index
    %156 = vector.load %arg7[%c0_85, %c0_86] : memref<1x8xf32, #tpu.memory_space<vmem>>, vector<1x8xf32>
    %157 = vector.shape_cast %156 : vector<1x8xf32> to vector<8xf32>
    %158 = vector.shape_cast %157 : vector<8xf32> to vector<1x1x8xf32>
    %159 = vector.broadcast %158 : vector<1x1x8xf32> to vector<16x16x8xf32>
    %160 = arith.addf %155, %159 : vector<16x16x8xf32>
    %cst_87 = arith.constant 0.000000e+00 : f32
    %161 = vector.broadcast %cst_87 : f32 to vector<16x16x8xf32>
    %162 = arith.maximumf %160, %161 : vector<16x16x8xf32>
    %163 = vector.shape_cast %162 : vector<16x16x8xf32> to vector<256x8xf32>
    %c0_88 = arith.constant 0 : index
    %c0_89 = arith.constant 0 : index
    %164 = vector.load %arg8[%c0_88, %c0_89] : memref<8x8xf32, #tpu.memory_space<vmem>>, vector<8x8xf32>
    %cst_90 = arith.constant dense<0.000000e+00> : vector<256x8xf32>
    %165 = tpu.matmul %163, %164, %cst_90 {dimension_numbers = #tpu.dot_dimension_numbers<[1], [0], [0], [1], [0, 0, 1, 1], [], []>} : vector<256x8xf32>, vector<8x8xf32>, vector<256x8xf32> -> vector<256x8xf32>
    %c0_91 = arith.constant 0 : index
    %c0_92 = arith.constant 0 : index
    %166 = vector.load %arg9[%c0_91, %c0_92] : memref<1x8xf32, #tpu.memory_space<vmem>>, vector<1x8xf32>
    %167 = vector.shape_cast %166 : vector<1x8xf32> to vector<8xf32>
    %168 = vector.shape_cast %167 : vector<8xf32> to vector<1x8xf32>
    %169 = vector.broadcast %168 : vector<1x8xf32> to vector<256x8xf32>
    %170 = arith.addf %165, %169 : vector<256x8xf32>
    %cst_93 = arith.constant 0.000000e+00 : f32
    %171 = vector.broadcast %cst_93 : f32 to vector<256x8xf32>
    %172 = arith.maximumf %170, %171 : vector<256x8xf32>
    %173 = vector.shape_cast %172 : vector<256x8xf32> to vector<16x16x8xf32>
    %c0_94 = arith.constant 0 : index
    %c0_95 = arith.constant 0 : index
    %c0_96 = arith.constant 0 : index
    %c0_97 = arith.constant 0 : index
    %174 = vector.load %arg10[%c0_94, %c0_95, %c0_96, %c0_97] : memref<1x16x16x8xf32, #tpu.memory_space<vmem>>, vector<1x16x16x8xf32>
    %175 = vector.shape_cast %174 : vector<1x16x16x8xf32> to vector<16x16x8xf32>
    %176 = vector.shape_cast %173 : vector<16x16x8xf32> to vector<1x16x16x8xf32>
    tpu.vector_store %arg10[%c0_94, %c0_95, %c0_96, %c0_97], %176 {strides = array<i32>} : memref<1x16x16x8xf32, #tpu.memory_space<vmem>>, vector<1x16x16x8xf32>,
    return
  }
  func.func @transform_0(%arg0: i32) -> (i32, i32, i32, i32) {
    %c0_i32 = arith.constant 0 : i32
    %c0_i32_0 = arith.constant 0 : i32
    %c0_i32_1 = arith.constant 0 : i32
    %c0_i32_2 = arith.constant 0 : i32
    return %arg0, %c0_i32, %c0_i32_0, %c0_i32_1 : i32, i32, i32, i32
  }
  func.func @transform_1(%arg0: i32) -> (i32, i32, i32) {
    %c0_i32 = arith.constant 0 : i32
    %c0_i32_0 = arith.constant 0 : i32
    %c0_i32_1 = arith.constant 0 : i32
    %c0_i32_2 = arith.constant 0 : i32
    return %c0_i32, %c0_i32_0, %c0_i32_1 : i32, i32, i32
  }
  func.func @transform_2(%arg0: i32) -> (i32, i32) {
    %c0_i32 = arith.constant 0 : i32
    %c0_i32_0 = arith.constant 0 : i32
    %c0_i32_1 = arith.constant 0 : i32
    return %c0_i32, %c0_i32_0 : i32, i32
  }
  func.func @transform_3(%arg0: i32) -> (i32, i32) {
    %c0_i32 = arith.constant 0 : i32
    %c0_i32_0 = arith.constant 0 : i32
    %c0_i32_1 = arith.constant 0 : i32
    return %c0_i32, %c0_i32_0 : i32, i32
  }
  func.func @transform_4(%arg0: i32) -> (i32, i32) {
    %c0_i32 = arith.constant 0 : i32
    %c0_i32_0 = arith.constant 0 : i32
    %c0_i32_1 = arith.constant 0 : i32
    return %c0_i32, %c0_i32_0 : i32, i32
  }
  func.func @transform_5(%arg0: i32) -> (i32, i32, i32) {
    %c0_i32 = arith.constant 0 : i32
    %c0_i32_0 = arith.constant 0 : i32
    %c0_i32_1 = arith.constant 0 : i32
    %c0_i32_2 = arith.constant 0 : i32
    return %c0_i32, %c0_i32_0, %c0_i32_1 : i32, i32, i32
  }
  func.func @transform_6(%arg0: i32) -> (i32, i32) {
    %c0_i32 = arith.constant 0 : i32
    %c0_i32_0 = arith.constant 0 : i32
    %c0_i32_1 = arith.constant 0 : i32
    return %c0_i32, %c0_i32_0 : i32, i32
  }
  func.func @transform_7(%arg0: i32) -> (i32, i32) {
    %c0_i32 = arith.constant 0 : i32
    %c0_i32_0 = arith.constant 0 : i32
    %c0_i32_1 = arith.constant 0 : i32
    return %c0_i32, %c0_i32_0 : i32, i32
  }
  func.func @transform_8(%arg0: i32) -> (i32, i32) {
    %c0_i32 = arith.constant 0 : i32
    %c0_i32_0 = arith.constant 0 : i32
    %c0_i32_1 = arith.constant 0 : i32
    return %c0_i32, %c0_i32_0 : i32, i32
  }
  func.func @transform_9(%arg0: i32) -> (i32, i32, i32, i32) {
    %c0_i32 = arith.constant 0 : i32
    %c0_i32_0 = arith.constant 0 : i32
    %c0_i32_1 = arith.constant 0 : i32
    %c0_i32_2 = arith.constant 0 : i32
    return %arg0, %c0_i32, %c0_i32_0, %c0_i32_1 : i32, i32, i32, i32
  }
}

</mosaic_0001>

<llo_original>
// kernel: double_dsconv_forward.1
$region0: #{double_dsconv_forward.1}
  #allocation0 [shape = 'u32[]', space=smem, size = 0x4, offset = 0x4, fixed_abs, tag = 'smem constant byte address 0x4 - core index']
  #allocation1 [shape = 'u32[144,128]{1,0:T(1,128)}', space=vmem, size = 0x12000, scoped, tag = 'internal scratch']
  #allocation2 [shape = 'f32[18,18,4]{2,1,0:T(8,128)}', space=vmem, size = 0x36000, scoped, tag = 'scratch operand']
  #allocation3 [shape = 'f32[18,18,8]{2,1,0:T(8,128)}', space=vmem, size = 0x36000, scoped, tag = 'scratch operand']
  %s0 = inlined_call_operand.vmem [shape: f32[2,16,16,4], index: 0, kind: input, shape index: {}]
  %s1 = inlined_call_operand.vmem [shape: f32[3,3,4], index: 1, kind: input, shape index: {}]
  %s2 = inlined_call_operand.vmem [shape: f32[1,4], index: 2, kind: input, shape index: {}]
  %s3 = inlined_call_operand.vmem [shape: f32[4,8], index: 3, kind: input, shape index: {}]
  %s4 = inlined_call_operand.vmem [shape: f32[1,8], index: 4, kind: input, shape index: {}]
  %s5 = inlined_call_operand.vmem [shape: f32[3,3,8], index: 5, kind: input, shape index: {}]
  %s6 = inlined_call_operand.vmem [shape: f32[1,8], index: 6, kind: input, shape index: {}]
  %s7 = inlined_call_operand.vmem [shape: f32[8,8], index: 7, kind: input, shape index: {}]
  %s8 = inlined_call_operand.vmem [shape: f32[1,8], index: 8, kind: input, shape index: {}]
  %s9 = inlined_call_operand.vmem [shape: f32[2,16,16,8], index: 9, kind: output, shape index: {}]
  %s10 = sld [smem:[#allocation0]]
  $region69: #{double_dsconv_forward.1} parent=0
    _
  %s12 = ssub.s32 1, %s10
  %s13 = scalar_select 0, %s12, %s10
  loop: start=0, step=1, limit=4
  $region2: #{double_dsconv_forward.1} parent=0 // loop_pre_header
    _
  $region3: #{double_dsconv_forward.1} parent=0 // loop_header
    %s15 = sphi 0, %s19
    %p16 = scmp.ge.s32.totalorder %s15, 4
    %s25 = sphi 0, %s27
    %s28 = sphi 0, %s25
    %s29 = sphi 0, %s28
    %s45 = sphi 0, %s29
    %s49 = sphi 0, %s49
    %s51 = sphi 0, %s49
    %s52 = sphi 0, %s51
    %s66 = sphi 0, %s52
    %s70 = sphi 0, %s70
    %s72 = sphi 0, %s70
    %s73 = sphi 0, %s72
    %s87 = sphi 0, %s73
    %s91 = sphi 0, %s91
    %s93 = sphi 0, %s91
    %s94 = sphi 0, %s93
    %s108 = sphi 0, %s94
    %s112 = sphi 0, %s112
    %s114 = sphi 0, %s112
    %s115 = sphi 0, %s114
    %s129 = sphi 0, %s115
    %s133 = sphi 0, %s133
    %s135 = sphi 0, %s133
    %s136 = sphi 0, %s135
    %s150 = sphi 0, %s136
    %s154 = sphi 0, %s154
    %s156 = sphi 0, %s154
    %s157 = sphi 0, %s156
    %s171 = sphi 0, %s157
    %s175 = sphi 0, %s175
    %s177 = sphi 0, %s175
    %s178 = sphi 0, %s177
    %s192 = sphi 0, %s178
    %s196 = sphi 0, %s196
    %s198 = sphi 0, %s196
    %s199 = sphi 0, %s198
    %s213 = sphi 0, %s199
    %s219 = sphi 0, %s221
    %s222 = sphi 0, %s219
    %s223 = sphi 0, %s222
    %s239 = sphi 0, %s223
  $region4: #{double_dsconv_forward.1} parent=0 // loop_header_branch
    %18 = sbr.rel (%p16) target = $region8
  $region5: #{double_dsconv_forward.1} parent=0 // loop_body
    %s20 = ssub.s32 %s15, 1
    %s21 = ssub.s32 %s15, 2
    %s22 = sadd.s32 %s15, 1
    %s23 = ssub.s32 %s15, %s22
    %p24 = scmp.eq.s32.totalorder %s23, 0
    %s26 = sadd.s32 %s25, 1
    %s27 = scalar_select %p24, %s25, %s26
    %p30 = pneg %p24
    %p31 = scmp.eq.s32.totalorder %s15, 1
    %p32 = por %p30, %p31
    %p33 = scmp.ne.s32.totalorder %s25, %s28
    %p34 = scmp.eq.s32.totalorder %s15, 0
    %p35 = por %p33, %p34
    %p36 = scmp.ne.s32.totalorder %s25, %s28
    %p37 = scmp.eq.s32.totalorder %s20, 1
    %p38 = por %p36, %p37
    %p39 = scmp.ne.s32.totalorder %s28, %s29
    %p40 = scmp.eq.s32.totalorder %s20, 0
    %p41 = por %p39, %p40
    %p42 = scmp.ne.s32.totalorder %s28, %s29
    %p43 = scmp.eq.s32.totalorder %s21, 1
    %p44 = por %p42, %p43
    %p46 = scmp.ne.s32.totalorder %s29, %s45
    %p47 = scmp.eq.s32.totalorder %s21, 0
    %p48 = por %p46, %p47
    %s50 = sadd.s32 %s49, 1
    %p53 = scmp.eq.s32.totalorder %s15, 1
    %p54 = scmp.ne.s32.totalorder %s49, %s51
    %p55 = scmp.eq.s32.totalorder %s15, 0
    %p56 = por %p54, %p55
    %p57 = scmp.ne.s32.totalorder %s49, %s51
    %p58 = scmp.eq.s32.totalorder %s20, 1
    %p59 = por %p57, %p58
    %p60 = scmp.ne.s32.totalorder %s51, %s52
    %p61 = scmp.eq.s32.totalorder %s20, 0
    %p62 = por %p60, %p61
    %p63 = scmp.ne.s32.totalorder %s51, %s52
    %p64 = scmp.eq.s32.totalorder %s21, 1
    %p65 = por %p63, %p64
    %p67 = scmp.ne.s32.totalorder %s52, %s66
    %p68 = scmp.eq.s32.totalorder %s21, 0
    %p69 = por %p67, %p68
    %s71 = sadd.s32 %s70, 1
    %p74 = scmp.eq.s32.totalorder %s15, 1
    %p75 = scmp.ne.s32.totalorder %s70, %s72
    %p76 = scmp.eq.s32.totalorder %s15, 0
    %p77 = por %p75, %p76
    %p78 = scmp.ne.s32.totalorder %s70, %s72
    %p79 = scmp.eq.s32.totalorder %s20, 1
    %p80 = por %p78, %p79
    %p81 = scmp.ne.s32.totalorder %s72, %s73
    %p82 = scmp.eq.s32.totalorder %s20, 0
    %p83 = por %p81, %p82
    %p84 = scmp.ne.s32.totalorder %s72, %s73
    %p85 = scmp.eq.s32.totalorder %s21, 1
    %p86 = por %p84, %p85
    %p88 = scmp.ne.s32.totalorder %s73, %s87
    %p89 = scmp.eq.s32.totalorder %s21, 0
    %p90 = por %p88, %p89
    %s92 = sadd.s32 %s91, 1
    %p95 = scmp.eq.s32.totalorder %s15, 1
    %p96 = scmp.ne.s32.totalorder %s91, %s93
    %p97 = scmp.eq.s32.totalorder %s15, 0
    %p98 = por %p96, %p97
    %p99 = scmp.ne.s32.totalorder %s91, %s93
    %p100 = scmp.eq.s32.totalorder %s20, 1
    %p101 = por %p99, %p100
    %p102 = scmp.ne.s32.totalorder %s93, %s94
    %p103 = scmp.eq.s32.totalorder %s20, 0
    %p104 = por %p102, %p103
    %p105 = scmp.ne.s32.totalorder %s93, %s94
    %p106 = scmp.eq.s32.totalorder %s21, 1
    %p107 = por %p105, %p106
    %p109 = scmp.ne.s32.totalorder %s94, %s108
    %p110 = scmp.eq.s32.totalorder %s21, 0
    %p111 = por %p109, %p110
    %s113 = sadd.s32 %s112, 1
    %p116 = scmp.eq.s32.totalorder %s15, 1
    %p117 = scmp.ne.s32.totalorder %s112, %s114
    %p118 = scmp.eq.s32.totalorder %s15, 0
    %p119 = por %p117, %p118
    %p120 = scmp.ne.s32.totalorder %s112, %s114
    %p121 = scmp.eq.s32.totalorder %s20, 1
    %p122 = por %p120, %p121
    %p123 = scmp.ne.s32.totalorder %s114, %s115
    %p124 = scmp.eq.s32.totalorder %s20, 0
    %p125 = por %p123, %p124
    %p126 = scmp.ne.s32.totalorder %s114, %s115
    %p127 = scmp.eq.s32.totalorder %s21, 1
    %p128 = por %p126, %p127
    %p130 = scmp.ne.s32.totalorder %s115, %s129
    %p131 = scmp.eq.s32.totalorder %s21, 0
    %p132 = por %p130, %p131
    %s134 = sadd.s32 %s133, 1
    %p137 = scmp.eq.s32.totalorder %s15, 1
    %p138 = scmp.ne.s32.totalorder %s133, %s135
    %p139 = scmp.eq.s32.totalorder %s15, 0
    %p140 = por %p138, %p139
    %p141 = scmp.ne.s32.totalorder %s133, %s135
    %p142 = scmp.eq.s32.totalorder %s20, 1
    %p143 = por %p141, %p142
    %p144 = scmp.ne.s32.totalorder %s135, %s136
    %p145 = scmp.eq.s32.totalorder %s20, 0
    %p146 = por %p144, %p145
    %p147 = scmp.ne.s32.totalorder %s135, %s136
    %p148 = scmp.eq.s32.totalorder %s21, 1
    %p149 = por %p147, %p148
    %p151 = scmp.ne.s32.totalorder %s136, %s150
    %p152 = scmp.eq.s32.totalorder %s21, 0
    %p153 = por %p151, %p152
    %s155 = sadd.s32 %s154, 1
    %p158 = scmp.eq.s32.totalorder %s15, 1
    %p159 = scmp.ne.s32.totalorder %s154, %s156
    %p160 = scmp.eq.s32.totalorder %s15, 0
    %p161 = por %p159, %p160
    %p162 = scmp.ne.s32.totalorder %s154, %s156
    %p163 = scmp.eq.s32.totalorder %s20, 1
    %p164 = por %p162, %p163
    %p165 = scmp.ne.s32.totalorder %s156, %s157
    %p166 = scmp.eq.s32.totalorder %s20, 0
    %p167 = por %p165, %p166
    %p168 = scmp.ne.s32.totalorder %s156, %s157
    %p169 = scmp.eq.s32.totalorder %s21, 1
    %p170 = por %p168, %p169
    %p172 = scmp.ne.s32.totalorder %s157, %s171
    %p173 = scmp.eq.s32.totalorder %s21, 0
    %p174 = por %p172, %p173
    %s176 = sadd.s32 %s175, 1
    %p179 = scmp.eq.s32.totalorder %s15, 1
    %p180 = scmp.ne.s32.totalorder %s175, %s177
    %p181 = scmp.eq.s32.totalorder %s15, 0
    %p182 = por %p180, %p181
    %p183 = scmp.ne.s32.totalorder %s175, %s177
    %p184 = scmp.eq.s32.totalorder %s20, 1
    %p185 = por %p183, %p184
    %p186 = scmp.ne.s32.totalorder %s177, %s178
    %p187 = scmp.eq.s32.totalorder %s20, 0
    %p188 = por %p186, %p187
    %p189 = scmp.ne.s32.totalorder %s177, %s178
    %p190 = scmp.eq.s32.totalorder %s21, 1
    %p191 = por %p189, %p190
    %p193 = scmp.ne.s32.totalorder %s178, %s192
    %p194 = scmp.eq.s32.totalorder %s21, 0
    %p195 = por %p193, %p194
    %s197 = sadd.s32 %s196, 1
    %p200 = scmp.eq.s32.totalorder %s15, 1
    %p201 = scmp.ne.s32.totalorder %s196, %s198
    %p202 = scmp.eq.s32.totalorder %s15, 0
    %p203 = por %p201, %p202
    %p204 = scmp.ne.s32.totalorder %s196, %s198
    %p205 = scmp.eq.s32.totalorder %s20, 1
    %p206 = por %p204, %p205
    %p207 = scmp.ne.s32.totalorder %s198, %s199
    %p208 = scmp.eq.s32.totalorder %s20, 0
    %p209 = por %p207, %p208
    %p210 = scmp.ne.s32.totalorder %s198, %s199
    %p211 = scmp.eq.s32.totalorder %s21, 1
    %p212 = por %p210, %p211
    %p214 = scmp.ne.s32.totalorder %s199, %s213
    %p215 = scmp.eq.s32.totalorder %s21, 0
    %p216 = por %p214, %p215
    %s217 = ssub.s32 %s15, %s22
    %p218 = scmp.eq.s32.totalorder %s217, 0
    %s220 = sadd.s32 %s219, 1
    %s221 = scalar_select %p218, %s219, %s220
    %p224 = pneg %p218
    %p225 = scmp.eq.s32.totalorder %s15, 1
    %p226 = por %p224, %p225
    %p227 = scmp.ne.s32.totalorder %s219, %s222
    %p228 = scmp.eq.s32.totalorder %s15, 0
    %p229 = por %p227, %p228
    %p230 = scmp.ne.s32.totalorder %s219, %s222
    %p231 = scmp.eq.s32.totalorder %s20, 1
    %p232 = por %p230, %p231
    %p233 = scmp.ne.s32.totalorder %s222, %s223
    %p234 = scmp.eq.s32.totalorder %s20, 0
    %p235 = por %p233, %p234
    %p236 = scmp.ne.s32.totalorder %s222, %s223
    %p237 = scmp.eq.s32.totalorder %s21, 1
    %p238 = por %p236, %p237
    %p240 = scmp.ne.s32.totalorder %s223, %s239
    %p241 = scmp.eq.s32.totalorder %s21, 0
    %p242 = por %p240, %p241
    %p243 = scmp.le.s32.totalorder 1, %s15
    %p244 = scmp.lt.s32.totalorder %s15, 3
    %p245 = pnand %p243, %p244
    %p246 = pneg %p245
    // Predicated region
    $region9: #{double_dsconv_forward.1} parent=5 // pred_check
      _
    $region10: #{double_dsconv_forward.1} parent=5 // pred_check_branch
      %248 = sbr.rel (%p245) target = $region12
    $region11: #{double_dsconv_forward.1} parent=5 // pred_region
      %s249 = ssub.s32 %s15, 1
      // Predicated region
      $region13: #{double_dsconv_forward.1} parent=11 // pred_check
        %p250 = pneg %p62
      $region14: #{double_dsconv_forward.1} parent=11 // pred_check_branch
        %252 = sbr.rel (%p250) target = $region16
      $region15: #{double_dsconv_forward.1} parent=11 // pred_region
        _
      $region16: #{double_dsconv_forward.1} parent=11 // pred_fallthru
        _
      // Predicated region
      $region17: #{double_dsconv_forward.1} parent=11 // pred_check
        %p253 = pneg %p83
      $region18: #{double_dsconv_forward.1} parent=11 // pred_check_branch
        %255 = sbr.rel (%p253) target = $region20
      $region19: #{double_dsconv_forward.1} parent=11 // pred_region
        _
      $region20: #{double_dsconv_forward.1} parent=11 // pred_fallthru
        _
      // Predicated region
      $region21: #{double_dsconv_forward.1} parent=11 // pred_check
        %p256 = pneg %p104
      $region22: #{double_dsconv_forward.1} parent=11 // pred_check_branch
        %258 = sbr.rel (%p256) target = $region24
      $region23: #{double_dsconv_forward.1} parent=11 // pred_region
        _
      $region24: #{double_dsconv_forward.1} parent=11 // pred_fallthru
        _
      // Predicated region
      $region25: #{double_dsconv_forward.1} parent=11 // pred_check
        %p259 = pneg %p125
      $region26: #{double_dsconv_forward.1} parent=11 // pred_check_branch
        %261 = sbr.rel (%p259) target = $region28
      $region27: #{double_dsconv_forward.1} parent=11 // pred_region
        _
      $region28: #{double_dsconv_forward.1} parent=11 // pred_fallthru
        _
      // Predicated region
      $region29: #{double_dsconv_forward.1} parent=11 // pred_check
        %p262 = pneg %p146
      $region30: #{double_dsconv_forward.1} parent=11 // pred_check_branch
        %264 = sbr.rel (%p262) target = $region32
      $region31: #{double_dsconv_forward.1} parent=11 // pred_region
        _
      $region32: #{double_dsconv_forward.1} parent=11 // pred_fallthru
        _
      // Predicated region
      $region33: #{double_dsconv_forward.1} parent=11 // pred_check
        %p265 = pneg %p167
      $region34: #{double_dsconv_forward.1} parent=11 // pred_check_branch
        %267 = sbr.rel (%p265) target = $region36
      $region35: #{double_dsconv_forward.1} parent=11 // pred_region
        _
      $region36: #{double_dsconv_forward.1} parent=11 // pred_fallthru
        _
      // Predicated region
      $region37: #{double_dsconv_forward.1} parent=11 // pred_check
        %p268 = pneg %p188
      $region38: #{double_dsconv_forward.1} parent=11 // pred_check_branch
        %270 = sbr.rel (%p268) target = $region40
      $region39: #{double_dsconv_forward.1} parent=11 // pred_region
        _
      $region40: #{double_dsconv_forward.1} parent=11 // pred_fallthru
        _
      // Predicated region
      $region41: #{double_dsconv_forward.1} parent=11 // pred_check
        %p271 = pneg %p209
      $region42: #{double_dsconv_forward.1} parent=11 // pred_check_branch
        %273 = sbr.rel (%p271) target = $region44
      $region43: #{double_dsconv_forward.1} parent=11 // pred_region
        _
      $region44: #{double_dsconv_forward.1} parent=11 // pred_fallthru
        _
    $region12: #{double_dsconv_forward.1} parent=5 // pred_fallthru
      _
    %p274 = scmp.lt.s32.totalorder %s15, 2
    // Predicated region
    $region45: #{double_dsconv_forward.1} parent=5 // pred_check
      %p275 = pneg %p274
    $region46: #{double_dsconv_forward.1} parent=5 // pred_check_branch
      %277 = sbr.rel (%p275) target = $region48
    $region47: #{double_dsconv_forward.1} parent=5 // pred_region
      // Predicated region
      $region49: #{double_dsconv_forward.1} parent=47 // pred_check
        %p278 = pneg %p35
      $region50: #{double_dsconv_forward.1} parent=47 // pred_check_branch
        %280 = sbr.rel (%p278) target = $region52
      $region51: #{double_dsconv_forward.1} parent=47 // pred_region
        %p281 = scmp.lt.s32.totalorder %s15, 1
        %s282 = scalar_select %p281, %s15, 1
        %s283 = smul.addr %s282, 32
        %s284 = smul.addr %s283, 8
        %s285 = scalar_lea.vmem %s0, %s284
      $region52: #{double_dsconv_forward.1} parent=47 // pred_fallthru
        _
    $region48: #{double_dsconv_forward.1} parent=5 // pred_fallthru
      _
    %p286 = scmp.le.s32.totalorder 1, %s15
    %p287 = scmp.lt.s32.totalorder %s15, 3
    %p288 = pnand %p286, %p287
    %p289 = pneg %p288
    // Predicated region
    $region53: #{double_dsconv_forward.1} parent=5 // pred_check
      _
    $region54: #{double_dsconv_forward.1} parent=5 // pred_check_branch
      %291 = sbr.rel (%p288) target = $region56
    $region55: #{double_dsconv_forward.1} parent=5 // pred_region
      %s292 = ssub.s32 %s15, 1
      %p293 = scmp.lt.s32.totalorder %s20, 1
      %s294 = scalar_select %p293, %s20, 1
      %s295 = smul.addr %s294, 32
      %s296 = smul.addr %s295, 8
      %s297 = scalar_lea.vmem %s0, %s296
      %p298 = pneg %p41
      %p299 = pneg %p38
      %p300 = pneg %p62
      %p301 = pneg %p59
      %p302 = pneg %p83
      %p303 = pneg %p80
      %p304 = pneg %p104
      %p305 = pneg %p101
      %p306 = pneg %p125
      %p307 = pneg %p122
      %p308 = pneg %p146
      %p309 = pneg %p143
      %p310 = pneg %p167
      %p311 = pneg %p164
      %p312 = pneg %p188
      %p313 = pneg %p185
      %p314 = pneg %p209
      %p315 = pneg %p206
      %p316 = pneg %p235
      %p317 = pneg %p232
      %p318 = scmp.lt.s32.totalorder %s20, 1
      %s319 = scalar_select %p318, %s20, 1
      %s320 = smul.addr %s319, 32
      %s321 = smul.addr %s320, 8
      %s322 = scalar_lea.vmem %s9, %s321
      %p323 = scmp.lt.s32.totalorder %s20, 1
      %s324 = scalar_select %p323, %s20, 1
      %s325 = smul.addr %s324, 32
      %s326 = smul.addr %s325, 8
      %s327 = scalar_lea.vmem %s0, %s326
      %p328 = scmp.lt.s32.totalorder %s20, 1
      %s329 = scalar_select %p328, %s20, 1
      %s330 = smul.addr %s329, 32
      %s331 = smul.addr %s330, 8
      %s332 = scalar_lea.vmem %s9, %s331
      %v333 = vld [vmem:[%s327] sm:$0xff]
      %v334 = vld [vmem:[%s327 + $0x8] sm:$0xff]
      %v335 = vld [vmem:[%s327 + $0x10] sm:$0xff]
      %v336 = vld [vmem:[%s327 + $0x18] sm:$0xff]
      %v337 = vld [vmem:[%s327 + $0x20] sm:$0xff]
      %v338 = vld [vmem:[%s327 + $0x28] sm:$0xff]
      %v339 = vld [vmem:[%s327 + $0x30] sm:$0xff]
      %v340 = vld [vmem:[%s327 + $0x38] sm:$0xff]
      %v341 = vld [vmem:[%s327 + $0x40] sm:$0xff]
      %v342 = vld [vmem:[%s327 + $0x48] sm:$0xff]
      %v343 = vld [vmem:[%s327 + $0x50] sm:$0xff]
      %v344 = vld [vmem:[%s327 + $0x58] sm:$0xff]
      %v345 = vld [vmem:[%s327 + $0x60] sm:$0xff]
      %v346 = vld [vmem:[%s327 + $0x68] sm:$0xff]
      %v347 = vld [vmem:[%s327 + $0x70] sm:$0xff]
      %v348 = vld [vmem:[%s327 + $0x78] sm:$0xff]
      %v349 = vld [vmem:[%s327 + $0x80] sm:$0xff]
      %v350 = vld [vmem:[%s327 + $0x88] sm:$0xff]
      %v351 = vld [vmem:[%s327 + $0x90] sm:$0xff]
      %v352 = vld [vmem:[%s327 + $0x98] sm:$0xff]
      %v353 = vld [vmem:[%s327 + $0xa0] sm:$0xff]
      %v354 = vld [vmem:[%s327 + $0xa8] sm:$0xff]
      %v355 = vld [vmem:[%s327 + $0xb0] sm:$0xff]
      %v356 = vld [vmem:[%s327 + $0xb8] sm:$0xff]
      %v357 = vld [vmem:[%s327 + $0xc0] sm:$0xff]
      %v358 = vld [vmem:[%s327 + $0xc8] sm:$0xff]
      %v359 = vld [vmem:[%s327 + $0xd0] sm:$0xff]
      %v360 = vld [vmem:[%s327 + $0xd8] sm:$0xff]
      %v361 = vld [vmem:[%s327 + $0xe0] sm:$0xff]
      %v362 = vld [vmem:[%s327 + $0xe8] sm:$0xff]
      %v363 = vld [vmem:[%s327 + $0xf0] sm:$0xff]
      %v364 = vld [vmem:[%s327 + $0xf8] sm:$0xff]
      %vm365 = vcmask 31744
      %366 = vst.msk [vmem:[#allocation2] sm:$0xff] %vm365, 0.0
      %367 = vst.msk [vmem:[#allocation2 + $0x8] sm:$0xff] %vm365, 0.0
      %vm368 = vcmask 25600
      %369 = vst.msk [vmem:[#allocation2 + $0x10] sm:$0x3] %vm368, 0.0
      %370 = vst.msk [vmem:[#allocation2 + $0x18] sm:$0xff] %vm365, 0.0
      %371 = vst.msk [vmem:[#allocation2 + $0x20] sm:$0xff] %vm365, 0.0
      %372 = vst.msk [vmem:[#allocation2 + $0x28] sm:$0x3] %vm368, 0.0
      %373 = vst.msk [vmem:[#allocation2 + $0x30] sm:$0xff] %vm365, 0.0
      %374 = vst.msk [vmem:[#allocation2 + $0x38] sm:$0xff] %vm365, 0.0
      %375 = vst.msk [vmem:[#allocation2 + $0x40] sm:$0x3] %vm368, 0.0
      %376 = vst.msk [vmem:[#allocation2 + $0x48] sm:$0xff] %vm365, 0.0
      %377 = vst.msk [vmem:[#allocation2 + $0x50] sm:$0xff] %vm365, 0.0
      %378 = vst.msk [vmem:[#allocation2 + $0x58] sm:$0x3] %vm368, 0.0
      %379 = vst.msk [vmem:[#allocation2 + $0x60] sm:$0xff] %vm365, 0.0
      %380 = vst.msk [vmem:[#allocation2 + $0x68] sm:$0xff] %vm365, 0.0
      %381 = vst.msk [vmem:[#allocation2 + $0x70] sm:$0x3] %vm368, 0.0
      %382 = vst.msk [vmem:[#allocation2 + $0x78] sm:$0xff] %vm365, 0.0
      %383 = vst.msk [vmem:[#allocation2 + $0x80] sm:$0xff] %vm365, 0.0
      %384 = vst.msk [vmem:[#allocation2 + $0x88] sm:$0x3] %vm368, 0.0
      %385 = vst.msk [vmem:[#allocation2 + $0x90] sm:$0xff] %vm365, 0.0
      %386 = vst.msk [vmem:[#allocation2 + $0x98] sm:$0xff] %vm365, 0.0
      %387 = vst.msk [vmem:[#allocation2 + $0xa0] sm:$0x3] %vm368, 0.0
      %388 = vst.msk [vmem:[#allocation2 + $0xa8] sm:$0xff] %vm365, 0.0
      %389 = vst.msk [vmem:[#allocation2 + $0xb0] sm:$0xff] %vm365, 0.0
      %390 = vst.msk [vmem:[#allocation2 + $0xb8] sm:$0x3] %vm368, 0.0
      %391 = vst.msk [vmem:[#allocation2 + $0xc0] sm:$0xff] %vm365, 0.0
      %392 = vst.msk [vmem:[#allocation2 + $0xc8] sm:$0xff] %vm365, 0.0
      %393 = vst.msk [vmem:[#allocation2 + $0xd0] sm:$0x3] %vm368, 0.0
      %394 = vst.msk [vmem:[#allocation2 + $0xd8] sm:$0xff] %vm365, 0.0
      %395 = vst.msk [vmem:[#allocation2 + $0xe0] sm:$0xff] %vm365, 0.0
      %396 = vst.msk [vmem:[#allocation2 + $0xe8] sm:$0x3] %vm368, 0.0
      %397 = vst.msk [vmem:[#allocation2 + $0xf0] sm:$0xff] %vm365, 0.0
      %398 = vst.msk [vmem:[#allocation2 + $0xf8] sm:$0xff] %vm365, 0.0
      %399 = vst.msk [vmem:[#allocation2 + $0x100] sm:$0x3] %vm368, 0.0
      %400 = vst.msk [vmem:[#allocation2 + $0x108] sm:$0xff] %vm365, 0.0
      %401 = vst.msk [vmem:[#allocation2 + $0x110] sm:$0xff] %vm365, 0.0
      %402 = vst.msk [vmem:[#allocation2 + $0x118] sm:$0x3] %vm368, 0.0
      %403 = vst.msk [vmem:[#allocation2 + $0x120] sm:$0xff] %vm365, 0.0
      %404 = vst.msk [vmem:[#allocation2 + $0x128] sm:$0xff] %vm365, 0.0
      %405 = vst.msk [vmem:[#allocation2 + $0x130] sm:$0x3] %vm368, 0.0
      %406 = vst.msk [vmem:[#allocation2 + $0x138] sm:$0xff] %vm365, 0.0
      %407 = vst.msk [vmem:[#allocation2 + $0x140] sm:$0xff] %vm365, 0.0
      %408 = vst.msk [vmem:[#allocation2 + $0x148] sm:$0x3] %vm368, 0.0
      %409 = vst.msk [vmem:[#allocation2 + $0x150] sm:$0xff] %vm365, 0.0
      %410 = vst.msk [vmem:[#allocation2 + $0x158] sm:$0xff] %vm365, 0.0
      %411 = vst.msk [vmem:[#allocation2 + $0x160] sm:$0x3] %vm368, 0.0
      %412 = vst.msk [vmem:[#allocation2 + $0x168] sm:$0xff] %vm365, 0.0
      %413 = vst.msk [vmem:[#allocation2 + $0x170] sm:$0xff] %vm365, 0.0
      %414 = vst.msk [vmem:[#allocation2 + $0x178] sm:$0x3] %vm368, 0.0
      %415 = vst.msk [vmem:[#allocation2 + $0x180] sm:$0xff] %vm365, 0.0
      %416 = vst.msk [vmem:[#allocation2 + $0x188] sm:$0xff] %vm365, 0.0
      %417 = vst.msk [vmem:[#allocation2 + $0x190] sm:$0x3] %vm368, 0.0
      %418 = vst.msk [vmem:[#allocation2 + $0x198] sm:$0xff] %vm365, 0.0
      %419 = vst.msk [vmem:[#allocation2 + $0x1a0] sm:$0xff] %vm365, 0.0
      %420 = vst.msk [vmem:[#allocation2 + $0x1a8] sm:$0x3] %vm368, 0.0
      %s421 = scalar_lea.vmem [#allocation2], 24
      %422 = vst.msk [vmem:[%s421 + $0x1] sm:$0xff] %vm365, %v333
      %423 = vst.msk [vmem:[%s421 + $0x9] sm:$0xff] %vm365, %v334
      %424 = vst.msk [vmem:[%s421 + $0x19] sm:$0xff] %vm365, %v335
      %425 = vst.msk [vmem:[%s421 + $0x21] sm:$0xff] %vm365, %v336
      %426 = vst.msk [vmem:[%s421 + $0x31] sm:$0xff] %vm365, %v337
      %427 = vst.msk [vmem:[%s421 + $0x39] sm:$0xff] %vm365, %v338
      %428 = vst.msk [vmem:[%s421 + $0x49] sm:$0xff] %vm365, %v339
      %429 = vst.msk [vmem:[%s421 + $0x51] sm:$0xff] %vm365, %v340
      %430 = vst.msk [vmem:[%s421 + $0x61] sm:$0xff] %vm365, %v341
      %431 = vst.msk [vmem:[%s421 + $0x69] sm:$0xff] %vm365, %v342
      %432 = vst.msk [vmem:[%s421 + $0x79] sm:$0xff] %vm365, %v343
      %433 = vst.msk [vmem:[%s421 + $0x81] sm:$0xff] %vm365, %v344
      %434 = vst.msk [vmem:[%s421 + $0x91] sm:$0xff] %vm365, %v345
      %435 = vst.msk [vmem:[%s421 + $0x99] sm:$0xff] %vm365, %v346
      %436 = vst.msk [vmem:[%s421 + $0xa9] sm:$0xff] %vm365, %v347
      %437 = vst.msk [vmem:[%s421 + $0xb1] sm:$0xff] %vm365, %v348
      %438 = vst.msk [vmem:[%s421 + $0xc1] sm:$0xff] %vm365, %v349
      %439 = vst.msk [vmem:[%s421 + $0xc9] sm:$0xff] %vm365, %v350
      %440 = vst.msk [vmem:[%s421 + $0xd9] sm:$0xff] %vm365, %v351
      %441 = vst.msk [vmem:[%s421 + $0xe1] sm:$0xff] %vm365, %v352
      %442 = vst.msk [vmem:[%s421 + $0xf1] sm:$0xff] %vm365, %v353
      %443 = vst.msk [vmem:[%s421 + $0xf9] sm:$0xff] %vm365, %v354
      %444 = vst.msk [vmem:[%s421 + $0x109] sm:$0xff] %vm365, %v355
      %445 = vst.msk [vmem:[%s421 + $0x111] sm:$0xff] %vm365, %v356
      %446 = vst.msk [vmem:[%s421 + $0x121] sm:$0xff] %vm365, %v357
      %447 = vst.msk [vmem:[%s421 + $0x129] sm:$0xff] %vm365, %v358
      %448 = vst.msk [vmem:[%s421 + $0x139] sm:$0xff] %vm365, %v359
      %449 = vst.msk [vmem:[%s421 + $0x141] sm:$0xff] %vm365, %v360
      %450 = vst.msk [vmem:[%s421 + $0x151] sm:$0xff] %vm365, %v361
      %451 = vst.msk [vmem:[%s421 + $0x159] sm:$0xff] %vm365, %v362
      %452 = vst.msk [vmem:[%s421 + $0x169] sm:$0xff] %vm365, %v363
      %453 = vst.msk [vmem:[%s421 + $0x171] sm:$0xff] %vm365, %v364
      %v454 = vld [vmem:[#allocation2] sm:$0xff]
      %v455 = vld [vmem:[#allocation2 + $0x8] sm:$0xff]
      %v456 = vld [vmem:[#allocation2 + $0x10] sm:$0x3]
      %v457 = vld [vmem:[#allocation2 + $0x18] sm:$0xff]
      %v458 = vld [vmem:[#allocation2 + $0x20] sm:$0xff]
      %v459 = vld [vmem:[#allocation2 + $0x28] sm:$0x3]
      %v460 = vld [vmem:[#allocation2 + $0x30] sm:$0xff]
      %v461 = vld [vmem:[#allocation2 + $0x38] sm:$0xff]
      %v462 = vld [vmem:[#allocation2 + $0x40] sm:$0x3]
      %v463 = vld [vmem:[#allocation2 + $0x48] sm:$0xff]
      %v464 = vld [vmem:[#allocation2 + $0x50] sm:$0xff]
      %v465 = vld [vmem:[#allocation2 + $0x58] sm:$0x3]
      %v466 = vld [vmem:[#allocation2 + $0x60] sm:$0xff]
      %v467 = vld [vmem:[#allocation2 + $0x68] sm:$0xff]
      %v468 = vld [vmem:[#allocation2 + $0x70] sm:$0x3]
      %v469 = vld [vmem:[#allocation2 + $0x78] sm:$0xff]
      %v470 = vld [vmem:[#allocation2 + $0x80] sm:$0xff]
      %v471 = vld [vmem:[#allocation2 + $0x88] sm:$0x3]
      %v472 = vld [vmem:[#allocation2 + $0x90] sm:$0xff]
      %v473 = vld [vmem:[#allocation2 + $0x98] sm:$0xff]
      %v474 = vld [vmem:[#allocation2 + $0xa0] sm:$0x3]
      %v475 = vld [vmem:[#allocation2 + $0xa8] sm:$0xff]
      %v476 = vld [vmem:[#allocation2 + $0xb0] sm:$0xff]
      %v477 = vld [vmem:[#allocation2 + $0xb8] sm:$0x3]
      %v478 = vld [vmem:[#allocation2 + $0xc0] sm:$0xff]
      %v479 = vld [vmem:[#allocation2 + $0xc8] sm:$0xff]
      %v480 = vld [vmem:[#allocation2 + $0xd0] sm:$0x3]
      %v481 = vld [vmem:[#allocation2 + $0xd8] sm:$0xff]
      %v482 = vld [vmem:[#allocation2 + $0xe0] sm:$0xff]
      %v483 = vld [vmem:[#allocation2 + $0xe8] sm:$0x3]
      %v484 = vld [vmem:[#allocation2 + $0xf0] sm:$0xff]
      %v485 = vld [vmem:[#allocation2 + $0xf8] sm:$0xff]
      %v486 = vld [vmem:[#allocation2 + $0x100] sm:$0x3]
      %v487 = vld [vmem:[#allocation2 + $0x108] sm:$0xff]
      %v488 = vld [vmem:[#allocation2 + $0x110] sm:$0xff]
      %v489 = vld [vmem:[#allocation2 + $0x118] sm:$0x3]
      %v490 = vld [vmem:[#allocation2 + $0x120] sm:$0xff]
      %v491 = vld [vmem:[#allocation2 + $0x128] sm:$0xff]
      %v492 = vld [vmem:[#allocation2 + $0x130] sm:$0x3]
      %v493 = vld [vmem:[#allocation2 + $0x138] sm:$0xff]
      %v494 = vld [vmem:[#allocation2 + $0x140] sm:$0xff]
      %v495 = vld [vmem:[#allocation2 + $0x148] sm:$0x3]
      %v496 = vld [vmem:[#allocation2 + $0x150] sm:$0xff]
      %v497 = vld [vmem:[#allocation2 + $0x158] sm:$0xff]
      %v498 = vld [vmem:[#allocation2 + $0x160] sm:$0x3]
      %v499 = vld [vmem:[#allocation2 + $0x168] sm:$0xff]
      %v500 = vld [vmem:[#allocation2 + $0x170] sm:$0xff]
      %v501 = vld [vmem:[#allocation2 + $0x178] sm:$0x3]
      %v502 = vld [vmem:[#allocation2 + $0x180] sm:$0xff]
      %v503 = vld [vmem:[#allocation2 + $0x188] sm:$0xff]
      %v504 = vld [vmem:[#allocation2 + $0x190] sm:$0x3]
      %v505 = vld [vmem:[#allocation2 + $0x198] sm:$0xff]
      %v506 = vld [vmem:[#allocation2 + $0x1a0] sm:$0xff]
      %v507 = vld [vmem:[#allocation2 + $0x1a8] sm:$0x3]
      %v508 = vld [vmem:[%s1] sm:$0x1]
      %v509 = vlaneseq
      %v510 = vshrl.u32 %v509, 7
      %v511 = vsub.s32 0, %v510
      %v512 = vrot.slane %v508, %v511
      %v513 = vmul.f32 %v454, %v512
      %v514 = vmul.f32 %v455, %v512
      %v515 = vmul.f32 %v457, %v512
      %v516 = vmul.f32 %v458, %v512
      %v517 = vmul.f32 %v460, %v512
      %v518 = vmul.f32 %v461, %v512
      %v519 = vmul.f32 %v463, %v512
      %v520 = vmul.f32 %v464, %v512
      %v521 = vmul.f32 %v466, %v512
      %v522 = vmul.f32 %v467, %v512
      %v523 = vmul.f32 %v469, %v512
      %v524 = vmul.f32 %v470, %v512
      %v525 = vmul.f32 %v472, %v512
      %v526 = vmul.f32 %v473, %v512
      %v527 = vmul.f32 %v475, %v512
      %v528 = vmul.f32 %v476, %v512
      %v529 = vmul.f32 %v478, %v512
      %v530 = vmul.f32 %v479, %v512
      %v531 = vmul.f32 %v481, %v512
      %v532 = vmul.f32 %v482, %v512
      %v533 = vmul.f32 %v484, %v512
      %v534 = vmul.f32 %v485, %v512
      %v535 = vmul.f32 %v487, %v512
      %v536 = vmul.f32 %v488, %v512
      %v537 = vmul.f32 %v490, %v512
      %v538 = vmul.f32 %v491, %v512
      %v539 = vmul.f32 %v493, %v512
      %v540 = vmul.f32 %v494, %v512
      %v541 = vmul.f32 %v496, %v512
      %v542 = vmul.f32 %v497, %v512
      %v543 = vmul.f32 %v499, %v512
      %v544 = vmul.f32 %v500, %v512
      %v545 = vadd.f32 %v513, 0.0
      %v546 = vadd.f32 %v514, 0.0
      %v547 = vadd.f32 %v515, 0.0
      %v548 = vadd.f32 %v516, 0.0
      %v549 = vadd.f32 %v517, 0.0
      %v550 = vadd.f32 %v518, 0.0
      %v551 = vadd.f32 %v519, 0.0
      %v552 = vadd.f32 %v520, 0.0
      %v553 = vadd.f32 %v521, 0.0
      %v554 = vadd.f32 %v522, 0.0
      %v555 = vadd.f32 %v523, 0.0
      %v556 = vadd.f32 %v524, 0.0
      %v557 = vadd.f32 %v525, 0.0
      %v558 = vadd.f32 %v526, 0.0
      %v559 = vadd.f32 %v527, 0.0
      %v560 = vadd.f32 %v528, 0.0
      %v561 = vadd.f32 %v529, 0.0
      %v562 = vadd.f32 %v530, 0.0
      %v563 = vadd.f32 %v531, 0.0
      %v564 = vadd.f32 %v532, 0.0
      %v565 = vadd.f32 %v533, 0.0
      %v566 = vadd.f32 %v534, 0.0
      %v567 = vadd.f32 %v535, 0.0
      %v568 = vadd.f32 %v536, 0.0
      %v569 = vadd.f32 %v537, 0.0
      %v570 = vadd.f32 %v538, 0.0
      %v571 = vadd.f32 %v539, 0.0
      %v572 = vadd.f32 %v540, 0.0
      %v573 = vadd.f32 %v541, 0.0
      %v574 = vadd.f32 %v542, 0.0
      %v575 = vadd.f32 %v543, 0.0
      %v576 = vadd.f32 %v544, 0.0
      %v577 = vld [vmem:[%s1 + $0x1] sm:$0x1]
      %v578 = vlaneseq
      %v579 = vshrl.u32 %v578, 7
      %v580 = vsub.s32 0, %v579
      %v581 = vrot.slane %v577, %v580
      %v582 = vmul.f32 %v454, %v581
      %v583 = vmul.f32 %v455, %v581
      %v584 = vmul.f32 %v456, %v581
      %v585 = vmul.f32 %v457, %v581
      %v586 = vmul.f32 %v458, %v581
      %v587 = vmul.f32 %v459, %v581
      %v588 = vmul.f32 %v460, %v581
      %v589 = vmul.f32 %v461, %v581
      %v590 = vmul.f32 %v462, %v581
      %v591 = vmul.f32 %v463, %v581
      %v592 = vmul.f32 %v464, %v581
      %v593 = vmul.f32 %v465, %v581
      %v594 = vmul.f32 %v466, %v581
      %v595 = vmul.f32 %v467, %v581
      %v596 = vmul.f32 %v468, %v581
      %v597 = vmul.f32 %v469, %v581
      %v598 = vmul.f32 %v470, %v581
      %v599 = vmul.f32 %v471, %v581
      %v600 = vmul.f32 %v472, %v581
      %v601 = vmul.f32 %v473, %v581
      %v602 = vmul.f32 %v474, %v581
      %v603 = vmul.f32 %v475, %v581
      %v604 = vmul.f32 %v476, %v581
      %v605 = vmul.f32 %v477, %v581
      %v606 = vmul.f32 %v478, %v581
      %v607 = vmul.f32 %v479, %v581
      %v608 = vmul.f32 %v480, %v581
      %v609 = vmul.f32 %v481, %v581
      %v610 = vmul.f32 %v482, %v581
      %v611 = vmul.f32 %v483, %v581
      %v612 = vmul.f32 %v484, %v581
      %v613 = vmul.f32 %v485, %v581
      %v614 = vmul.f32 %v486, %v581
      %v615 = vmul.f32 %v487, %v581
      %v616 = vmul.f32 %v488, %v581
      %v617 = vmul.f32 %v489, %v581
      %v618 = vmul.f32 %v490, %v581
      %v619 = vmul.f32 %v491, %v581
      %v620 = vmul.f32 %v492, %v581
      %v621 = vmul.f32 %v493, %v581
      %v622 = vmul.f32 %v494, %v581
      %v623 = vmul.f32 %v495, %v581
      %v624 = vmul.f32 %v496, %v581
      %v625 = vmul.f32 %v497, %v581
      %v626 = vmul.f32 %v498, %v581
      %v627 = vmul.f32 %v499, %v581
      %v628 = vmul.f32 %v500, %v581
      %v629 = vmul.f32 %v501, %v581
      %vm678 = vcmask 1046528
      %v679 = vrot.slane %v582, 1
      %v680 = vrot.slane %v583, 1
      %v681 = vsel %vm678, %v679, %v680
      %v682 = vrot.slane %v584, 1
      %v683 = vsel %vm678, %v680, %v682
      %v684 = vrot.slane %v585, 1
      %v685 = vrot.slane %v586, 1
      %v686 = vsel %vm678, %v684, %v685
      %v687 = vrot.slane %v587, 1
      %v688 = vsel %vm678, %v685, %v687
      %v689 = vrot.slane %v588, 1
      %v690 = vrot.slane %v589, 1
      %v691 = vsel %vm678, %v689, %v690
      %v692 = vrot.slane %v590, 1
      %v693 = vsel %vm678, %v690, %v692
      %v694 = vrot.slane %v591, 1
      %v695 = vrot.slane %v592, 1
      %v696 = vsel %vm678, %v694, %v695
      %v697 = vrot.slane %v593, 1
      %v698 = vsel %vm678, %v695, %v697
      %v699 = vrot.slane %v594, 1
      %v700 = vrot.slane %v595, 1
      %v701 = vsel %vm678, %v699, %v700
      %v702 = vrot.slane %v596, 1
      %v703 = vsel %vm678, %v700, %v702
      %v704 = vrot.slane %v597, 1
      %v705 = vrot.slane %v598, 1
      %v706 = vsel %vm678, %v704, %v705
      %v707 = vrot.slane %v599, 1
      %v708 = vsel %vm678, %v705, %v707
      %v709 = vrot.slane %v600, 1
      %v710 = vrot.slane %v601, 1
      %v711 = vsel %vm678, %v709, %v710
      %v712 = vrot.slane %v602, 1
      %v713 = vsel %vm678, %v710, %v712
      %v714 = vrot.slane %v603, 1
      %v715 = vrot.slane %v604, 1
      %v716 = vsel %vm678, %v714, %v715
      %v717 = vrot.slane %v605, 1
      %v718 = vsel %vm678, %v715, %v717
      %v719 = vrot.slane %v606, 1
      %v720 = vrot.slane %v607, 1
      %v721 = vsel %vm678, %v719, %v720
      %v722 = vrot.slane %v608, 1
      %v723 = vsel %vm678, %v720, %v722
      %v724 = vrot.slane %v609, 1
      %v725 = vrot.slane %v610, 1
      %v726 = vsel %vm678, %v724, %v725
      %v727 = vrot.slane %v611, 1
      %v728 = vsel %vm678, %v725, %v727
      %v729 = vrot.slane %v612, 1
      %v730 = vrot.slane %v613, 1
      %v731 = vsel %vm678, %v729, %v730
      %v732 = vrot.slane %v614, 1
      %v733 = vsel %vm678, %v730, %v732
      %v734 = vrot.slane %v615, 1
      %v735 = vrot.slane %v616, 1
      %v736 = vsel %vm678, %v734, %v735
      %v737 = vrot.slane %v617, 1
      %v738 = vsel %vm678, %v735, %v737
      %v739 = vrot.slane %v618, 1
      %v740 = vrot.slane %v619, 1
      %v741 = vsel %vm678, %v739, %v740
      %v742 = vrot.slane %v620, 1
      %v743 = vsel %vm678, %v740, %v742
      %v744 = vrot.slane %v621, 1
      %v745 = vrot.slane %v622, 1
      %v746 = vsel %vm678, %v744, %v745
      %v747 = vrot.slane %v623, 1
      %v748 = vsel %vm678, %v745, %v747
      %v749 = vrot.slane %v624, 1
      %v750 = vrot.slane %v625, 1
      %v751 = vsel %vm678, %v749, %v750
      %v752 = vrot.slane %v626, 1
      %v753 = vsel %vm678, %v750, %v752
      %v754 = vrot.slane %v627, 1
      %v755 = vrot.slane %v628, 1
      %v756 = vsel %vm678, %v754, %v755
      %v757 = vrot.slane %v629, 1
      %v758 = vsel %vm678, %v755, %v757
      %v791 = vadd.f32 %v545, %v681
      %v792 = vadd.f32 %v546, %v683
      %v793 = vadd.f32 %v547, %v686
      %v794 = vadd.f32 %v548, %v688
      %v795 = vadd.f32 %v549, %v691
      %v796 = vadd.f32 %v550, %v693
      %v797 = vadd.f32 %v551, %v696
      %v798 = vadd.f32 %v552, %v698
      %v799 = vadd.f32 %v553, %v701
      %v800 = vadd.f32 %v554, %v703
      %v801 = vadd.f32 %v555, %v706
      %v802 = vadd.f32 %v556, %v708
      %v803 = vadd.f32 %v557, %v711
      %v804 = vadd.f32 %v558, %v713
      %v805 = vadd.f32 %v559, %v716
      %v806 = vadd.f32 %v560, %v718
      %v807 = vadd.f32 %v561, %v721
      %v808 = vadd.f32 %v562, %v723
      %v809 = vadd.f32 %v563, %v726
      %v810 = vadd.f32 %v564, %v728
      %v811 = vadd.f32 %v565, %v731
      %v812 = vadd.f32 %v566, %v733
      %v813 = vadd.f32 %v567, %v736
      %v814 = vadd.f32 %v568, %v738
      %v815 = vadd.f32 %v569, %v741
      %v816 = vadd.f32 %v570, %v743
      %v817 = vadd.f32 %v571, %v746
      %v818 = vadd.f32 %v572, %v748
      %v819 = vadd.f32 %v573, %v751
      %v820 = vadd.f32 %v574, %v753
      %v821 = vadd.f32 %v575, %v756
      %v822 = vadd.f32 %v576, %v758
      %v823 = vld [vmem:[%s1 + $0x2] sm:$0x1]
      %v824 = vlaneseq
      %v825 = vshrl.u32 %v824, 7
      %v826 = vsub.s32 0, %v825
      %v827 = vrot.slane %v823, %v826
      %v828 = vmul.f32 %v454, %v827
      %v829 = vmul.f32 %v455, %v827
      %v830 = vmul.f32 %v456, %v827
      %v831 = vmul.f32 %v457, %v827
      %v832 = vmul.f32 %v458, %v827
      %v833 = vmul.f32 %v459, %v827
      %v834 = vmul.f32 %v460, %v827
      %v835 = vmul.f32 %v461, %v827
      %v836 = vmul.f32 %v462, %v827
      %v837 = vmul.f32 %v463, %v827
      %v838 = vmul.f32 %v464, %v827
      %v839 = vmul.f32 %v465, %v827
      %v840 = vmul.f32 %v466, %v827
      %v841 = vmul.f32 %v467, %v827
      %v842 = vmul.f32 %v468, %v827
      %v843 = vmul.f32 %v469, %v827
      %v844 = vmul.f32 %v470, %v827
      %v845 = vmul.f32 %v471, %v827
      %v846 = vmul.f32 %v472, %v827
      %v847 = vmul.f32 %v473, %v827
      %v848 = vmul.f32 %v474, %v827
      %v849 = vmul.f32 %v475, %v827
      %v850 = vmul.f32 %v476, %v827
      %v851 = vmul.f32 %v477, %v827
      %v852 = vmul.f32 %v478, %v827
      %v853 = vmul.f32 %v479, %v827
      %v854 = vmul.f32 %v480, %v827
      %v855 = vmul.f32 %v481, %v827
      %v856 = vmul.f32 %v482, %v827
      %v857 = vmul.f32 %v483, %v827
      %v858 = vmul.f32 %v484, %v827
      %v859 = vmul.f32 %v485, %v827
      %v860 = vmul.f32 %v486, %v827
      %v861 = vmul.f32 %v487, %v827
      %v862 = vmul.f32 %v488, %v827
      %v863 = vmul.f32 %v489, %v827
      %v864 = vmul.f32 %v490, %v827
      %v865 = vmul.f32 %v491, %v827
      %v866 = vmul.f32 %v492, %v827
      %v867 = vmul.f32 %v493, %v827
      %v868 = vmul.f32 %v494, %v827
      %v869 = vmul.f32 %v495, %v827
      %v870 = vmul.f32 %v496, %v827
      %v871 = vmul.f32 %v497, %v827
      %v872 = vmul.f32 %v498, %v827
      %v873 = vmul.f32 %v499, %v827
      %v874 = vmul.f32 %v500, %v827
      %v875 = vmul.f32 %v501, %v827
      %vm924 = vcmask 1045504
      %v925 = vrot.slane %v828, 2
      %v926 = vrot.slane %v829, 2
      %v927 = vsel %vm924, %v925, %v926
      %v928 = vrot.slane %v830, 2
      %v929 = vsel %vm924, %v926, %v928
      %v930 = vrot.slane %v831, 2
      %v931 = vrot.slane %v832, 2
      %v932 = vsel %vm924, %v930, %v931
      %v933 = vrot.slane %v833, 2
      %v934 = vsel %vm924, %v931, %v933
      %v935 = vrot.slane %v834, 2
      %v936 = vrot.slane %v835, 2
      %v937 = vsel %vm924, %v935, %v936
      %v938 = vrot.slane %v836, 2
      %v939 = vsel %vm924, %v936, %v938
      %v940 = vrot.slane %v837, 2
      %v941 = vrot.slane %v838, 2
      %v942 = vsel %vm924, %v940, %v941
      %v943 = vrot.slane %v839, 2
      %v944 = vsel %vm924, %v941, %v943
      %v945 = vrot.slane %v840, 2
      %v946 = vrot.slane %v841, 2
      %v947 = vsel %vm924, %v945, %v946
      %v948 = vrot.slane %v842, 2
      %v949 = vsel %vm924, %v946, %v948
      %v950 = vrot.slane %v843, 2
      %v951 = vrot.slane %v844, 2
      %v952 = vsel %vm924, %v950, %v951
      %v953 = vrot.slane %v845, 2
      %v954 = vsel %vm924, %v951, %v953
      %v955 = vrot.slane %v846, 2
      %v956 = vrot.slane %v847, 2
      %v957 = vsel %vm924, %v955, %v956
      %v958 = vrot.slane %v848, 2
      %v959 = vsel %vm924, %v956, %v958
      %v960 = vrot.slane %v849, 2
      %v961 = vrot.slane %v850, 2
      %v962 = vsel %vm924, %v960, %v961
      %v963 = vrot.slane %v851, 2
      %v964 = vsel %vm924, %v961, %v963
      %v965 = vrot.slane %v852, 2
      %v966 = vrot.slane %v853, 2
      %v967 = vsel %vm924, %v965, %v966
      %v968 = vrot.slane %v854, 2
      %v969 = vsel %vm924, %v966, %v968
      %v970 = vrot.slane %v855, 2
      %v971 = vrot.slane %v856, 2
      %v972 = vsel %vm924, %v970, %v971
      %v973 = vrot.slane %v857, 2
      %v974 = vsel %vm924, %v971, %v973
      %v975 = vrot.slane %v858, 2
      %v976 = vrot.slane %v859, 2
      %v977 = vsel %vm924, %v975, %v976
      %v978 = vrot.slane %v860, 2
      %v979 = vsel %vm924, %v976, %v978
      %v980 = vrot.slane %v861, 2
      %v981 = vrot.slane %v862, 2
      %v982 = vsel %vm924, %v980, %v981
      %v983 = vrot.slane %v863, 2
      %v984 = vsel %vm924, %v981, %v983
      %v985 = vrot.slane %v864, 2
      %v986 = vrot.slane %v865, 2
      %v987 = vsel %vm924, %v985, %v986
      %v988 = vrot.slane %v866, 2
      %v989 = vsel %vm924, %v986, %v988
      %v990 = vrot.slane %v867, 2
      %v991 = vrot.slane %v868, 2
      %v992 = vsel %vm924, %v990, %v991
      %v993 = vrot.slane %v869, 2
      %v994 = vsel %vm924, %v991, %v993
      %v995 = vrot.slane %v870, 2
      %v996 = vrot.slane %v871, 2
      %v997 = vsel %vm924, %v995, %v996
      %v998 = vrot.slane %v872, 2
      %v999 = vsel %vm924, %v996, %v998
      %v1000 = vrot.slane %v873, 2
      %v1001 = vrot.slane %v874, 2
      %v1002 = vsel %vm924, %v1000, %v1001
      %v1003 = vrot.slane %v875, 2
      %v1004 = vsel %vm924, %v1001, %v1003
      %v1037 = vadd.f32 %v791, %v927
      %v1038 = vadd.f32 %v792, %v929
      %v1039 = vadd.f32 %v793, %v932
      %v1040 = vadd.f32 %v794, %v934
      %v1041 = vadd.f32 %v795, %v937
      %v1042 = vadd.f32 %v796, %v939
      %v1043 = vadd.f32 %v797, %v942
      %v1044 = vadd.f32 %v798, %v944
      %v1045 = vadd.f32 %v799, %v947
      %v1046 = vadd.f32 %v800, %v949
      %v1047 = vadd.f32 %v801, %v952
      %v1048 = vadd.f32 %v802, %v954
      %v1049 = vadd.f32 %v803, %v957
      %v1050 = vadd.f32 %v804, %v959
      %v1051 = vadd.f32 %v805, %v962
      %v1052 = vadd.f32 %v806, %v964
      %v1053 = vadd.f32 %v807, %v967
      %v1054 = vadd.f32 %v808, %v969
      %v1055 = vadd.f32 %v809, %v972
      %v1056 = vadd.f32 %v810, %v974
      %v1057 = vadd.f32 %v811, %v977
      %v1058 = vadd.f32 %v812, %v979
      %v1059 = vadd.f32 %v813, %v982
      %v1060 = vadd.f32 %v814, %v984
      %v1061 = vadd.f32 %v815, %v987
      %v1062 = vadd.f32 %v816, %v989
      %v1063 = vadd.f32 %v817, %v992
      %v1064 = vadd.f32 %v818, %v994
      %v1065 = vadd.f32 %v819, %v997
      %v1066 = vadd.f32 %v820, %v999
      %v1067 = vadd.f32 %v821, %v1002
      %v1068 = vadd.f32 %v822, %v1004
      %s1069 = scalar_lea.vmem %s1, 4
      %v1070 = vld [vmem:[%s1069] sm:$0x1]
      %v1071 = vlaneseq
      %v1072 = vshrl.u32 %v1071, 7
      %v1073 = vsub.s32 0, %v1072
      %v1074 = vrot.slane %v1070, %v1073
      %v1075 = vmul.f32 %v457, %v1074
      %v1076 = vmul.f32 %v458, %v1074
      %v1077 = vmul.f32 %v460, %v1074
      %v1078 = vmul.f32 %v461, %v1074
      %v1079 = vmul.f32 %v463, %v1074
      %v1080 = vmul.f32 %v464, %v1074
      %v1081 = vmul.f32 %v466, %v1074
      %v1082 = vmul.f32 %v467, %v1074
      %v1083 = vmul.f32 %v469, %v1074
      %v1084 = vmul.f32 %v470, %v1074
      %v1085 = vmul.f32 %v472, %v1074
      %v1086 = vmul.f32 %v473, %v1074
      %v1087 = vmul.f32 %v475, %v1074
      %v1088 = vmul.f32 %v476, %v1074
      %v1089 = vmul.f32 %v478, %v1074
      %v1090 = vmul.f32 %v479, %v1074
      %v1091 = vmul.f32 %v481, %v1074
      %v1092 = vmul.f32 %v482, %v1074
      %v1093 = vmul.f32 %v484, %v1074
      %v1094 = vmul.f32 %v485, %v1074
      %v1095 = vmul.f32 %v487, %v1074
      %v1096 = vmul.f32 %v488, %v1074
      %v1097 = vmul.f32 %v490, %v1074
      %v1098 = vmul.f32 %v491, %v1074
      %v1099 = vmul.f32 %v493, %v1074
      %v1100 = vmul.f32 %v494, %v1074
      %v1101 = vmul.f32 %v496, %v1074
      %v1102 = vmul.f32 %v497, %v1074
      %v1103 = vmul.f32 %v499, %v1074
      %v1104 = vmul.f32 %v500, %v1074
      %v1105 = vmul.f32 %v502, %v1074
      %v1106 = vmul.f32 %v503, %v1074
      %v1107 = vadd.f32 %v1037, %v1075
      %v1108 = vadd.f32 %v1038, %v1076
      %v1109 = vadd.f32 %v1039, %v1077
      %v1110 = vadd.f32 %v1040, %v1078
      %v1111 = vadd.f32 %v1041, %v1079
      %v1112 = vadd.f32 %v1042, %v1080
      %v1113 = vadd.f32 %v1043, %v1081
      %v1114 = vadd.f32 %v1044, %v1082
      %v1115 = vadd.f32 %v1045, %v1083
      %v1116 = vadd.f32 %v1046, %v1084
      %v1117 = vadd.f32 %v1047, %v1085
      %v1118 = vadd.f32 %v1048, %v1086
      %v1119 = vadd.f32 %v1049, %v1087
      %v1120 = vadd.f32 %v1050, %v1088
      %v1121 = vadd.f32 %v1051, %v1089
      %v1122 = vadd.f32 %v1052, %v1090
      %v1123 = vadd.f32 %v1053, %v1091
      %v1124 = vadd.f32 %v1054, %v1092
      %v1125 = vadd.f32 %v1055, %v1093
      %v1126 = vadd.f32 %v1056, %v1094
      %v1127 = vadd.f32 %v1057, %v1095
      %v1128 = vadd.f32 %v1058, %v1096
      %v1129 = vadd.f32 %v1059, %v1097
      %v1130 = vadd.f32 %v1060, %v1098
      %v1131 = vadd.f32 %v1061, %v1099
      %v1132 = vadd.f32 %v1062, %v1100
      %v1133 = vadd.f32 %v1063, %v1101
      %v1134 = vadd.f32 %v1064, %v1102
      %v1135 = vadd.f32 %v1065, %v1103
      %v1136 = vadd.f32 %v1066, %v1104
      %v1137 = vadd.f32 %v1067, %v1105
      %v1138 = vadd.f32 %v1068, %v1106
      %v1139 = vld [vmem:[%s1069 + $0x1] sm:$0x1]
      %v1140 = vlaneseq
      %v1141 = vshrl.u32 %v1140, 7
      %v1142 = vsub.s32 0, %v1141
      %v1143 = vrot.slane %v1139, %v1142
      %v1144 = vmul.f32 %v457, %v1143
      %v1145 = vmul.f32 %v458, %v1143
      %v1146 = vmul.f32 %v459, %v1143
      %v1147 = vmul.f32 %v460, %v1143
      %v1148 = vmul.f32 %v461, %v1143
      %v1149 = vmul.f32 %v462, %v1143
      %v1150 = vmul.f32 %v463, %v1143
      %v1151 = vmul.f32 %v464, %v1143
      %v1152 = vmul.f32 %v465, %v1143
      %v1153 = vmul.f32 %v466, %v1143
      %v1154 = vmul.f32 %v467, %v1143
      %v1155 = vmul.f32 %v468, %v1143
      %v1156 = vmul.f32 %v469, %v1143
      %v1157 = vmul.f32 %v470, %v1143
      %v1158 = vmul.f32 %v471, %v1143
      %v1159 = vmul.f32 %v472, %v1143
      %v1160 = vmul.f32 %v473, %v1143
      %v1161 = vmul.f32 %v474, %v1143
      %v1162 = vmul.f32 %v475, %v1143
      %v1163 = vmul.f32 %v476, %v1143
      %v1164 = vmul.f32 %v477, %v1143
      %v1165 = vmul.f32 %v478, %v1143
      %v1166 = vmul.f32 %v479, %v1143
      %v1167 = vmul.f32 %v480, %v1143
      %v1168 = vmul.f32 %v481, %v1143
      %v1169 = vmul.f32 %v482, %v1143
      %v1170 = vmul.f32 %v483, %v1143
      %v1171 = vmul.f32 %v484, %v1143
      %v1172 = vmul.f32 %v485, %v1143
      %v1173 = vmul.f32 %v486, %v1143
      %v1174 = vmul.f32 %v487, %v1143
      %v1175 = vmul.f32 %v488, %v1143
      %v1176 = vmul.f32 %v489, %v1143
      %v1177 = vmul.f32 %v490, %v1143
      %v1178 = vmul.f32 %v491, %v1143
      %v1179 = vmul.f32 %v492, %v1143
      %v1180 = vmul.f32 %v493, %v1143
      %v1181 = vmul.f32 %v494, %v1143
      %v1182 = vmul.f32 %v495, %v1143
      %v1183 = vmul.f32 %v496, %v1143
      %v1184 = vmul.f32 %v497, %v1143
      %v1185 = vmul.f32 %v498, %v1143
      %v1186 = vmul.f32 %v499, %v1143
      %v1187 = vmul.f32 %v500, %v1143
      %v1188 = vmul.f32 %v501, %v1143
      %v1189 = vmul.f32 %v502, %v1143
      %v1190 = vmul.f32 %v503, %v1143
      %v1191 = vmul.f32 %v504, %v1143
      %v1240 = vrot.slane %v1144, 1
      %v1241 = vrot.slane %v1145, 1
      %v1242 = vsel %vm678, %v1240, %v1241
      %v1243 = vrot.slane %v1146, 1
      %v1244 = vsel %vm678, %v1241, %v1243
      %v1245 = vrot.slane %v1147, 1
      %v1246 = vrot.slane %v1148, 1
      %v1247 = vsel %vm678, %v1245, %v1246
      %v1248 = vrot.slane %v1149, 1
      %v1249 = vsel %vm678, %v1246, %v1248
      %v1250 = vrot.slane %v1150, 1
      %v1251 = vrot.slane %v1151, 1
      %v1252 = vsel %vm678, %v1250, %v1251
      %v1253 = vrot.slane %v1152, 1
      %v1254 = vsel %vm678, %v1251, %v1253
      %v1255 = vrot.slane %v1153, 1
      %v1256 = vrot.slane %v1154, 1
      %v1257 = vsel %vm678, %v1255, %v1256
      %v1258 = vrot.slane %v1155, 1
      %v1259 = vsel %vm678, %v1256, %v1258
      %v1260 = vrot.slane %v1156, 1
      %v1261 = vrot.slane %v1157, 1
      %v1262 = vsel %vm678, %v1260, %v1261
      %v1263 = vrot.slane %v1158, 1
      %v1264 = vsel %vm678, %v1261, %v1263
      %v1265 = vrot.slane %v1159, 1
      %v1266 = vrot.slane %v1160, 1
      %v1267 = vsel %vm678, %v1265, %v1266
      %v1268 = vrot.slane %v1161, 1
      %v1269 = vsel %vm678, %v1266, %v1268
      %v1270 = vrot.slane %v1162, 1
      %v1271 = vrot.slane %v1163, 1
      %v1272 = vsel %vm678, %v1270, %v1271
      %v1273 = vrot.slane %v1164, 1
      %v1274 = vsel %vm678, %v1271, %v1273
      %v1275 = vrot.slane %v1165, 1
      %v1276 = vrot.slane %v1166, 1
      %v1277 = vsel %vm678, %v1275, %v1276
      %v1278 = vrot.slane %v1167, 1
      %v1279 = vsel %vm678, %v1276, %v1278
      %v1280 = vrot.slane %v1168, 1
      %v1281 = vrot.slane %v1169, 1
      %v1282 = vsel %vm678, %v1280, %v1281
      %v1283 = vrot.slane %v1170, 1
      %v1284 = vsel %vm678, %v1281, %v1283
      %v1285 = vrot.slane %v1171, 1
      %v1286 = vrot.slane %v1172, 1
      %v1287 = vsel %vm678, %v1285, %v1286
      %v1288 = vrot.slane %v1173, 1
      %v1289 = vsel %vm678, %v1286, %v1288
      %v1290 = vrot.slane %v1174, 1
      %v1291 = vrot.slane %v1175, 1
      %v1292 = vsel %vm678, %v1290, %v1291
      %v1293 = vrot.slane %v1176, 1
      %v1294 = vsel %vm678, %v1291, %v1293
      %v1295 = vrot.slane %v1177, 1
      %v1296 = vrot.slane %v1178, 1
      %v1297 = vsel %vm678, %v1295, %v1296
      %v1298 = vrot.slane %v1179, 1
      %v1299 = vsel %vm678, %v1296, %v1298
      %v1300 = vrot.slane %v1180, 1
      %v1301 = vrot.slane %v1181, 1
      %v1302 = vsel %vm678, %v1300, %v1301
      %v1303 = vrot.slane %v1182, 1
      %v1304 = vsel %vm678, %v1301, %v1303
      %v1305 = vrot.slane %v1183, 1
      %v1306 = vrot.slane %v1184, 1
      %v1307 = vsel %vm678, %v1305, %v1306
      %v1308 = vrot.slane %v1185, 1
      %v1309 = vsel %vm678, %v1306, %v1308
      %v1310 = vrot.slane %v1186, 1
      %v1311 = vrot.slane %v1187, 1
      %v1312 = vsel %vm678, %v1310, %v1311
      %v1313 = vrot.slane %v1188, 1
      %v1314 = vsel %vm678, %v1311, %v1313
      %v1315 = vrot.slane %v1189, 1
      %v1316 = vrot.slane %v1190, 1
      %v1317 = vsel %vm678, %v1315, %v1316
      %v1318 = vrot.slane %v1191, 1
      %v1319 = vsel %vm678, %v1316, %v1318
      %v1352 = vadd.f32 %v1107, %v1242
      %v1353 = vadd.f32 %v1108, %v1244
      %v1354 = vadd.f32 %v1109, %v1247
      %v1355 = vadd.f32 %v1110, %v1249
      %v1356 = vadd.f32 %v1111, %v1252
      %v1357 = vadd.f32 %v1112, %v1254
      %v1358 = vadd.f32 %v1113, %v1257
      %v1359 = vadd.f32 %v1114, %v1259
      %v1360 = vadd.f32 %v1115, %v1262
      %v1361 = vadd.f32 %v1116, %v1264
      %v1362 = vadd.f32 %v1117, %v1267
      %v1363 = vadd.f32 %v1118, %v1269
      %v1364 = vadd.f32 %v1119, %v1272
      %v1365 = vadd.f32 %v1120, %v1274
      %v1366 = vadd.f32 %v1121, %v1277
      %v1367 = vadd.f32 %v1122, %v1279
      %v1368 = vadd.f32 %v1123, %v1282
      %v1369 = vadd.f32 %v1124, %v1284
      %v1370 = vadd.f32 %v1125, %v1287
      %v1371 = vadd.f32 %v1126, %v1289
      %v1372 = vadd.f32 %v1127, %v1292
      %v1373 = vadd.f32 %v1128, %v1294
      %v1374 = vadd.f32 %v1129, %v1297
      %v1375 = vadd.f32 %v1130, %v1299
      %v1376 = vadd.f32 %v1131, %v1302
      %v1377 = vadd.f32 %v1132, %v1304
      %v1378 = vadd.f32 %v1133, %v1307
      %v1379 = vadd.f32 %v1134, %v1309
      %v1380 = vadd.f32 %v1135, %v1312
      %v1381 = vadd.f32 %v1136, %v1314
      %v1382 = vadd.f32 %v1137, %v1317
      %v1383 = vadd.f32 %v1138, %v1319
      %v1384 = vld [vmem:[%s1069 + $0x2] sm:$0x1]
      %v1385 = vlaneseq
      %v1386 = vshrl.u32 %v1385, 7
      %v1387 = vsub.s32 0, %v1386
      %v1388 = vrot.slane %v1384, %v1387
      %v1389 = vmul.f32 %v457, %v1388
      %v1390 = vmul.f32 %v458, %v1388
      %v1391 = vmul.f32 %v459, %v1388
      %v1392 = vmul.f32 %v460, %v1388
      %v1393 = vmul.f32 %v461, %v1388
      %v1394 = vmul.f32 %v462, %v1388
      %v1395 = vmul.f32 %v463, %v1388
      %v1396 = vmul.f32 %v464, %v1388
      %v1397 = vmul.f32 %v465, %v1388
      %v1398 = vmul.f32 %v466, %v1388
      %v1399 = vmul.f32 %v467, %v1388
      %v1400 = vmul.f32 %v468, %v1388
      %v1401 = vmul.f32 %v469, %v1388
      %v1402 = vmul.f32 %v470, %v1388
      %v1403 = vmul.f32 %v471, %v1388
      %v1404 = vmul.f32 %v472, %v1388
      %v1405 = vmul.f32 %v473, %v1388
      %v1406 = vmul.f32 %v474, %v1388
      %v1407 = vmul.f32 %v475, %v1388
      %v1408 = vmul.f32 %v476, %v1388
      %v1409 = vmul.f32 %v477, %v1388
      %v1410 = vmul.f32 %v478, %v1388
      %v1411 = vmul.f32 %v479, %v1388
      %v1412 = vmul.f32 %v480, %v1388
      %v1413 = vmul.f32 %v481, %v1388
      %v1414 = vmul.f32 %v482, %v1388
      %v1415 = vmul.f32 %v483, %v1388
      %v1416 = vmul.f32 %v484, %v1388
      %v1417 = vmul.f32 %v485, %v1388
      %v1418 = vmul.f32 %v486, %v1388
      %v1419 = vmul.f32 %v487, %v1388
      %v1420 = vmul.f32 %v488, %v1388
      %v1421 = vmul.f32 %v489, %v1388
      %v1422 = vmul.f32 %v490, %v1388
      %v1423 = vmul.f32 %v491, %v1388
      %v1424 = vmul.f32 %v492, %v1388
      %v1425 = vmul.f32 %v493, %v1388
      %v1426 = vmul.f32 %v494, %v1388
      %v1427 = vmul.f32 %v495, %v1388
      %v1428 = vmul.f32 %v496, %v1388
      %v1429 = vmul.f32 %v497, %v1388
      %v1430 = vmul.f32 %v498, %v1388
      %v1431 = vmul.f32 %v499, %v1388
      %v1432 = vmul.f32 %v500, %v1388
      %v1433 = vmul.f32 %v501, %v1388
      %v1434 = vmul.f32 %v502, %v1388
      %v1435 = vmul.f32 %v503, %v1388
      %v1436 = vmul.f32 %v504, %v1388
      %v1485 = vrot.slane %v1389, 2
      %v1486 = vrot.slane %v1390, 2
      %v1487 = vsel %vm924, %v1485, %v1486
      %v1488 = vrot.slane %v1391, 2
      %v1489 = vsel %vm924, %v1486, %v1488
      %v1490 = vrot.slane %v1392, 2
      %v1491 = vrot.slane %v1393, 2
      %v1492 = vsel %vm924, %v1490, %v1491
      %v1493 = vrot.slane %v1394, 2
      %v1494 = vsel %vm924, %v1491, %v1493
      %v1495 = vrot.slane %v1395, 2
      %v1496 = vrot.slane %v1396, 2
      %v1497 = vsel %vm924, %v1495, %v1496
      %v1498 = vrot.slane %v1397, 2
      %v1499 = vsel %vm924, %v1496, %v1498
      %v1500 = vrot.slane %v1398, 2
      %v1501 = vrot.slane %v1399, 2
      %v1502 = vsel %vm924, %v1500, %v1501
      %v1503 = vrot.slane %v1400, 2
      %v1504 = vsel %vm924, %v1501, %v1503
      %v1505 = vrot.slane %v1401, 2
      %v1506 = vrot.slane %v1402, 2
      %v1507 = vsel %vm924, %v1505, %v1506
      %v1508 = vrot.slane %v1403, 2
      %v1509 = vsel %vm924, %v1506, %v1508
      %v1510 = vrot.slane %v1404, 2
      %v1511 = vrot.slane %v1405, 2
      %v1512 = vsel %vm924, %v1510, %v1511
      %v1513 = vrot.slane %v1406, 2
      %v1514 = vsel %vm924, %v1511, %v1513
      %v1515 = vrot.slane %v1407, 2
      %v1516 = vrot.slane %v1408, 2
      %v1517 = vsel %vm924, %v1515, %v1516
      %v1518 = vrot.slane %v1409, 2
      %v1519 = vsel %vm924, %v1516, %v1518
      %v1520 = vrot.slane %v1410, 2
      %v1521 = vrot.slane %v1411, 2
      %v1522 = vsel %vm924, %v1520, %v1521
      %v1523 = vrot.slane %v1412, 2
      %v1524 = vsel %vm924, %v1521, %v1523
      %v1525 = vrot.slane %v1413, 2
      %v1526 = vrot.slane %v1414, 2
      %v1527 = vsel %vm924, %v1525, %v1526
      %v1528 = vrot.slane %v1415, 2
      %v1529 = vsel %vm924, %v1526, %v1528
      %v1530 = vrot.slane %v1416, 2
      %v1531 = vrot.slane %v1417, 2
      %v1532 = vsel %vm924, %v1530, %v1531
      %v1533 = vrot.slane %v1418, 2
      %v1534 = vsel %vm924, %v1531, %v1533
      %v1535 = vrot.slane %v1419, 2
      %v1536 = vrot.slane %v1420, 2
      %v1537 = vsel %vm924, %v1535, %v1536
      %v1538 = vrot.slane %v1421, 2
      %v1539 = vsel %vm924, %v1536, %v1538
      %v1540 = vrot.slane %v1422, 2
      %v1541 = vrot.slane %v1423, 2
      %v1542 = vsel %vm924, %v1540, %v1541
      %v1543 = vrot.slane %v1424, 2
      %v1544 = vsel %vm924, %v1541, %v1543
      %v1545 = vrot.slane %v1425, 2
      %v1546 = vrot.slane %v1426, 2
      %v1547 = vsel %vm924, %v1545, %v1546
      %v1548 = vrot.slane %v1427, 2
      %v1549 = vsel %vm924, %v1546, %v1548
      %v1550 = vrot.slane %v1428, 2
      %v1551 = vrot.slane %v1429, 2
      %v1552 = vsel %vm924, %v1550, %v1551
      %v1553 = vrot.slane %v1430, 2
      %v1554 = vsel %vm924, %v1551, %v1553
      %v1555 = vrot.slane %v1431, 2
      %v1556 = vrot.slane %v1432, 2
      %v1557 = vsel %vm924, %v1555, %v1556
      %v1558 = vrot.slane %v1433, 2
      %v1559 = vsel %vm924, %v1556, %v1558
      %v1560 = vrot.slane %v1434, 2
      %v1561 = vrot.slane %v1435, 2
      %v1562 = vsel %vm924, %v1560, %v1561
      %v1563 = vrot.slane %v1436, 2
      %v1564 = vsel %vm924, %v1561, %v1563
      %v1597 = vadd.f32 %v1352, %v1487
      %v1598 = vadd.f32 %v1353, %v1489
      %v1599 = vadd.f32 %v1354, %v1492
      %v1600 = vadd.f32 %v1355, %v1494
      %v1601 = vadd.f32 %v1356, %v1497
      %v1602 = vadd.f32 %v1357, %v1499
      %v1603 = vadd.f32 %v1358, %v1502
      %v1604 = vadd.f32 %v1359, %v1504
      %v1605 = vadd.f32 %v1360, %v1507
      %v1606 = vadd.f32 %v1361, %v1509
      %v1607 = vadd.f32 %v1362, %v1512
      %v1608 = vadd.f32 %v1363, %v1514
      %v1609 = vadd.f32 %v1364, %v1517
      %v1610 = vadd.f32 %v1365, %v1519
      %v1611 = vadd.f32 %v1366, %v1522
      %v1612 = vadd.f32 %v1367, %v1524
      %v1613 = vadd.f32 %v1368, %v1527
      %v1614 = vadd.f32 %v1369, %v1529
      %v1615 = vadd.f32 %v1370, %v1532
      %v1616 = vadd.f32 %v1371, %v1534
      %v1617 = vadd.f32 %v1372, %v1537
      %v1618 = vadd.f32 %v1373, %v1539
      %v1619 = vadd.f32 %v1374, %v1542
      %v1620 = vadd.f32 %v1375, %v1544
      %v1621 = vadd.f32 %v1376, %v1547
      %v1622 = vadd.f32 %v1377, %v1549
      %v1623 = vadd.f32 %v1378, %v1552
      %v1624 = vadd.f32 %v1379, %v1554
      %v1625 = vadd.f32 %v1380, %v1557
      %v1626 = vadd.f32 %v1381, %v1559
      %v1627 = vadd.f32 %v1382, %v1562
      %v1628 = vadd.f32 %v1383, %v1564
      %s1629 = scalar_lea.vmem %s1, 8
      %v1630 = vld [vmem:[%s1629] sm:$0x1]
      %v1631 = vlaneseq
      %v1632 = vshrl.u32 %v1631, 7
      %v1633 = vsub.s32 0, %v1632
      %v1634 = vrot.slane %v1630, %v1633
      %v1635 = vmul.f32 %v460, %v1634
      %v1636 = vmul.f32 %v461, %v1634
      %v1637 = vmul.f32 %v463, %v1634
      %v1638 = vmul.f32 %v464, %v1634
      %v1639 = vmul.f32 %v466, %v1634
      %v1640 = vmul.f32 %v467, %v1634
      %v1641 = vmul.f32 %v469, %v1634
      %v1642 = vmul.f32 %v470, %v1634
      %v1643 = vmul.f32 %v472, %v1634
      %v1644 = vmul.f32 %v473, %v1634
      %v1645 = vmul.f32 %v475, %v1634
      %v1646 = vmul.f32 %v476, %v1634
      %v1647 = vmul.f32 %v478, %v1634
      %v1648 = vmul.f32 %v479, %v1634
      %v1649 = vmul.f32 %v481, %v1634
      %v1650 = vmul.f32 %v482, %v1634
      %v1651 = vmul.f32 %v484, %v1634
      %v1652 = vmul.f32 %v485, %v1634
      %v1653 = vmul.f32 %v487, %v1634
      %v1654 = vmul.f32 %v488, %v1634
      %v1655 = vmul.f32 %v490, %v1634
      %v1656 = vmul.f32 %v491, %v1634
      %v1657 = vmul.f32 %v493, %v1634
      %v1658 = vmul.f32 %v494, %v1634
      %v1659 = vmul.f32 %v496, %v1634
      %v1660 = vmul.f32 %v497, %v1634
      %v1661 = vmul.f32 %v499, %v1634
      %v1662 = vmul.f32 %v500, %v1634
      %v1663 = vmul.f32 %v502, %v1634
      %v1664 = vmul.f32 %v503, %v1634
      %v1665 = vmul.f32 %v505, %v1634
      %v1666 = vmul.f32 %v506, %v1634
      %v1667 = vadd.f32 %v1597, %v1635
      %v1668 = vadd.f32 %v1598, %v1636
      %v1669 = vadd.f32 %v1599, %v1637
      %v1670 = vadd.f32 %v1600, %v1638
      %v1671 = vadd.f32 %v1601, %v1639
      %v1672 = vadd.f32 %v1602, %v1640
      %v1673 = vadd.f32 %v1603, %v1641
      %v1674 = vadd.f32 %v1604, %v1642
      %v1675 = vadd.f32 %v1605, %v1643
      %v1676 = vadd.f32 %v1606, %v1644
      %v1677 = vadd.f32 %v1607, %v1645
      %v1678 = vadd.f32 %v1608, %v1646
      %v1679 = vadd.f32 %v1609, %v1647
      %v1680 = vadd.f32 %v1610, %v1648
      %v1681 = vadd.f32 %v1611, %v1649
      %v1682 = vadd.f32 %v1612, %v1650
      %v1683 = vadd.f32 %v1613, %v1651
      %v1684 = vadd.f32 %v1614, %v1652
      %v1685 = vadd.f32 %v1615, %v1653
      %v1686 = vadd.f32 %v1616, %v1654
      %v1687 = vadd.f32 %v1617, %v1655
      %v1688 = vadd.f32 %v1618, %v1656
      %v1689 = vadd.f32 %v1619, %v1657
      %v1690 = vadd.f32 %v1620, %v1658
      %v1691 = vadd.f32 %v1621, %v1659
      %v1692 = vadd.f32 %v1622, %v1660
      %v1693 = vadd.f32 %v1623, %v1661
      %v1694 = vadd.f32 %v1624, %v1662
      %v1695 = vadd.f32 %v1625, %v1663
      %v1696 = vadd.f32 %v1626, %v1664
      %v1697 = vadd.f32 %v1627, %v1665
      %v1698 = vadd.f32 %v1628, %v1666
      %v1699 = vld [vmem:[%s1629 + $0x1] sm:$0x1]
      %v1700 = vlaneseq
      %v1701 = vshrl.u32 %v1700, 7
      %v1702 = vsub.s32 0, %v1701
      %v1703 = vrot.slane %v1699, %v1702
      %v1704 = vmul.f32 %v460, %v1703
      %v1705 = vmul.f32 %v461, %v1703
      %v1706 = vmul.f32 %v462, %v1703
      %v1707 = vmul.f32 %v463, %v1703
      %v1708 = vmul.f32 %v464, %v1703
      %v1709 = vmul.f32 %v465, %v1703
      %v1710 = vmul.f32 %v466, %v1703
      %v1711 = vmul.f32 %v467, %v1703
      %v1712 = vmul.f32 %v468, %v1703
      %v1713 = vmul.f32 %v469, %v1703
      %v1714 = vmul.f32 %v470, %v1703
      %v1715 = vmul.f32 %v471, %v1703
      %v1716 = vmul.f32 %v472, %v1703
      %v1717 = vmul.f32 %v473, %v1703
      %v1718 = vmul.f32 %v474, %v1703
      %v1719 = vmul.f32 %v475, %v1703
      %v1720 = vmul.f32 %v476, %v1703
      %v1721 = vmul.f32 %v477, %v1703
      %v1722 = vmul.f32 %v478, %v1703
      %v1723 = vmul.f32 %v479, %v1703
      %v1724 = vmul.f32 %v480, %v1703
      %v1725 = vmul.f32 %v481, %v1703
      %v1726 = vmul.f32 %v482, %v1703
      %v1727 = vmul.f32 %v483, %v1703
      %v1728 = vmul.f32 %v484, %v1703
      %v1729 = vmul.f32 %v485, %v1703
      %v1730 = vmul.f32 %v486, %v1703
      %v1731 = vmul.f32 %v487, %v1703
      %v1732 = vmul.f32 %v488, %v1703
      %v1733 = vmul.f32 %v489, %v1703
      %v1734 = vmul.f32 %v490, %v1703
      %v1735 = vmul.f32 %v491, %v1703
      %v1736 = vmul.f32 %v492, %v1703
      %v1737 = vmul.f32 %v493, %v1703
      %v1738 = vmul.f32 %v494, %v1703
      %v1739 = vmul.f32 %v495, %v1703
      %v1740 = vmul.f32 %v496, %v1703
      %v1741 = vmul.f32 %v497, %v1703
      %v1742 = vmul.f32 %v498, %v1703
      %v1743 = vmul.f32 %v499, %v1703
      %v1744 = vmul.f32 %v500, %v1703
      %v1745 = vmul.f32 %v501, %v1703
      %v1746 = vmul.f32 %v502, %v1703
      %v1747 = vmul.f32 %v503, %v1703
      %v1748 = vmul.f32 %v504, %v1703
      %v1749 = vmul.f32 %v505, %v1703
      %v1750 = vmul.f32 %v506, %v1703
      %v1751 = vmul.f32 %v507, %v1703
      %v1800 = vrot.slane %v1704, 1
      %v1801 = vrot.slane %v1705, 1
      %v1802 = vsel %vm678, %v1800, %v1801
      %v1803 = vrot.slane %v1706, 1
      %v1804 = vsel %vm678, %v1801, %v1803
      %v1805 = vrot.slane %v1707, 1
      %v1806 = vrot.slane %v1708, 1
      %v1807 = vsel %vm678, %v1805, %v1806
      %v1808 = vrot.slane %v1709, 1
      %v1809 = vsel %vm678, %v1806, %v1808
      %v1810 = vrot.slane %v1710, 1
      %v1811 = vrot.slane %v1711, 1
      %v1812 = vsel %vm678, %v1810, %v1811
      %v1813 = vrot.slane %v1712, 1
      %v1814 = vsel %vm678, %v1811, %v1813
      %v1815 = vrot.slane %v1713, 1
      %v1816 = vrot.slane %v1714, 1
      %v1817 = vsel %vm678, %v1815, %v1816
      %v1818 = vrot.slane %v1715, 1
      %v1819 = vsel %vm678, %v1816, %v1818
      %v1820 = vrot.slane %v1716, 1
      %v1821 = vrot.slane %v1717, 1
      %v1822 = vsel %vm678, %v1820, %v1821
      %v1823 = vrot.slane %v1718, 1
      %v1824 = vsel %vm678, %v1821, %v1823
      %v1825 = vrot.slane %v1719, 1
      %v1826 = vrot.slane %v1720, 1
      %v1827 = vsel %vm678, %v1825, %v1826
      %v1828 = vrot.slane %v1721, 1
      %v1829 = vsel %vm678, %v1826, %v1828
      %v1830 = vrot.slane %v1722, 1
      %v1831 = vrot.slane %v1723, 1
      %v1832 = vsel %vm678, %v1830, %v1831
      %v1833 = vrot.slane %v1724, 1
      %v1834 = vsel %vm678, %v1831, %v1833
      %v1835 = vrot.slane %v1725, 1
      %v1836 = vrot.slane %v1726, 1
      %v1837 = vsel %vm678, %v1835, %v1836
      %v1838 = vrot.slane %v1727, 1
      %v1839 = vsel %vm678, %v1836, %v1838
      %v1840 = vrot.slane %v1728, 1
      %v1841 = vrot.slane %v1729, 1
      %v1842 = vsel %vm678, %v1840, %v1841
      %v1843 = vrot.slane %v1730, 1
      %v1844 = vsel %vm678, %v1841, %v1843
      %v1845 = vrot.slane %v1731, 1
      %v1846 = vrot.slane %v1732, 1
      %v1847 = vsel %vm678, %v1845, %v1846
      %v1848 = vrot.slane %v1733, 1
      %v1849 = vsel %vm678, %v1846, %v1848
      %v1850 = vrot.slane %v1734, 1
      %v1851 = vrot.slane %v1735, 1
      %v1852 = vsel %vm678, %v1850, %v1851
      %v1853 = vrot.slane %v1736, 1
      %v1854 = vsel %vm678, %v1851, %v1853
      %v1855 = vrot.slane %v1737, 1
      %v1856 = vrot.slane %v1738, 1
      %v1857 = vsel %vm678, %v1855, %v1856
      %v1858 = vrot.slane %v1739, 1
      %v1859 = vsel %vm678, %v1856, %v1858
      %v1860 = vrot.slane %v1740, 1
      %v1861 = vrot.slane %v1741, 1
      %v1862 = vsel %vm678, %v1860, %v1861
      %v1863 = vrot.slane %v1742, 1
      %v1864 = vsel %vm678, %v1861, %v1863
      %v1865 = vrot.slane %v1743, 1
      %v1866 = vrot.slane %v1744, 1
      %v1867 = vsel %vm678, %v1865, %v1866
      %v1868 = vrot.slane %v1745, 1
      %v1869 = vsel %vm678, %v1866, %v1868
      %v1870 = vrot.slane %v1746, 1
      %v1871 = vrot.slane %v1747, 1
      %v1872 = vsel %vm678, %v1870, %v1871
      %v1873 = vrot.slane %v1748, 1
      %v1874 = vsel %vm678, %v1871, %v1873
      %v1875 = vrot.slane %v1749, 1
      %v1876 = vrot.slane %v1750, 1
      %v1877 = vsel %vm678, %v1875, %v1876
      %v1878 = vrot.slane %v1751, 1
      %v1879 = vsel %vm678, %v1876, %v1878
      %v1912 = vadd.f32 %v1667, %v1802
      %v1913 = vadd.f32 %v1668, %v1804
      %v1914 = vadd.f32 %v1669, %v1807
      %v1915 = vadd.f32 %v1670, %v1809
      %v1916 = vadd.f32 %v1671, %v1812
      %v1917 = vadd.f32 %v1672, %v1814
      %v1918 = vadd.f32 %v1673, %v1817
      %v1919 = vadd.f32 %v1674, %v1819
      %v1920 = vadd.f32 %v1675, %v1822
      %v1921 = vadd.f32 %v1676, %v1824
      %v1922 = vadd.f32 %v1677, %v1827
      %v1923 = vadd.f32 %v1678, %v1829
      %v1924 = vadd.f32 %v1679, %v1832
      %v1925 = vadd.f32 %v1680, %v1834
      %v1926 = vadd.f32 %v1681, %v1837
      %v1927 = vadd.f32 %v1682, %v1839
      %v1928 = vadd.f32 %v1683, %v1842
      %v1929 = vadd.f32 %v1684, %v1844
      %v1930 = vadd.f32 %v1685, %v1847
      %v1931 = vadd.f32 %v1686, %v1849
      %v1932 = vadd.f32 %v1687, %v1852
      %v1933 = vadd.f32 %v1688, %v1854
      %v1934 = vadd.f32 %v1689, %v1857
      %v1935 = vadd.f32 %v1690, %v1859
      %v1936 = vadd.f32 %v1691, %v1862
      %v1937 = vadd.f32 %v1692, %v1864
      %v1938 = vadd.f32 %v1693, %v1867
      %v1939 = vadd.f32 %v1694, %v1869
      %v1940 = vadd.f32 %v1695, %v1872
      %v1941 = vadd.f32 %v1696, %v1874
      %v1942 = vadd.f32 %v1697, %v1877
      %v1943 = vadd.f32 %v1698, %v1879
      %v1944 = vld [vmem:[%s1629 + $0x2] sm:$0x1]
      %v1945 = vlaneseq
      %v1946 = vshrl.u32 %v1945, 7
      %v1947 = vsub.s32 0, %v1946
      %v1948 = vrot.slane %v1944, %v1947
      %v1949 = vmul.f32 %v460, %v1948
      %v1950 = vmul.f32 %v461, %v1948
      %v1951 = vmul.f32 %v462, %v1948
      %v1952 = vmul.f32 %v463, %v1948
      %v1953 = vmul.f32 %v464, %v1948
      %v1954 = vmul.f32 %v465, %v1948
      %v1955 = vmul.f32 %v466, %v1948
      %v1956 = vmul.f32 %v467, %v1948
      %v1957 = vmul.f32 %v468, %v1948
      %v1958 = vmul.f32 %v469, %v1948
      %v1959 = vmul.f32 %v470, %v1948
      %v1960 = vmul.f32 %v471, %v1948
      %v1961 = vmul.f32 %v472, %v1948
      %v1962 = vmul.f32 %v473, %v1948
      %v1963 = vmul.f32 %v474, %v1948
      %v1964 = vmul.f32 %v475, %v1948
      %v1965 = vmul.f32 %v476, %v1948
      %v1966 = vmul.f32 %v477, %v1948
      %v1967 = vmul.f32 %v478, %v1948
      %v1968 = vmul.f32 %v479, %v1948
      %v1969 = vmul.f32 %v480, %v1948
      %v1970 = vmul.f32 %v481, %v1948
      %v1971 = vmul.f32 %v482, %v1948
      %v1972 = vmul.f32 %v483, %v1948
      %v1973 = vmul.f32 %v484, %v1948
      %v1974 = vmul.f32 %v485, %v1948
      %v1975 = vmul.f32 %v486, %v1948
      %v1976 = vmul.f32 %v487, %v1948
      %v1977 = vmul.f32 %v488, %v1948
      %v1978 = vmul.f32 %v489, %v1948
      %v1979 = vmul.f32 %v490, %v1948
      %v1980 = vmul.f32 %v491, %v1948
      %v1981 = vmul.f32 %v492, %v1948
      %v1982 = vmul.f32 %v493, %v1948
      %v1983 = vmul.f32 %v494, %v1948
      %v1984 = vmul.f32 %v495, %v1948
      %v1985 = vmul.f32 %v496, %v1948
      %v1986 = vmul.f32 %v497, %v1948
      %v1987 = vmul.f32 %v498, %v1948
      %v1988 = vmul.f32 %v499, %v1948
      %v1989 = vmul.f32 %v500, %v1948
      %v1990 = vmul.f32 %v501, %v1948
      %v1991 = vmul.f32 %v502, %v1948
      %v1992 = vmul.f32 %v503, %v1948
      %v1993 = vmul.f32 %v504, %v1948
      %v1994 = vmul.f32 %v505, %v1948
      %v1995 = vmul.f32 %v506, %v1948
      %v1996 = vmul.f32 %v507, %v1948
      %v2045 = vrot.slane %v1949, 2
      %v2046 = vrot.slane %v1950, 2
      %v2047 = vsel %vm924, %v2045, %v2046
      %v2048 = vrot.slane %v1951, 2
      %v2049 = vsel %vm924, %v2046, %v2048
      %v2050 = vrot.slane %v1952, 2
      %v2051 = vrot.slane %v1953, 2
      %v2052 = vsel %vm924, %v2050, %v2051
      %v2053 = vrot.slane %v1954, 2
      %v2054 = vsel %vm924, %v2051, %v2053
      %v2055 = vrot.slane %v1955, 2
      %v2056 = vrot.slane %v1956, 2
      %v2057 = vsel %vm924, %v2055, %v2056
      %v2058 = vrot.slane %v1957, 2
      %v2059 = vsel %vm924, %v2056, %v2058
      %v2060 = vrot.slane %v1958, 2
      %v2061 = vrot.slane %v1959, 2
      %v2062 = vsel %vm924, %v2060, %v2061
      %v2063 = vrot.slane %v1960, 2
      %v2064 = vsel %vm924, %v2061, %v2063
      %v2065 = vrot.slane %v1961, 2
      %v2066 = vrot.slane %v1962, 2
      %v2067 = vsel %vm924, %v2065, %v2066
      %v2068 = vrot.slane %v1963, 2
      %v2069 = vsel %vm924, %v2066, %v2068
      %v2070 = vrot.slane %v1964, 2
      %v2071 = vrot.slane %v1965, 2
      %v2072 = vsel %vm924, %v2070, %v2071
      %v2073 = vrot.slane %v1966, 2
      %v2074 = vsel %vm924, %v2071, %v2073
      %v2075 = vrot.slane %v1967, 2
      %v2076 = vrot.slane %v1968, 2
      %v2077 = vsel %vm924, %v2075, %v2076
      %v2078 = vrot.slane %v1969, 2
      %v2079 = vsel %vm924, %v2076, %v2078
      %v2080 = vrot.slane %v1970, 2
      %v2081 = vrot.slane %v1971, 2
      %v2082 = vsel %vm924, %v2080, %v2081
      %v2083 = vrot.slane %v1972, 2
      %v2084 = vsel %vm924, %v2081, %v2083
      %v2085 = vrot.slane %v1973, 2
      %v2086 = vrot.slane %v1974, 2
      %v2087 = vsel %vm924, %v2085, %v2086
      %v2088 = vrot.slane %v1975, 2
      %v2089 = vsel %vm924, %v2086, %v2088
      %v2090 = vrot.slane %v1976, 2
      %v2091 = vrot.slane %v1977, 2
      %v2092 = vsel %vm924, %v2090, %v2091
      %v2093 = vrot.slane %v1978, 2
      %v2094 = vsel %vm924, %v2091, %v2093
      %v2095 = vrot.slane %v1979, 2
      %v2096 = vrot.slane %v1980, 2
      %v2097 = vsel %vm924, %v2095, %v2096
      %v2098 = vrot.slane %v1981, 2
      %v2099 = vsel %vm924, %v2096, %v2098
      %v2100 = vrot.slane %v1982, 2
      %v2101 = vrot.slane %v1983, 2
      %v2102 = vsel %vm924, %v2100, %v2101
      %v2103 = vrot.slane %v1984, 2
      %v2104 = vsel %vm924, %v2101, %v2103
      %v2105 = vrot.slane %v1985, 2
      %v2106 = vrot.slane %v1986, 2
      %v2107 = vsel %vm924, %v2105, %v2106
      %v2108 = vrot.slane %v1987, 2
      %v2109 = vsel %vm924, %v2106, %v2108
      %v2110 = vrot.slane %v1988, 2
      %v2111 = vrot.slane %v1989, 2
      %v2112 = vsel %vm924, %v2110, %v2111
      %v2113 = vrot.slane %v1990, 2
      %v2114 = vsel %vm924, %v2111, %v2113
      %v2115 = vrot.slane %v1991, 2
      %v2116 = vrot.slane %v1992, 2
      %v2117 = vsel %vm924, %v2115, %v2116
      %v2118 = vrot.slane %v1993, 2
      %v2119 = vsel %vm924, %v2116, %v2118
      %v2120 = vrot.slane %v1994, 2
      %v2121 = vrot.slane %v1995, 2
      %v2122 = vsel %vm924, %v2120, %v2121
      %v2123 = vrot.slane %v1996, 2
      %v2124 = vsel %vm924, %v2121, %v2123
      %v2157 = vadd.f32 %v1912, %v2047
      %v2158 = vadd.f32 %v1913, %v2049
      %v2159 = vadd.f32 %v1914, %v2052
      %v2160 = vadd.f32 %v1915, %v2054
      %v2161 = vadd.f32 %v1916, %v2057
      %v2162 = vadd.f32 %v1917, %v2059
      %v2163 = vadd.f32 %v1918, %v2062
      %v2164 = vadd.f32 %v1919, %v2064
      %v2165 = vadd.f32 %v1920, %v2067
      %v2166 = vadd.f32 %v1921, %v2069
      %v2167 = vadd.f32 %v1922, %v2072
      %v2168 = vadd.f32 %v1923, %v2074
      %v2169 = vadd.f32 %v1924, %v2077
      %v2170 = vadd.f32 %v1925, %v2079
      %v2171 = vadd.f32 %v1926, %v2082
      %v2172 = vadd.f32 %v1927, %v2084
      %v2173 = vadd.f32 %v1928, %v2087
      %v2174 = vadd.f32 %v1929, %v2089
      %v2175 = vadd.f32 %v1930, %v2092
      %v2176 = vadd.f32 %v1931, %v2094
      %v2177 = vadd.f32 %v1932, %v2097
      %v2178 = vadd.f32 %v1933, %v2099
      %v2179 = vadd.f32 %v1934, %v2102
      %v2180 = vadd.f32 %v1935, %v2104
      %v2181 = vadd.f32 %v1936, %v2107
      %v2182 = vadd.f32 %v1937, %v2109
      %v2183 = vadd.f32 %v1938, %v2112
      %v2184 = vadd.f32 %v1939, %v2114
      %v2185 = vadd.f32 %v1940, %v2117
      %v2186 = vadd.f32 %v1941, %v2119
      %v2187 = vadd.f32 %v1942, %v2122
      %v2188 = vadd.f32 %v1943, %v2124
      %v2189 = vld [vmem:[%s2] sm:$0x1]
      %v2191 = vlaneseq
      %v2192 = vshrl.u32 %v2191, 7
      %v2193 = vsub.s32 0, %v2192
      %v2194 = vrot.slane %v2189, %v2193
      %v2196 = vadd.f32 %v2157, %v2194
      %v2197 = vadd.f32 %v2158, %v2194
      %v2198 = vadd.f32 %v2159, %v2194
      %v2199 = vadd.f32 %v2160, %v2194
      %v2200 = vadd.f32 %v2161, %v2194
      %v2201 = vadd.f32 %v2162, %v2194
      %v2202 = vadd.f32 %v2163, %v2194
      %v2203 = vadd.f32 %v2164, %v2194
      %v2204 = vadd.f32 %v2165, %v2194
      %v2205 = vadd.f32 %v2166, %v2194
      %v2206 = vadd.f32 %v2167, %v2194
      %v2207 = vadd.f32 %v2168, %v2194
      %v2208 = vadd.f32 %v2169, %v2194
      %v2209 = vadd.f32 %v2170, %v2194
      %v2210 = vadd.f32 %v2171, %v2194
      %v2211 = vadd.f32 %v2172, %v2194
      %v2212 = vadd.f32 %v2173, %v2194
      %v2213 = vadd.f32 %v2174, %v2194
      %v2214 = vadd.f32 %v2175, %v2194
      %v2215 = vadd.f32 %v2176, %v2194
      %v2216 = vadd.f32 %v2177, %v2194
      %v2217 = vadd.f32 %v2178, %v2194
      %v2218 = vadd.f32 %v2179, %v2194
      %v2219 = vadd.f32 %v2180, %v2194
      %v2220 = vadd.f32 %v2181, %v2194
      %v2221 = vadd.f32 %v2182, %v2194
      %v2222 = vadd.f32 %v2183, %v2194
      %v2223 = vadd.f32 %v2184, %v2194
      %v2224 = vadd.f32 %v2185, %v2194
      %v2225 = vadd.f32 %v2186, %v2194
      %v2226 = vadd.f32 %v2187, %v2194
      %v2227 = vadd.f32 %v2188, %v2194
      %v2228 = vmax.f32 %v2196, 0.0
      %v2229 = vmax.f32 %v2197, 0.0
      %v2230 = vmax.f32 %v2198, 0.0
      %v2231 = vmax.f32 %v2199, 0.0
      %v2232 = vmax.f32 %v2200, 0.0
      %v2233 = vmax.f32 %v2201, 0.0
      %v2234 = vmax.f32 %v2202, 0.0
      %v2235 = vmax.f32 %v2203, 0.0
      %v2236 = vmax.f32 %v2204, 0.0
      %v2237 = vmax.f32 %v2205, 0.0
      %v2238 = vmax.f32 %v2206, 0.0
      %v2239 = vmax.f32 %v2207, 0.0
      %v2240 = vmax.f32 %v2208, 0.0
      %v2241 = vmax.f32 %v2209, 0.0
      %v2242 = vmax.f32 %v2210, 0.0
      %v2243 = vmax.f32 %v2211, 0.0
      %v2244 = vmax.f32 %v2212, 0.0
      %v2245 = vmax.f32 %v2213, 0.0
      %v2246 = vmax.f32 %v2214, 0.0
      %v2247 = vmax.f32 %v2215, 0.0
      %v2248 = vmax.f32 %v2216, 0.0
      %v2249 = vmax.f32 %v2217, 0.0
      %v2250 = vmax.f32 %v2218, 0.0
      %v2251 = vmax.f32 %v2219, 0.0
      %v2252 = vmax.f32 %v2220, 0.0
      %v2253 = vmax.f32 %v2221, 0.0
      %v2254 = vmax.f32 %v2222, 0.0
      %v2255 = vmax.f32 %v2223, 0.0
      %v2256 = vmax.f32 %v2224, 0.0
      %v2257 = vmax.f32 %v2225, 0.0
      %v2258 = vmax.f32 %v2226, 0.0
      %v2259 = vmax.f32 %v2227, 0.0
      %v2260 = vld [vmem:[%s3] sm:$0xf]
      %v2261 = vld [vmem:[%s4] sm:$0x1]
      %v2263 = vlaneseq
      %v2264 = vshrl.u32 %v2263, 7
      %v2265 = vsub.s32 0, %v2264
      %v2266 = vrot.slane %v2261, %v2265
      %v2269 = vsel %vm365, %v2228, 0
      %v2272 = vsel %vm365, %v2229, 0
      %v2275 = vsel %vm365, %v2230, 0
      %v2278 = vsel %vm365, %v2231, 0
      %v2281 = vsel %vm365, %v2232, 0
      %v2284 = vsel %vm365, %v2233, 0
      %v2287 = vsel %vm365, %v2234, 0
      %v2290 = vsel %vm365, %v2235, 0
      %v2293 = vsel %vm365, %v2236, 0
      %v2296 = vsel %vm365, %v2237, 0
      %v2299 = vsel %vm365, %v2238, 0
      %v2302 = vsel %vm365, %v2239, 0
      %v2305 = vsel %vm365, %v2240, 0
      %v2308 = vsel %vm365, %v2241, 0
      %v2311 = vsel %vm365, %v2242, 0
      %v2314 = vsel %vm365, %v2243, 0
      %v2317 = vsel %vm365, %v2244, 0
      %v2320 = vsel %vm365, %v2245, 0
      %v2323 = vsel %vm365, %v2246, 0
      %v2326 = vsel %vm365, %v2247, 0
      %v2329 = vsel %vm365, %v2248, 0
      %v2332 = vsel %vm365, %v2249, 0
      %v2335 = vsel %vm365, %v2250, 0
      %v2338 = vsel %vm365, %v2251, 0
      %v2341 = vsel %vm365, %v2252, 0
      %v2344 = vsel %vm365, %v2253, 0
      %v2347 = vsel %vm365, %v2254, 0
      %v2350 = vsel %vm365, %v2255, 0
      %v2353 = vsel %vm365, %v2256, 0
      %v2356 = vsel %vm365, %v2257, 0
      %v2359 = vsel %vm365, %v2258, 0
      %v2362 = vsel %vm365, %v2259, 0
      %vm2364 = vcmask 1043456
      %v2366 = vsel %vm2364, %v2260, 0
      %2368 = vmatprep.subr.mxu0 0.0
      %2369 = vmatpush1.msra.mxu0 0.0
      %2370 = vmatprep.subr.mxu0 0.0
      %2371 = vmatpush1.msra.mxu0 0.0
      %2372 = vmatprep.subr.mxu0 0.0
      %2373 = vmatpush1.msra.mxu0 0.0
      %2374 = vmatprep.subr.mxu0 0.0
      %2375 = vmatpush1.msra.mxu0 0.0
      %2376 = vmatprep.subr.mxu0 0.0
      %2377 = vmatpush1.msra.mxu0 0.0
      %2378 = vmatprep.subr.mxu0 0.0
      %2379 = vmatpush1.msra.mxu0 0.0
      %2380 = vmatprep.subr.mxu0 0.0
      %2381 = vmatpush1.msra.mxu0 0.0
      %2382 = vmatprep.subr.mxu0 0.0
      %2383 = vmatpush1.msra.mxu0 0.0
      %2384 = vmatprep.subr.mxu0 0.0
      %2385 = vmatpush1.msra.mxu0 0.0
      %2386 = vmatprep.subr.mxu0 0.0
      %2387 = vmatpush1.msra.mxu0 0.0
      %2388 = vmatprep.subr.mxu0 0.0
      %2389 = vmatpush1.msra.mxu0 0.0
      %2390 = vmatprep.subr.mxu0 0.0
      %2391 = vmatpush1.msra.mxu0 0.0
      %2392 = vmatprep.subr.mxu0 0.0
      %2393 = vmatpush1.msra.mxu0 0.0
      %2394 = vmatprep.subr.mxu0 0.0
      %2395 = vmatpush1.msra.mxu0 0.0
      %2396 = vmatprep.subr.mxu0 0.0
      %2397 = vmatpush1.msra.mxu0 0.0
      %2398 = vmatprep.subr.mxu0 0.0
      %2399 = vmatpush1.msra.mxu0 %v2366
      %2400 = vmatprep.subr.mxu0 0.0
      %2401 = vmatpush2.msra.mxu0 0.0
      %2402 = vmatprep.subr.mxu0 0.0
      %2403 = vmatpush2.msra.mxu0 0.0
      %2404 = vmatprep.subr.mxu0 0.0
      %2405 = vmatpush2.msra.mxu0 0.0
      %2406 = vmatprep.subr.mxu0 0.0
      %2407 = vmatpush2.msra.mxu0 0.0
      %2408 = vmatprep.subr.mxu0 0.0
      %2409 = vmatpush2.msra.mxu0 0.0
      %2410 = vmatprep.subr.mxu0 0.0
      %2411 = vmatpush2.msra.mxu0 0.0
      %2412 = vmatprep.subr.mxu0 0.0
      %2413 = vmatpush2.msra.mxu0 0.0
      %2414 = vmatprep.subr.mxu0 0.0
      %2415 = vmatpush2.msra.mxu0 0.0
      %2416 = vmatprep.subr.mxu0 0.0
      %2417 = vmatpush2.msra.mxu0 0.0
      %2418 = vmatprep.subr.mxu0 0.0
      %2419 = vmatpush2.msra.mxu0 0.0
      %2420 = vmatprep.subr.mxu0 0.0
      %2421 = vmatpush2.msra.mxu0 0.0
      %2422 = vmatprep.subr.mxu0 0.0
      %2423 = vmatpush2.msra.mxu0 0.0
      %2424 = vmatprep.subr.mxu0 0.0
      %2425 = vmatpush2.msra.mxu0 0.0
      %2426 = vmatprep.subr.mxu0 0.0
      %2427 = vmatpush2.msra.mxu0 0.0
      %2428 = vmatprep.subr.mxu0 0.0
      %2429 = vmatpush2.msra.mxu0 0.0
      %2430 = vmatprep.subr.mxu0 0.0
      %2431 = vmatpush2.msra.mxu0 0.0
      %2432 = vmatprep.mubr.f32.mxu0 0.0
      %2433 = vmatmul.mubr.f32.gmra.mxu0 %v2269
      %v2434 = vpop.f32.mrf.mxu0
      %v2435 = vadd.f32 %v2266, %v2434
      %v2436 = vpop.f32.mrf.mxu0
      %2437 = vmatprep.mubr.f32.mxu0 0.0
      %2438 = vmatmul.mubr.f32.gmra.mxu0 %v2272
      %v2439 = vpop.f32.mrf.mxu0
      %v2440 = vadd.f32 %v2266, %v2439
      %v2441 = vpop.f32.mrf.mxu0
      %2442 = vmatprep.mubr.f32.mxu0 0.0
      %2443 = vmatmul.mubr.f32.gmra.mxu0 %v2275
      %v2444 = vpop.f32.mrf.mxu0
      %v2445 = vadd.f32 %v2266, %v2444
      %v2446 = vpop.f32.mrf.mxu0
      %2447 = vmatprep.mubr.f32.mxu0 0.0
      %2448 = vmatmul.mubr.f32.gmra.mxu0 %v2278
      %v2449 = vpop.f32.mrf.mxu0
      %v2450 = vadd.f32 %v2266, %v2449
      %v2451 = vpop.f32.mrf.mxu0
      %2452 = vmatprep.mubr.f32.mxu0 0.0
      %2453 = vmatmul.mubr.f32.gmra.mxu0 %v2281
      %v2454 = vpop.f32.mrf.mxu0
      %v2455 = vadd.f32 %v2266, %v2454
      %v2456 = vpop.f32.mrf.mxu0
      %2457 = vmatprep.mubr.f32.mxu0 0.0
      %2458 = vmatmul.mubr.f32.gmra.mxu0 %v2284
      %v2459 = vpop.f32.mrf.mxu0
      %v2460 = vadd.f32 %v2266, %v2459
      %v2461 = vpop.f32.mrf.mxu0
      %2462 = vmatprep.mubr.f32.mxu0 0.0
      %2463 = vmatmul.mubr.f32.gmra.mxu0 %v2287
      %v2464 = vpop.f32.mrf.mxu0
      %v2465 = vadd.f32 %v2266, %v2464
      %v2466 = vpop.f32.mrf.mxu0
      %2467 = vmatprep.mubr.f32.mxu0 0.0
      %2468 = vmatmul.mubr.f32.gmra.mxu0 %v2290
      %v2469 = vpop.f32.mrf.mxu0
      %v2470 = vadd.f32 %v2266, %v2469
      %v2471 = vpop.f32.mrf.mxu0
      %2472 = vmatprep.mubr.f32.mxu0 0.0
      %2473 = vmatmul.mubr.f32.gmra.mxu0 %v2293
      %v2474 = vpop.f32.mrf.mxu0
      %v2475 = vadd.f32 %v2266, %v2474
      %v2476 = vpop.f32.mrf.mxu0
      %2477 = vmatprep.mubr.f32.mxu0 0.0
      %2478 = vmatmul.mubr.f32.gmra.mxu0 %v2296
      %v2479 = vpop.f32.mrf.mxu0
      %v2480 = vadd.f32 %v2266, %v2479
      %v2481 = vpop.f32.mrf.mxu0
      %2482 = vmatprep.mubr.f32.mxu0 0.0
      %2483 = vmatmul.mubr.f32.gmra.mxu0 %v2299
      %v2484 = vpop.f32.mrf.mxu0
      %v2485 = vadd.f32 %v2266, %v2484
      %v2486 = vpop.f32.mrf.mxu0
      %2487 = vmatprep.mubr.f32.mxu0 0.0
      %2488 = vmatmul.mubr.f32.gmra.mxu0 %v2302
      %v2489 = vpop.f32.mrf.mxu0
      %v2490 = vadd.f32 %v2266, %v2489
      %v2491 = vpop.f32.mrf.mxu0
      %2492 = vmatprep.mubr.f32.mxu0 0.0
      %2493 = vmatmul.mubr.f32.gmra.mxu0 %v2305
      %v2494 = vpop.f32.mrf.mxu0
      %v2495 = vadd.f32 %v2266, %v2494
      %v2496 = vpop.f32.mrf.mxu0
      %2497 = vmatprep.mubr.f32.mxu0 0.0
      %2498 = vmatmul.mubr.f32.gmra.mxu0 %v2308
      %v2499 = vpop.f32.mrf.mxu0
      %v2500 = vadd.f32 %v2266, %v2499
      %v2501 = vpop.f32.mrf.mxu0
      %2502 = vmatprep.mubr.f32.mxu0 0.0
      %2503 = vmatmul.mubr.f32.gmra.mxu0 %v2311
      %v2504 = vpop.f32.mrf.mxu0
      %v2505 = vadd.f32 %v2266, %v2504
      %v2506 = vpop.f32.mrf.mxu0
      %2507 = vmatprep.mubr.f32.mxu0 0.0
      %2508 = vmatmul.mubr.f32.gmra.mxu0 %v2314
      %v2509 = vpop.f32.mrf.mxu0
      %v2510 = vadd.f32 %v2266, %v2509
      %v2511 = vpop.f32.mrf.mxu0
      %2512 = vmatprep.mubr.f32.mxu0 0.0
      %2513 = vmatmul.mubr.f32.gmra.mxu0 %v2317
      %v2514 = vpop.f32.mrf.mxu0
      %v2515 = vadd.f32 %v2266, %v2514
      %v2516 = vpop.f32.mrf.mxu0
      %2517 = vmatprep.mubr.f32.mxu0 0.0
      %2518 = vmatmul.mubr.f32.gmra.mxu0 %v2320
      %v2519 = vpop.f32.mrf.mxu0
      %v2520 = vadd.f32 %v2266, %v2519
      %v2521 = vpop.f32.mrf.mxu0
      %2522 = vmatprep.mubr.f32.mxu0 0.0
      %2523 = vmatmul.mubr.f32.gmra.mxu0 %v2323
      %v2524 = vpop.f32.mrf.mxu0
      %v2525 = vadd.f32 %v2266, %v2524
      %v2526 = vpop.f32.mrf.mxu0
      %2527 = vmatprep.mubr.f32.mxu0 0.0
      %2528 = vmatmul.mubr.f32.gmra.mxu0 %v2326
      %v2529 = vpop.f32.mrf.mxu0
      %v2530 = vadd.f32 %v2266, %v2529
      %v2531 = vpop.f32.mrf.mxu0
      %2532 = vmatprep.mubr.f32.mxu0 0.0
      %2533 = vmatmul.mubr.f32.gmra.mxu0 %v2329
      %v2534 = vpop.f32.mrf.mxu0
      %v2535 = vadd.f32 %v2266, %v2534
      %v2536 = vpop.f32.mrf.mxu0
      %2537 = vmatprep.mubr.f32.mxu0 0.0
      %2538 = vmatmul.mubr.f32.gmra.mxu0 %v2332
      %v2539 = vpop.f32.mrf.mxu0
      %v2540 = vadd.f32 %v2266, %v2539
      %v2541 = vpop.f32.mrf.mxu0
      %2542 = vmatprep.mubr.f32.mxu0 0.0
      %2543 = vmatmul.mubr.f32.gmra.mxu0 %v2335
      %v2544 = vpop.f32.mrf.mxu0
      %v2545 = vadd.f32 %v2266, %v2544
      %v2546 = vpop.f32.mrf.mxu0
      %2547 = vmatprep.mubr.f32.mxu0 0.0
      %2548 = vmatmul.mubr.f32.gmra.mxu0 %v2338
      %v2549 = vpop.f32.mrf.mxu0
      %v2550 = vadd.f32 %v2266, %v2549
      %v2551 = vpop.f32.mrf.mxu0
      %2552 = vmatprep.mubr.f32.mxu0 0.0
      %2553 = vmatmul.mubr.f32.gmra.mxu0 %v2341
      %v2554 = vpop.f32.mrf.mxu0
      %v2555 = vadd.f32 %v2266, %v2554
      %v2556 = vpop.f32.mrf.mxu0
      %2557 = vmatprep.mubr.f32.mxu0 0.0
      %2558 = vmatmul.mubr.f32.gmra.mxu0 %v2344
      %v2559 = vpop.f32.mrf.mxu0
      %v2560 = vadd.f32 %v2266, %v2559
      %v2561 = vpop.f32.mrf.mxu0
      %2562 = vmatprep.mubr.f32.mxu0 0.0
      %2563 = vmatmul.mubr.f32.gmra.mxu0 %v2347
      %v2564 = vpop.f32.mrf.mxu0
      %v2565 = vadd.f32 %v2266, %v2564
      %v2566 = vpop.f32.mrf.mxu0
      %2567 = vmatprep.mubr.f32.mxu0 0.0
      %2568 = vmatmul.mubr.f32.gmra.mxu0 %v2350
      %v2569 = vpop.f32.mrf.mxu0
      %v2570 = vadd.f32 %v2266, %v2569
      %v2571 = vpop.f32.mrf.mxu0
      %2572 = vmatprep.mubr.f32.mxu0 0.0
      %2573 = vmatmul.mubr.f32.gmra.mxu0 %v2353
      %v2574 = vpop.f32.mrf.mxu0
      %v2575 = vadd.f32 %v2266, %v2574
      %v2576 = vpop.f32.mrf.mxu0
      %2577 = vmatprep.mubr.f32.mxu0 0.0
      %2578 = vmatmul.mubr.f32.gmra.mxu0 %v2356
      %v2579 = vpop.f32.mrf.mxu0
      %v2580 = vadd.f32 %v2266, %v2579
      %v2581 = vpop.f32.mrf.mxu0
      %2582 = vmatprep.mubr.f32.mxu0 0.0
      %2583 = vmatmul.mubr.f32.gmra.mxu0 %v2359
      %v2584 = vpop.f32.mrf.mxu0
      %v2585 = vadd.f32 %v2266, %v2584
      %v2586 = vpop.f32.mrf.mxu0
      %2587 = vmatprep.mubr.f32.mxu0 0.0
      %2588 = vmatmul.mubr.f32.gmra.mxu0 %v2362
      %v2589 = vpop.f32.mrf.mxu0
      %v2590 = vadd.f32 %v2266, %v2589
      %v2591 = vpop.f32.mrf.mxu0
      %2592 = vdwg.mxu0
      %v2593 = vmax.f32 %v2435, 0.0
      %v2594 = vmax.f32 %v2440, 0.0
      %v2595 = vmax.f32 %v2445, 0.0
      %v2596 = vmax.f32 %v2450, 0.0
      %v2597 = vmax.f32 %v2455, 0.0
      %v2598 = vmax.f32 %v2460, 0.0
      %v2599 = vmax.f32 %v2465, 0.0
      %v2600 = vmax.f32 %v2470, 0.0
      %v2601 = vmax.f32 %v2475, 0.0
      %v2602 = vmax.f32 %v2480, 0.0
      %v2603 = vmax.f32 %v2485, 0.0
      %v2604 = vmax.f32 %v2490, 0.0
      %v2605 = vmax.f32 %v2495, 0.0
      %v2606 = vmax.f32 %v2500, 0.0
      %v2607 = vmax.f32 %v2505, 0.0
      %v2608 = vmax.f32 %v2510, 0.0
      %v2609 = vmax.f32 %v2515, 0.0
      %v2610 = vmax.f32 %v2520, 0.0
      %v2611 = vmax.f32 %v2525, 0.0
      %v2612 = vmax.f32 %v2530, 0.0
      %v2613 = vmax.f32 %v2535, 0.0
      %v2614 = vmax.f32 %v2540, 0.0
      %v2615 = vmax.f32 %v2545, 0.0
      %v2616 = vmax.f32 %v2550, 0.0
      %v2617 = vmax.f32 %v2555, 0.0
      %v2618 = vmax.f32 %v2560, 0.0
      %v2619 = vmax.f32 %v2565, 0.0
      %v2620 = vmax.f32 %v2570, 0.0
      %v2621 = vmax.f32 %v2575, 0.0
      %v2622 = vmax.f32 %v2580, 0.0
      %v2623 = vmax.f32 %v2585, 0.0
      %v2624 = vmax.f32 %v2590, 0.0
      %vm2625 = vcmask 64512
      %2626 = vst.msk [vmem:[#allocation3] sm:$0xff] %vm2625, 0.0
      %2627 = vst.msk [vmem:[#allocation3 + $0x8] sm:$0xff] %vm2625, 0.0
      %vm2628 = vcmask 58368
      %2629 = vst.msk [vmem:[#allocation3 + $0x10] sm:$0x3] %vm2628, 0.0
      %2630 = vst.msk [vmem:[#allocation3 + $0x18] sm:$0xff] %vm2625, 0.0
      %2631 = vst.msk [vmem:[#allocation3 + $0x20] sm:$0xff] %vm2625, 0.0
      %2632 = vst.msk [vmem:[#allocation3 + $0x28] sm:$0x3] %vm2628, 0.0
      %2633 = vst.msk [vmem:[#allocation3 + $0x30] sm:$0xff] %vm2625, 0.0
      %2634 = vst.msk [vmem:[#allocation3 + $0x38] sm:$0xff] %vm2625, 0.0
      %2635 = vst.msk [vmem:[#allocation3 + $0x40] sm:$0x3] %vm2628, 0.0
      %2636 = vst.msk [vmem:[#allocation3 + $0x48] sm:$0xff] %vm2625, 0.0
      %2637 = vst.msk [vmem:[#allocation3 + $0x50] sm:$0xff] %vm2625, 0.0
      %2638 = vst.msk [vmem:[#allocation3 + $0x58] sm:$0x3] %vm2628, 0.0
      %2639 = vst.msk [vmem:[#allocation3 + $0x60] sm:$0xff] %vm2625, 0.0
      %2640 = vst.msk [vmem:[#allocation3 + $0x68] sm:$0xff] %vm2625, 0.0
      %2641 = vst.msk [vmem:[#allocation3 + $0x70] sm:$0x3] %vm2628, 0.0
      %2642 = vst.msk [vmem:[#allocation3 + $0x78] sm:$0xff] %vm2625, 0.0
      %2643 = vst.msk [vmem:[#allocation3 + $0x80] sm:$0xff] %vm2625, 0.0
      %2644 = vst.msk [vmem:[#allocation3 + $0x88] sm:$0x3] %vm2628, 0.0
      %2645 = vst.msk [vmem:[#allocation3 + $0x90] sm:$0xff] %vm2625, 0.0
      %2646 = vst.msk [vmem:[#allocation3 + $0x98] sm:$0xff] %vm2625, 0.0
      %2647 = vst.msk [vmem:[#allocation3 + $0xa0] sm:$0x3] %vm2628, 0.0
      %2648 = vst.msk [vmem:[#allocation3 + $0xa8] sm:$0xff] %vm2625, 0.0
      %2649 = vst.msk [vmem:[#allocation3 + $0xb0] sm:$0xff] %vm2625, 0.0
      %2650 = vst.msk [vmem:[#allocation3 + $0xb8] sm:$0x3] %vm2628, 0.0
      %2651 = vst.msk [vmem:[#allocation3 + $0xc0] sm:$0xff] %vm2625, 0.0
      %2652 = vst.msk [vmem:[#allocation3 + $0xc8] sm:$0xff] %vm2625, 0.0
      %2653 = vst.msk [vmem:[#allocation3 + $0xd0] sm:$0x3] %vm2628, 0.0
      %2654 = vst.msk [vmem:[#allocation3 + $0xd8] sm:$0xff] %vm2625, 0.0
      %2655 = vst.msk [vmem:[#allocation3 + $0xe0] sm:$0xff] %vm2625, 0.0
      %2656 = vst.msk [vmem:[#allocation3 + $0xe8] sm:$0x3] %vm2628, 0.0
      %2657 = vst.msk [vmem:[#allocation3 + $0xf0] sm:$0xff] %vm2625, 0.0
      %2658 = vst.msk [vmem:[#allocation3 + $0xf8] sm:$0xff] %vm2625, 0.0
      %2659 = vst.msk [vmem:[#allocation3 + $0x100] sm:$0x3] %vm2628, 0.0
      %2660 = vst.msk [vmem:[#allocation3 + $0x108] sm:$0xff] %vm2625, 0.0
      %2661 = vst.msk [vmem:[#allocation3 + $0x110] sm:$0xff] %vm2625, 0.0
      %2662 = vst.msk [vmem:[#allocation3 + $0x118] sm:$0x3] %vm2628, 0.0
      %2663 = vst.msk [vmem:[#allocation3 + $0x120] sm:$0xff] %vm2625, 0.0
      %2664 = vst.msk [vmem:[#allocation3 + $0x128] sm:$0xff] %vm2625, 0.0
      %2665 = vst.msk [vmem:[#allocation3 + $0x130] sm:$0x3] %vm2628, 0.0
      %2666 = vst.msk [vmem:[#allocation3 + $0x138] sm:$0xff] %vm2625, 0.0
      %2667 = vst.msk [vmem:[#allocation3 + $0x140] sm:$0xff] %vm2625, 0.0
      %2668 = vst.msk [vmem:[#allocation3 + $0x148] sm:$0x3] %vm2628, 0.0
      %2669 = vst.msk [vmem:[#allocation3 + $0x150] sm:$0xff] %vm2625, 0.0
      %2670 = vst.msk [vmem:[#allocation3 + $0x158] sm:$0xff] %vm2625, 0.0
      %2671 = vst.msk [vmem:[#allocation3 + $0x160] sm:$0x3] %vm2628, 0.0
      %2672 = vst.msk [vmem:[#allocation3 + $0x168] sm:$0xff] %vm2625, 0.0
      %2673 = vst.msk [vmem:[#allocation3 + $0x170] sm:$0xff] %vm2625, 0.0
      %2674 = vst.msk [vmem:[#allocation3 + $0x178] sm:$0x3] %vm2628, 0.0
      %2675 = vst.msk [vmem:[#allocation3 + $0x180] sm:$0xff] %vm2625, 0.0
      %2676 = vst.msk [vmem:[#allocation3 + $0x188] sm:$0xff] %vm2625, 0.0
      %2677 = vst.msk [vmem:[#allocation3 + $0x190] sm:$0x3] %vm2628, 0.0
      %2678 = vst.msk [vmem:[#allocation3 + $0x198] sm:$0xff] %vm2625, 0.0
      %2679 = vst.msk [vmem:[#allocation3 + $0x1a0] sm:$0xff] %vm2625, 0.0
      %2680 = vst.msk [vmem:[#allocation3 + $0x1a8] sm:$0x3] %vm2628, 0.0
      %s2681 = scalar_lea.vmem [#allocation3], 24
      %2682 = vst.msk [vmem:[%s2681 + $0x1] sm:$0xff] %vm2625, %v2593
      %2683 = vst.msk [vmem:[%s2681 + $0x9] sm:$0xff] %vm2625, %v2594
      %2684 = vst.msk [vmem:[%s2681 + $0x19] sm:$0xff] %vm2625, %v2595
      %2685 = vst.msk [vmem:[%s2681 + $0x21] sm:$0xff] %vm2625, %v2596
      %2686 = vst.msk [vmem:[%s2681 + $0x31] sm:$0xff] %vm2625, %v2597
      %2687 = vst.msk [vmem:[%s2681 + $0x39] sm:$0xff] %vm2625, %v2598
      %2688 = vst.msk [vmem:[%s2681 + $0x49] sm:$0xff] %vm2625, %v2599
      %2689 = vst.msk [vmem:[%s2681 + $0x51] sm:$0xff] %vm2625, %v2600
      %2690 = vst.msk [vmem:[%s2681 + $0x61] sm:$0xff] %vm2625, %v2601
      %2691 = vst.msk [vmem:[%s2681 + $0x69] sm:$0xff] %vm2625, %v2602
      %2692 = vst.msk [vmem:[%s2681 + $0x79] sm:$0xff] %vm2625, %v2603
      %2693 = vst.msk [vmem:[%s2681 + $0x81] sm:$0xff] %vm2625, %v2604
      %2694 = vst.msk [vmem:[%s2681 + $0x91] sm:$0xff] %vm2625, %v2605
      %2695 = vst.msk [vmem:[%s2681 + $0x99] sm:$0xff] %vm2625, %v2606
      %2696 = vst.msk [vmem:[%s2681 + $0xa9] sm:$0xff] %vm2625, %v2607
      %2697 = vst.msk [vmem:[%s2681 + $0xb1] sm:$0xff] %vm2625, %v2608
      %2698 = vst.msk [vmem:[%s2681 + $0xc1] sm:$0xff] %vm2625, %v2609
      %2699 = vst.msk [vmem:[%s2681 + $0xc9] sm:$0xff] %vm2625, %v2610
      %2700 = vst.msk [vmem:[%s2681 + $0xd9] sm:$0xff] %vm2625, %v2611
      %2701 = vst.msk [vmem:[%s2681 + $0xe1] sm:$0xff] %vm2625, %v2612
      %2702 = vst.msk [vmem:[%s2681 + $0xf1] sm:$0xff] %vm2625, %v2613
      %2703 = vst.msk [vmem:[%s2681 + $0xf9] sm:$0xff] %vm2625, %v2614
      %2704 = vst.msk [vmem:[%s2681 + $0x109] sm:$0xff] %vm2625, %v2615
      %2705 = vst.msk [vmem:[%s2681 + $0x111] sm:$0xff] %vm2625, %v2616
      %2706 = vst.msk [vmem:[%s2681 + $0x121] sm:$0xff] %vm2625, %v2617
      %2707 = vst.msk [vmem:[%s2681 + $0x129] sm:$0xff] %vm2625, %v2618
      %2708 = vst.msk [vmem:[%s2681 + $0x139] sm:$0xff] %vm2625, %v2619
      %2709 = vst.msk [vmem:[%s2681 + $0x141] sm:$0xff] %vm2625, %v2620
      %2710 = vst.msk [vmem:[%s2681 + $0x151] sm:$0xff] %vm2625, %v2621
      %2711 = vst.msk [vmem:[%s2681 + $0x159] sm:$0xff] %vm2625, %v2622
      %2712 = vst.msk [vmem:[%s2681 + $0x169] sm:$0xff] %vm2625, %v2623
      %2713 = vst.msk [vmem:[%s2681 + $0x171] sm:$0xff] %vm2625, %v2624
      %v2714 = vld [vmem:[#allocation3] sm:$0xff]
      %v2715 = vld [vmem:[#allocation3 + $0x8] sm:$0xff]
      %v2716 = vld [vmem:[#allocation3 + $0x10] sm:$0x3]
      %v2717 = vld [vmem:[#allocation3 + $0x18] sm:$0xff]
      %v2718 = vld [vmem:[#allocation3 + $0x20] sm:$0xff]
      %v2719 = vld [vmem:[#allocation3 + $0x28] sm:$0x3]
      %v2720 = vld [vmem:[#allocation3 + $0x30] sm:$0xff]
      %v2721 = vld [vmem:[#allocation3 + $0x38] sm:$0xff]
      %v2722 = vld [vmem:[#allocation3 + $0x40] sm:$0x3]
      %v2723 = vld [vmem:[#allocation3 + $0x48] sm:$0xff]
      %v2724 = vld [vmem:[#allocation3 + $0x50] sm:$0xff]
      %v2725 = vld [vmem:[#allocation3 + $0x58] sm:$0x3]
      %v2726 = vld [vmem:[#allocation3 + $0x60] sm:$0xff]
      %v2727 = vld [vmem:[#allocation3 + $0x68] sm:$0xff]
      %v2728 = vld [vmem:[#allocation3 + $0x70] sm:$0x3]
      %v2729 = vld [vmem:[#allocation3 + $0x78] sm:$0xff]
      %v2730 = vld [vmem:[#allocation3 + $0x80] sm:$0xff]
      %v2731 = vld [vmem:[#allocation3 + $0x88] sm:$0x3]
      %v2732 = vld [vmem:[#allocation3 + $0x90] sm:$0xff]
      %v2733 = vld [vmem:[#allocation3 + $0x98] sm:$0xff]
      %v2734 = vld [vmem:[#allocation3 + $0xa0] sm:$0x3]
      %v2735 = vld [vmem:[#allocation3 + $0xa8] sm:$0xff]
      %v2736 = vld [vmem:[#allocation3 + $0xb0] sm:$0xff]
      %v2737 = vld [vmem:[#allocation3 + $0xb8] sm:$0x3]
      %v2738 = vld [vmem:[#allocation3 + $0xc0] sm:$0xff]
      %v2739 = vld [vmem:[#allocation3 + $0xc8] sm:$0xff]
      %v2740 = vld [vmem:[#allocation3 + $0xd0] sm:$0x3]
      %v2741 = vld [vmem:[#allocation3 + $0xd8] sm:$0xff]
      %v2742 = vld [vmem:[#allocation3 + $0xe0] sm:$0xff]
      %v2743 = vld [vmem:[#allocation3 + $0xe8] sm:$0x3]
      %v2744 = vld [vmem:[#allocation3 + $0xf0] sm:$0xff]
      %v2745 = vld [vmem:[#allocation3 + $0xf8] sm:$0xff]
      %v2746 = vld [vmem:[#allocation3 + $0x100] sm:$0x3]
      %v2747 = vld [vmem:[#allocation3 + $0x108] sm:$0xff]
      %v2748 = vld [vmem:[#allocation3 + $0x110] sm:$0xff]
      %v2749 = vld [vmem:[#allocation3 + $0x118] sm:$0x3]
      %v2750 = vld [vmem:[#allocation3 + $0x120] sm:$0xff]
      %v2751 = vld [vmem:[#allocation3 + $0x128] sm:$0xff]
      %v2752 = vld [vmem:[#allocation3 + $0x130] sm:$0x3]
      %v2753 = vld [vmem:[#allocation3 + $0x138] sm:$0xff]
      %v2754 = vld [vmem:[#allocation3 + $0x140] sm:$0xff]
      %v2755 = vld [vmem:[#allocation3 + $0x148] sm:$0x3]
      %v2756 = vld [vmem:[#allocation3 + $0x150] sm:$0xff]
      %v2757 = vld [vmem:[#allocation3 + $0x158] sm:$0xff]
      %v2758 = vld [vmem:[#allocation3 + $0x160] sm:$0x3]
      %v2759 = vld [vmem:[#allocation3 + $0x168] sm:$0xff]
      %v2760 = vld [vmem:[#allocation3 + $0x170] sm:$0xff]
      %v2761 = vld [vmem:[#allocation3 + $0x178] sm:$0x3]
      %v2762 = vld [vmem:[#allocation3 + $0x180] sm:$0xff]
      %v2763 = vld [vmem:[#allocation3 + $0x188] sm:$0xff]
      %v2764 = vld [vmem:[#allocation3 + $0x190] sm:$0x3]
      %v2765 = vld [vmem:[#allocation3 + $0x198] sm:$0xff]
      %v2766 = vld [vmem:[#allocation3 + $0x1a0] sm:$0xff]
      %v2767 = vld [vmem:[#allocation3 + $0x1a8] sm:$0x3]
      %v2768 = vld [vmem:[%s5] sm:$0x1]
      %v2769 = vlaneseq
      %v2770 = vshrl.u32 %v2769, 7
      %v2771 = vsub.s32 0, %v2770
      %v2772 = vrot.slane %v2768, %v2771
      %v2773 = vmul.f32 %v2714, %v2772
      %v2774 = vmul.f32 %v2715, %v2772
      %v2775 = vmul.f32 %v2717, %v2772
      %v2776 = vmul.f32 %v2718, %v2772
      %v2777 = vmul.f32 %v2720, %v2772
      %v2778 = vmul.f32 %v2721, %v2772
      %v2779 = vmul.f32 %v2723, %v2772
      %v2780 = vmul.f32 %v2724, %v2772
      %v2781 = vmul.f32 %v2726, %v2772
      %v2782 = vmul.f32 %v2727, %v2772
      %v2783 = vmul.f32 %v2729, %v2772
      %v2784 = vmul.f32 %v2730, %v2772
      %v2785 = vmul.f32 %v2732, %v2772
      %v2786 = vmul.f32 %v2733, %v2772
      %v2787 = vmul.f32 %v2735, %v2772
      %v2788 = vmul.f32 %v2736, %v2772
      %v2789 = vmul.f32 %v2738, %v2772
      %v2790 = vmul.f32 %v2739, %v2772
      %v2791 = vmul.f32 %v2741, %v2772
      %v2792 = vmul.f32 %v2742, %v2772
      %v2793 = vmul.f32 %v2744, %v2772
      %v2794 = vmul.f32 %v2745, %v2772
      %v2795 = vmul.f32 %v2747, %v2772
      %v2796 = vmul.f32 %v2748, %v2772
      %v2797 = vmul.f32 %v2750, %v2772
      %v2798 = vmul.f32 %v2751, %v2772
      %v2799 = vmul.f32 %v2753, %v2772
      %v2800 = vmul.f32 %v2754, %v2772
      %v2801 = vmul.f32 %v2756, %v2772
      %v2802 = vmul.f32 %v2757, %v2772
      %v2803 = vmul.f32 %v2759, %v2772
      %v2804 = vmul.f32 %v2760, %v2772
      %v2805 = vadd.f32 %v2773, 0.0
      %v2806 = vadd.f32 %v2774, 0.0
      %v2807 = vadd.f32 %v2775, 0.0
      %v2808 = vadd.f32 %v2776, 0.0
      %v2809 = vadd.f32 %v2777, 0.0
      %v2810 = vadd.f32 %v2778, 0.0
      %v2811 = vadd.f32 %v2779, 0.0
      %v2812 = vadd.f32 %v2780, 0.0
      %v2813 = vadd.f32 %v2781, 0.0
      %v2814 = vadd.f32 %v2782, 0.0
      %v2815 = vadd.f32 %v2783, 0.0
      %v2816 = vadd.f32 %v2784, 0.0
      %v2817 = vadd.f32 %v2785, 0.0
      %v2818 = vadd.f32 %v2786, 0.0
      %v2819 = vadd.f32 %v2787, 0.0
      %v2820 = vadd.f32 %v2788, 0.0
      %v2821 = vadd.f32 %v2789, 0.0
      %v2822 = vadd.f32 %v2790, 0.0
      %v2823 = vadd.f32 %v2791, 0.0
      %v2824 = vadd.f32 %v2792, 0.0
      %v2825 = vadd.f32 %v2793, 0.0
      %v2826 = vadd.f32 %v2794, 0.0
      %v2827 = vadd.f32 %v2795, 0.0
      %v2828 = vadd.f32 %v2796, 0.0
      %v2829 = vadd.f32 %v2797, 0.0
      %v2830 = vadd.f32 %v2798, 0.0
      %v2831 = vadd.f32 %v2799, 0.0
      %v2832 = vadd.f32 %v2800, 0.0
      %v2833 = vadd.f32 %v2801, 0.0
      %v2834 = vadd.f32 %v2802, 0.0
      %v2835 = vadd.f32 %v2803, 0.0
      %v2836 = vadd.f32 %v2804, 0.0
      %v2837 = vld [vmem:[%s5 + $0x1] sm:$0x1]
      %v2838 = vlaneseq
      %v2839 = vshrl.u32 %v2838, 7
      %v2840 = vsub.s32 0, %v2839
      %v2841 = vrot.slane %v2837, %v2840
      %v2842 = vmul.f32 %v2714, %v2841
      %v2843 = vmul.f32 %v2715, %v2841
      %v2844 = vmul.f32 %v2716, %v2841
      %v2845 = vmul.f32 %v2717, %v2841
      %v2846 = vmul.f32 %v2718, %v2841
      %v2847 = vmul.f32 %v2719, %v2841
      %v2848 = vmul.f32 %v2720, %v2841
      %v2849 = vmul.f32 %v2721, %v2841
      %v2850 = vmul.f32 %v2722, %v2841
      %v2851 = vmul.f32 %v2723, %v2841
      %v2852 = vmul.f32 %v2724, %v2841
      %v2853 = vmul.f32 %v2725, %v2841
      %v2854 = vmul.f32 %v2726, %v2841
      %v2855 = vmul.f32 %v2727, %v2841
      %v2856 = vmul.f32 %v2728, %v2841
      %v2857 = vmul.f32 %v2729, %v2841
      %v2858 = vmul.f32 %v2730, %v2841
      %v2859 = vmul.f32 %v2731, %v2841
      %v2860 = vmul.f32 %v2732, %v2841
      %v2861 = vmul.f32 %v2733, %v2841
      %v2862 = vmul.f32 %v2734, %v2841
      %v2863 = vmul.f32 %v2735, %v2841
      %v2864 = vmul.f32 %v2736, %v2841
      %v2865 = vmul.f32 %v2737, %v2841
      %v2866 = vmul.f32 %v2738, %v2841
      %v2867 = vmul.f32 %v2739, %v2841
      %v2868 = vmul.f32 %v2740, %v2841
      %v2869 = vmul.f32 %v2741, %v2841
      %v2870 = vmul.f32 %v2742, %v2841
      %v2871 = vmul.f32 %v2743, %v2841
      %v2872 = vmul.f32 %v2744, %v2841
      %v2873 = vmul.f32 %v2745, %v2841
      %v2874 = vmul.f32 %v2746, %v2841
      %v2875 = vmul.f32 %v2747, %v2841
      %v2876 = vmul.f32 %v2748, %v2841
      %v2877 = vmul.f32 %v2749, %v2841
      %v2878 = vmul.f32 %v2750, %v2841
      %v2879 = vmul.f32 %v2751, %v2841
      %v2880 = vmul.f32 %v2752, %v2841
      %v2881 = vmul.f32 %v2753, %v2841
      %v2882 = vmul.f32 %v2754, %v2841
      %v2883 = vmul.f32 %v2755, %v2841
      %v2884 = vmul.f32 %v2756, %v2841
      %v2885 = vmul.f32 %v2757, %v2841
      %v2886 = vmul.f32 %v2758, %v2841
      %v2887 = vmul.f32 %v2759, %v2841
      %v2888 = vmul.f32 %v2760, %v2841
      %v2889 = vmul.f32 %v2761, %v2841
      %v2938 = vrot.slane %v2842, 1
      %v2939 = vrot.slane %v2843, 1
      %v2940 = vsel %vm678, %v2938, %v2939
      %v2941 = vrot.slane %v2844, 1
      %v2942 = vsel %vm678, %v2939, %v2941
      %v2943 = vrot.slane %v2845, 1
      %v2944 = vrot.slane %v2846, 1
      %v2945 = vsel %vm678, %v2943, %v2944
      %v2946 = vrot.slane %v2847, 1
      %v2947 = vsel %vm678, %v2944, %v2946
      %v2948 = vrot.slane %v2848, 1
      %v2949 = vrot.slane %v2849, 1
      %v2950 = vsel %vm678, %v2948, %v2949
      %v2951 = vrot.slane %v2850, 1
      %v2952 = vsel %vm678, %v2949, %v2951
      %v2953 = vrot.slane %v2851, 1
      %v2954 = vrot.slane %v2852, 1
      %v2955 = vsel %vm678, %v2953, %v2954
      %v2956 = vrot.slane %v2853, 1
      %v2957 = vsel %vm678, %v2954, %v2956
      %v2958 = vrot.slane %v2854, 1
      %v2959 = vrot.slane %v2855, 1
      %v2960 = vsel %vm678, %v2958, %v2959
      %v2961 = vrot.slane %v2856, 1
      %v2962 = vsel %vm678, %v2959, %v2961
      %v2963 = vrot.slane %v2857, 1
      %v2964 = vrot.slane %v2858, 1
      %v2965 = vsel %vm678, %v2963, %v2964
      %v2966 = vrot.slane %v2859, 1
      %v2967 = vsel %vm678, %v2964, %v2966
      %v2968 = vrot.slane %v2860, 1
      %v2969 = vrot.slane %v2861, 1
      %v2970 = vsel %vm678, %v2968, %v2969
      %v2971 = vrot.slane %v2862, 1
      %v2972 = vsel %vm678, %v2969, %v2971
      %v2973 = vrot.slane %v2863, 1
      %v2974 = vrot.slane %v2864, 1
      %v2975 = vsel %vm678, %v2973, %v2974
      %v2976 = vrot.slane %v2865, 1
      %v2977 = vsel %vm678, %v2974, %v2976
      %v2978 = vrot.slane %v2866, 1
      %v2979 = vrot.slane %v2867, 1
      %v2980 = vsel %vm678, %v2978, %v2979
      %v2981 = vrot.slane %v2868, 1
      %v2982 = vsel %vm678, %v2979, %v2981
      %v2983 = vrot.slane %v2869, 1
      %v2984 = vrot.slane %v2870, 1
      %v2985 = vsel %vm678, %v2983, %v2984
      %v2986 = vrot.slane %v2871, 1
      %v2987 = vsel %vm678, %v2984, %v2986
      %v2988 = vrot.slane %v2872, 1
      %v2989 = vrot.slane %v2873, 1
      %v2990 = vsel %vm678, %v2988, %v2989
      %v2991 = vrot.slane %v2874, 1
      %v2992 = vsel %vm678, %v2989, %v2991
      %v2993 = vrot.slane %v2875, 1
      %v2994 = vrot.slane %v2876, 1
      %v2995 = vsel %vm678, %v2993, %v2994
      %v2996 = vrot.slane %v2877, 1
      %v2997 = vsel %vm678, %v2994, %v2996
      %v2998 = vrot.slane %v2878, 1
      %v2999 = vrot.slane %v2879, 1
      %v3000 = vsel %vm678, %v2998, %v2999
      %v3001 = vrot.slane %v2880, 1
      %v3002 = vsel %vm678, %v2999, %v3001
      %v3003 = vrot.slane %v2881, 1
      %v3004 = vrot.slane %v2882, 1
      %v3005 = vsel %vm678, %v3003, %v3004
      %v3006 = vrot.slane %v2883, 1
      %v3007 = vsel %vm678, %v3004, %v3006
      %v3008 = vrot.slane %v2884, 1
      %v3009 = vrot.slane %v2885, 1
      %v3010 = vsel %vm678, %v3008, %v3009
      %v3011 = vrot.slane %v2886, 1
      %v3012 = vsel %vm678, %v3009, %v3011
      %v3013 = vrot.slane %v2887, 1
      %v3014 = vrot.slane %v2888, 1
      %v3015 = vsel %vm678, %v3013, %v3014
      %v3016 = vrot.slane %v2889, 1
      %v3017 = vsel %vm678, %v3014, %v3016
      %v3050 = vadd.f32 %v2805, %v2940
      %v3051 = vadd.f32 %v2806, %v2942
      %v3052 = vadd.f32 %v2807, %v2945
      %v3053 = vadd.f32 %v2808, %v2947
      %v3054 = vadd.f32 %v2809, %v2950
      %v3055 = vadd.f32 %v2810, %v2952
      %v3056 = vadd.f32 %v2811, %v2955
      %v3057 = vadd.f32 %v2812, %v2957
      %v3058 = vadd.f32 %v2813, %v2960
      %v3059 = vadd.f32 %v2814, %v2962
      %v3060 = vadd.f32 %v2815, %v2965
      %v3061 = vadd.f32 %v2816, %v2967
      %v3062 = vadd.f32 %v2817, %v2970
      %v3063 = vadd.f32 %v2818, %v2972
      %v3064 = vadd.f32 %v2819, %v2975
      %v3065 = vadd.f32 %v2820, %v2977
      %v3066 = vadd.f32 %v2821, %v2980
      %v3067 = vadd.f32 %v2822, %v2982
      %v3068 = vadd.f32 %v2823, %v2985
      %v3069 = vadd.f32 %v2824, %v2987
      %v3070 = vadd.f32 %v2825, %v2990
      %v3071 = vadd.f32 %v2826, %v2992
      %v3072 = vadd.f32 %v2827, %v2995
      %v3073 = vadd.f32 %v2828, %v2997
      %v3074 = vadd.f32 %v2829, %v3000
      %v3075 = vadd.f32 %v2830, %v3002
      %v3076 = vadd.f32 %v2831, %v3005
      %v3077 = vadd.f32 %v2832, %v3007
      %v3078 = vadd.f32 %v2833, %v3010
      %v3079 = vadd.f32 %v2834, %v3012
      %v3080 = vadd.f32 %v2835, %v3015
      %v3081 = vadd.f32 %v2836, %v3017
      %v3082 = vld [vmem:[%s5 + $0x2] sm:$0x1]
      %v3083 = vlaneseq
      %v3084 = vshrl.u32 %v3083, 7
      %v3085 = vsub.s32 0, %v3084
      %v3086 = vrot.slane %v3082, %v3085
      %v3087 = vmul.f32 %v2714, %v3086
      %v3088 = vmul.f32 %v2715, %v3086
      %v3089 = vmul.f32 %v2716, %v3086
      %v3090 = vmul.f32 %v2717, %v3086
      %v3091 = vmul.f32 %v2718, %v3086
      %v3092 = vmul.f32 %v2719, %v3086
      %v3093 = vmul.f32 %v2720, %v3086
      %v3094 = vmul.f32 %v2721, %v3086
      %v3095 = vmul.f32 %v2722, %v3086
      %v3096 = vmul.f32 %v2723, %v3086
      %v3097 = vmul.f32 %v2724, %v3086
      %v3098 = vmul.f32 %v2725, %v3086
      %v3099 = vmul.f32 %v2726, %v3086
      %v3100 = vmul.f32 %v2727, %v3086
      %v3101 = vmul.f32 %v2728, %v3086
      %v3102 = vmul.f32 %v2729, %v3086
      %v3103 = vmul.f32 %v2730, %v3086
      %v3104 = vmul.f32 %v2731, %v3086
      %v3105 = vmul.f32 %v2732, %v3086
      %v3106 = vmul.f32 %v2733, %v3086
      %v3107 = vmul.f32 %v2734, %v3086
      %v3108 = vmul.f32 %v2735, %v3086
      %v3109 = vmul.f32 %v2736, %v3086
      %v3110 = vmul.f32 %v2737, %v3086
      %v3111 = vmul.f32 %v2738, %v3086
      %v3112 = vmul.f32 %v2739, %v3086
      %v3113 = vmul.f32 %v2740, %v3086
      %v3114 = vmul.f32 %v2741, %v3086
      %v3115 = vmul.f32 %v2742, %v3086
      %v3116 = vmul.f32 %v2743, %v3086
      %v3117 = vmul.f32 %v2744, %v3086
      %v3118 = vmul.f32 %v2745, %v3086
      %v3119 = vmul.f32 %v2746, %v3086
      %v3120 = vmul.f32 %v2747, %v3086
      %v3121 = vmul.f32 %v2748, %v3086
      %v3122 = vmul.f32 %v2749, %v3086
      %v3123 = vmul.f32 %v2750, %v3086
      %v3124 = vmul.f32 %v2751, %v3086
      %v3125 = vmul.f32 %v2752, %v3086
      %v3126 = vmul.f32 %v2753, %v3086
      %v3127 = vmul.f32 %v2754, %v3086
      %v3128 = vmul.f32 %v2755, %v3086
      %v3129 = vmul.f32 %v2756, %v3086
      %v3130 = vmul.f32 %v2757, %v3086
      %v3131 = vmul.f32 %v2758, %v3086
      %v3132 = vmul.f32 %v2759, %v3086
      %v3133 = vmul.f32 %v2760, %v3086
      %v3134 = vmul.f32 %v2761, %v3086
      %v3183 = vrot.slane %v3087, 2
      %v3184 = vrot.slane %v3088, 2
      %v3185 = vsel %vm924, %v3183, %v3184
      %v3186 = vrot.slane %v3089, 2
      %v3187 = vsel %vm924, %v3184, %v3186
      %v3188 = vrot.slane %v3090, 2
      %v3189 = vrot.slane %v3091, 2
      %v3190 = vsel %vm924, %v3188, %v3189
      %v3191 = vrot.slane %v3092, 2
      %v3192 = vsel %vm924, %v3189, %v3191
      %v3193 = vrot.slane %v3093, 2
      %v3194 = vrot.slane %v3094, 2
      %v3195 = vsel %vm924, %v3193, %v3194
      %v3196 = vrot.slane %v3095, 2
      %v3197 = vsel %vm924, %v3194, %v3196
      %v3198 = vrot.slane %v3096, 2
      %v3199 = vrot.slane %v3097, 2
      %v3200 = vsel %vm924, %v3198, %v3199
      %v3201 = vrot.slane %v3098, 2
      %v3202 = vsel %vm924, %v3199, %v3201
      %v3203 = vrot.slane %v3099, 2
      %v3204 = vrot.slane %v3100, 2
      %v3205 = vsel %vm924, %v3203, %v3204
      %v3206 = vrot.slane %v3101, 2
      %v3207 = vsel %vm924, %v3204, %v3206
      %v3208 = vrot.slane %v3102, 2
      %v3209 = vrot.slane %v3103, 2
      %v3210 = vsel %vm924, %v3208, %v3209
      %v3211 = vrot.slane %v3104, 2
      %v3212 = vsel %vm924, %v3209, %v3211
      %v3213 = vrot.slane %v3105, 2
      %v3214 = vrot.slane %v3106, 2
      %v3215 = vsel %vm924, %v3213, %v3214
      %v3216 = vrot.slane %v3107, 2
      %v3217 = vsel %vm924, %v3214, %v3216
      %v3218 = vrot.slane %v3108, 2
      %v3219 = vrot.slane %v3109, 2
      %v3220 = vsel %vm924, %v3218, %v3219
      %v3221 = vrot.slane %v3110, 2
      %v3222 = vsel %vm924, %v3219, %v3221
      %v3223 = vrot.slane %v3111, 2
      %v3224 = vrot.slane %v3112, 2
      %v3225 = vsel %vm924, %v3223, %v3224
      %v3226 = vrot.slane %v3113, 2
      %v3227 = vsel %vm924, %v3224, %v3226
      %v3228 = vrot.slane %v3114, 2
      %v3229 = vrot.slane %v3115, 2
      %v3230 = vsel %vm924, %v3228, %v3229
      %v3231 = vrot.slane %v3116, 2
      %v3232 = vsel %vm924, %v3229, %v3231
      %v3233 = vrot.slane %v3117, 2
      %v3234 = vrot.slane %v3118, 2
      %v3235 = vsel %vm924, %v3233, %v3234
      %v3236 = vrot.slane %v3119, 2
      %v3237 = vsel %vm924, %v3234, %v3236
      %v3238 = vrot.slane %v3120, 2
      %v3239 = vrot.slane %v3121, 2
      %v3240 = vsel %vm924, %v3238, %v3239
      %v3241 = vrot.slane %v3122, 2
      %v3242 = vsel %vm924, %v3239, %v3241
      %v3243 = vrot.slane %v3123, 2
      %v3244 = vrot.slane %v3124, 2
      %v3245 = vsel %vm924, %v3243, %v3244
      %v3246 = vrot.slane %v3125, 2
      %v3247 = vsel %vm924, %v3244, %v3246
      %v3248 = vrot.slane %v3126, 2
      %v3249 = vrot.slane %v3127, 2
      %v3250 = vsel %vm924, %v3248, %v3249
      %v3251 = vrot.slane %v3128, 2
      %v3252 = vsel %vm924, %v3249, %v3251
      %v3253 = vrot.slane %v3129, 2
      %v3254 = vrot.slane %v3130, 2
      %v3255 = vsel %vm924, %v3253, %v3254
      %v3256 = vrot.slane %v3131, 2
      %v3257 = vsel %vm924, %v3254, %v3256
      %v3258 = vrot.slane %v3132, 2
      %v3259 = vrot.slane %v3133, 2
      %v3260 = vsel %vm924, %v3258, %v3259
      %v3261 = vrot.slane %v3134, 2
      %v3262 = vsel %vm924, %v3259, %v3261
      %v3295 = vadd.f32 %v3050, %v3185
      %v3296 = vadd.f32 %v3051, %v3187
      %v3297 = vadd.f32 %v3052, %v3190
      %v3298 = vadd.f32 %v3053, %v3192
      %v3299 = vadd.f32 %v3054, %v3195
      %v3300 = vadd.f32 %v3055, %v3197
      %v3301 = vadd.f32 %v3056, %v3200
      %v3302 = vadd.f32 %v3057, %v3202
      %v3303 = vadd.f32 %v3058, %v3205
      %v3304 = vadd.f32 %v3059, %v3207
      %v3305 = vadd.f32 %v3060, %v3210
      %v3306 = vadd.f32 %v3061, %v3212
      %v3307 = vadd.f32 %v3062, %v3215
      %v3308 = vadd.f32 %v3063, %v3217
      %v3309 = vadd.f32 %v3064, %v3220
      %v3310 = vadd.f32 %v3065, %v3222
      %v3311 = vadd.f32 %v3066, %v3225
      %v3312 = vadd.f32 %v3067, %v3227
      %v3313 = vadd.f32 %v3068, %v3230
      %v3314 = vadd.f32 %v3069, %v3232
      %v3315 = vadd.f32 %v3070, %v3235
      %v3316 = vadd.f32 %v3071, %v3237
      %v3317 = vadd.f32 %v3072, %v3240
      %v3318 = vadd.f32 %v3073, %v3242
      %v3319 = vadd.f32 %v3074, %v3245
      %v3320 = vadd.f32 %v3075, %v3247
      %v3321 = vadd.f32 %v3076, %v3250
      %v3322 = vadd.f32 %v3077, %v3252
      %v3323 = vadd.f32 %v3078, %v3255
      %v3324 = vadd.f32 %v3079, %v3257
      %v3325 = vadd.f32 %v3080, %v3260
      %v3326 = vadd.f32 %v3081, %v3262
      %s3327 = scalar_lea.vmem %s5, 4
      %v3328 = vld [vmem:[%s3327] sm:$0x1]
      %v3329 = vlaneseq
      %v3330 = vshrl.u32 %v3329, 7
      %v3331 = vsub.s32 0, %v3330
      %v3332 = vrot.slane %v3328, %v3331
      %v3333 = vmul.f32 %v2717, %v3332
      %v3334 = vmul.f32 %v2718, %v3332
      %v3335 = vmul.f32 %v2720, %v3332
      %v3336 = vmul.f32 %v2721, %v3332
      %v3337 = vmul.f32 %v2723, %v3332
      %v3338 = vmul.f32 %v2724, %v3332
      %v3339 = vmul.f32 %v2726, %v3332
      %v3340 = vmul.f32 %v2727, %v3332
      %v3341 = vmul.f32 %v2729, %v3332
      %v3342 = vmul.f32 %v2730, %v3332
      %v3343 = vmul.f32 %v2732, %v3332
      %v3344 = vmul.f32 %v2733, %v3332
      %v3345 = vmul.f32 %v2735, %v3332
      %v3346 = vmul.f32 %v2736, %v3332
      %v3347 = vmul.f32 %v2738, %v3332
      %v3348 = vmul.f32 %v2739, %v3332
      %v3349 = vmul.f32 %v2741, %v3332
      %v3350 = vmul.f32 %v2742, %v3332
      %v3351 = vmul.f32 %v2744, %v3332
      %v3352 = vmul.f32 %v2745, %v3332
      %v3353 = vmul.f32 %v2747, %v3332
      %v3354 = vmul.f32 %v2748, %v3332
      %v3355 = vmul.f32 %v2750, %v3332
      %v3356 = vmul.f32 %v2751, %v3332
      %v3357 = vmul.f32 %v2753, %v3332
      %v3358 = vmul.f32 %v2754, %v3332
      %v3359 = vmul.f32 %v2756, %v3332
      %v3360 = vmul.f32 %v2757, %v3332
      %v3361 = vmul.f32 %v2759, %v3332
      %v3362 = vmul.f32 %v2760, %v3332
      %v3363 = vmul.f32 %v2762, %v3332
      %v3364 = vmul.f32 %v2763, %v3332
      %v3365 = vadd.f32 %v3295, %v3333
      %v3366 = vadd.f32 %v3296, %v3334
      %v3367 = vadd.f32 %v3297, %v3335
      %v3368 = vadd.f32 %v3298, %v3336
      %v3369 = vadd.f32 %v3299, %v3337
      %v3370 = vadd.f32 %v3300, %v3338
      %v3371 = vadd.f32 %v3301, %v3339
      %v3372 = vadd.f32 %v3302, %v3340
      %v3373 = vadd.f32 %v3303, %v3341
      %v3374 = vadd.f32 %v3304, %v3342
      %v3375 = vadd.f32 %v3305, %v3343
      %v3376 = vadd.f32 %v3306, %v3344
      %v3377 = vadd.f32 %v3307, %v3345
      %v3378 = vadd.f32 %v3308, %v3346
      %v3379 = vadd.f32 %v3309, %v3347
      %v3380 = vadd.f32 %v3310, %v3348
      %v3381 = vadd.f32 %v3311, %v3349
      %v3382 = vadd.f32 %v3312, %v3350
      %v3383 = vadd.f32 %v3313, %v3351
      %v3384 = vadd.f32 %v3314, %v3352
      %v3385 = vadd.f32 %v3315, %v3353
      %v3386 = vadd.f32 %v3316, %v3354
      %v3387 = vadd.f32 %v3317, %v3355
      %v3388 = vadd.f32 %v3318, %v3356
      %v3389 = vadd.f32 %v3319, %v3357
      %v3390 = vadd.f32 %v3320, %v3358
      %v3391 = vadd.f32 %v3321, %v3359
      %v3392 = vadd.f32 %v3322, %v3360
      %v3393 = vadd.f32 %v3323, %v3361
      %v3394 = vadd.f32 %v3324, %v3362
      %v3395 = vadd.f32 %v3325, %v3363
      %v3396 = vadd.f32 %v3326, %v3364
      %v3397 = vld [vmem:[%s3327 + $0x1] sm:$0x1]
      %v3398 = vlaneseq
      %v3399 = vshrl.u32 %v3398, 7
      %v3400 = vsub.s32 0, %v3399
      %v3401 = vrot.slane %v3397, %v3400
      %v3402 = vmul.f32 %v2717, %v3401
      %v3403 = vmul.f32 %v2718, %v3401
      %v3404 = vmul.f32 %v2719, %v3401
      %v3405 = vmul.f32 %v2720, %v3401
      %v3406 = vmul.f32 %v2721, %v3401
      %v3407 = vmul.f32 %v2722, %v3401
      %v3408 = vmul.f32 %v2723, %v3401
      %v3409 = vmul.f32 %v2724, %v3401
      %v3410 = vmul.f32 %v2725, %v3401
      %v3411 = vmul.f32 %v2726, %v3401
      %v3412 = vmul.f32 %v2727, %v3401
      %v3413 = vmul.f32 %v2728, %v3401
      %v3414 = vmul.f32 %v2729, %v3401
      %v3415 = vmul.f32 %v2730, %v3401
      %v3416 = vmul.f32 %v2731, %v3401
      %v3417 = vmul.f32 %v2732, %v3401
      %v3418 = vmul.f32 %v2733, %v3401
      %v3419 = vmul.f32 %v2734, %v3401
      %v3420 = vmul.f32 %v2735, %v3401
      %v3421 = vmul.f32 %v2736, %v3401
      %v3422 = vmul.f32 %v2737, %v3401
      %v3423 = vmul.f32 %v2738, %v3401
      %v3424 = vmul.f32 %v2739, %v3401
      %v3425 = vmul.f32 %v2740, %v3401
      %v3426 = vmul.f32 %v2741, %v3401
      %v3427 = vmul.f32 %v2742, %v3401
      %v3428 = vmul.f32 %v2743, %v3401
      %v3429 = vmul.f32 %v2744, %v3401
      %v3430 = vmul.f32 %v2745, %v3401
      %v3431 = vmul.f32 %v2746, %v3401
      %v3432 = vmul.f32 %v2747, %v3401
      %v3433 = vmul.f32 %v2748, %v3401
      %v3434 = vmul.f32 %v2749, %v3401
      %v3435 = vmul.f32 %v2750, %v3401
      %v3436 = vmul.f32 %v2751, %v3401
      %v3437 = vmul.f32 %v2752, %v3401
      %v3438 = vmul.f32 %v2753, %v3401
      %v3439 = vmul.f32 %v2754, %v3401
      %v3440 = vmul.f32 %v2755, %v3401
      %v3441 = vmul.f32 %v2756, %v3401
      %v3442 = vmul.f32 %v2757, %v3401
      %v3443 = vmul.f32 %v2758, %v3401
      %v3444 = vmul.f32 %v2759, %v3401
      %v3445 = vmul.f32 %v2760, %v3401
      %v3446 = vmul.f32 %v2761, %v3401
      %v3447 = vmul.f32 %v2762, %v3401
      %v3448 = vmul.f32 %v2763, %v3401
      %v3449 = vmul.f32 %v2764, %v3401
      %v3498 = vrot.slane %v3402, 1
      %v3499 = vrot.slane %v3403, 1
      %v3500 = vsel %vm678, %v3498, %v3499
      %v3501 = vrot.slane %v3404, 1
      %v3502 = vsel %vm678, %v3499, %v3501
      %v3503 = vrot.slane %v3405, 1
      %v3504 = vrot.slane %v3406, 1
      %v3505 = vsel %vm678, %v3503, %v3504
      %v3506 = vrot.slane %v3407, 1
      %v3507 = vsel %vm678, %v3504, %v3506
      %v3508 = vrot.slane %v3408, 1
      %v3509 = vrot.slane %v3409, 1
      %v3510 = vsel %vm678, %v3508, %v3509
      %v3511 = vrot.slane %v3410, 1
      %v3512 = vsel %vm678, %v3509, %v3511
      %v3513 = vrot.slane %v3411, 1
      %v3514 = vrot.slane %v3412, 1
      %v3515 = vsel %vm678, %v3513, %v3514
      %v3516 = vrot.slane %v3413, 1
      %v3517 = vsel %vm678, %v3514, %v3516
      %v3518 = vrot.slane %v3414, 1
      %v3519 = vrot.slane %v3415, 1
      %v3520 = vsel %vm678, %v3518, %v3519
      %v3521 = vrot.slane %v3416, 1
      %v3522 = vsel %vm678, %v3519, %v3521
      %v3523 = vrot.slane %v3417, 1
      %v3524 = vrot.slane %v3418, 1
      %v3525 = vsel %vm678, %v3523, %v3524
      %v3526 = vrot.slane %v3419, 1
      %v3527 = vsel %vm678, %v3524, %v3526
      %v3528 = vrot.slane %v3420, 1
      %v3529 = vrot.slane %v3421, 1
      %v3530 = vsel %vm678, %v3528, %v3529
      %v3531 = vrot.slane %v3422, 1
      %v3532 = vsel %vm678, %v3529, %v3531
      %v3533 = vrot.slane %v3423, 1
      %v3534 = vrot.slane %v3424, 1
      %v3535 = vsel %vm678, %v3533, %v3534
      %v3536 = vrot.slane %v3425, 1
      %v3537 = vsel %vm678, %v3534, %v3536
      %v3538 = vrot.slane %v3426, 1
      %v3539 = vrot.slane %v3427, 1
      %v3540 = vsel %vm678, %v3538, %v3539
      %v3541 = vrot.slane %v3428, 1
      %v3542 = vsel %vm678, %v3539, %v3541
      %v3543 = vrot.slane %v3429, 1
      %v3544 = vrot.slane %v3430, 1
      %v3545 = vsel %vm678, %v3543, %v3544
      %v3546 = vrot.slane %v3431, 1
      %v3547 = vsel %vm678, %v3544, %v3546
      %v3548 = vrot.slane %v3432, 1
      %v3549 = vrot.slane %v3433, 1
      %v3550 = vsel %vm678, %v3548, %v3549
      %v3551 = vrot.slane %v3434, 1
      %v3552 = vsel %vm678, %v3549, %v3551
      %v3553 = vrot.slane %v3435, 1
      %v3554 = vrot.slane %v3436, 1
      %v3555 = vsel %vm678, %v3553, %v3554
      %v3556 = vrot.slane %v3437, 1
      %v3557 = vsel %vm678, %v3554, %v3556
      %v3558 = vrot.slane %v3438, 1
      %v3559 = vrot.slane %v3439, 1
      %v3560 = vsel %vm678, %v3558, %v3559
      %v3561 = vrot.slane %v3440, 1
      %v3562 = vsel %vm678, %v3559, %v3561
      %v3563 = vrot.slane %v3441, 1
      %v3564 = vrot.slane %v3442, 1
      %v3565 = vsel %vm678, %v3563, %v3564
      %v3566 = vrot.slane %v3443, 1
      %v3567 = vsel %vm678, %v3564, %v3566
      %v3568 = vrot.slane %v3444, 1
      %v3569 = vrot.slane %v3445, 1
      %v3570 = vsel %vm678, %v3568, %v3569
      %v3571 = vrot.slane %v3446, 1
      %v3572 = vsel %vm678, %v3569, %v3571
      %v3573 = vrot.slane %v3447, 1
      %v3574 = vrot.slane %v3448, 1
      %v3575 = vsel %vm678, %v3573, %v3574
      %v3576 = vrot.slane %v3449, 1
      %v3577 = vsel %vm678, %v3574, %v3576
      %v3610 = vadd.f32 %v3365, %v3500
      %v3611 = vadd.f32 %v3366, %v3502
      %v3612 = vadd.f32 %v3367, %v3505
      %v3613 = vadd.f32 %v3368, %v3507
      %v3614 = vadd.f32 %v3369, %v3510
      %v3615 = vadd.f32 %v3370, %v3512
      %v3616 = vadd.f32 %v3371, %v3515
      %v3617 = vadd.f32 %v3372, %v3517
      %v3618 = vadd.f32 %v3373, %v3520
      %v3619 = vadd.f32 %v3374, %v3522
      %v3620 = vadd.f32 %v3375, %v3525
      %v3621 = vadd.f32 %v3376, %v3527
      %v3622 = vadd.f32 %v3377, %v3530
      %v3623 = vadd.f32 %v3378, %v3532
      %v3624 = vadd.f32 %v3379, %v3535
      %v3625 = vadd.f32 %v3380, %v3537
      %v3626 = vadd.f32 %v3381, %v3540
      %v3627 = vadd.f32 %v3382, %v3542
      %v3628 = vadd.f32 %v3383, %v3545
      %v3629 = vadd.f32 %v3384, %v3547
      %v3630 = vadd.f32 %v3385, %v3550
      %v3631 = vadd.f32 %v3386, %v3552
      %v3632 = vadd.f32 %v3387, %v3555
      %v3633 = vadd.f32 %v3388, %v3557
      %v3634 = vadd.f32 %v3389, %v3560
      %v3635 = vadd.f32 %v3390, %v3562
      %v3636 = vadd.f32 %v3391, %v3565
      %v3637 = vadd.f32 %v3392, %v3567
      %v3638 = vadd.f32 %v3393, %v3570
      %v3639 = vadd.f32 %v3394, %v3572
      %v3640 = vadd.f32 %v3395, %v3575
      %v3641 = vadd.f32 %v3396, %v3577
      %v3642 = vld [vmem:[%s3327 + $0x2] sm:$0x1]
      %v3643 = vlaneseq
      %v3644 = vshrl.u32 %v3643, 7
      %v3645 = vsub.s32 0, %v3644
      %v3646 = vrot.slane %v3642, %v3645
      %v3647 = vmul.f32 %v2717, %v3646
      %v3648 = vmul.f32 %v2718, %v3646
      %v3649 = vmul.f32 %v2719, %v3646
      %v3650 = vmul.f32 %v2720, %v3646
      %v3651 = vmul.f32 %v2721, %v3646
      %v3652 = vmul.f32 %v2722, %v3646
      %v3653 = vmul.f32 %v2723, %v3646
      %v3654 = vmul.f32 %v2724, %v3646
      %v3655 = vmul.f32 %v2725, %v3646
      %v3656 = vmul.f32 %v2726, %v3646
      %v3657 = vmul.f32 %v2727, %v3646
      %v3658 = vmul.f32 %v2728, %v3646
      %v3659 = vmul.f32 %v2729, %v3646
      %v3660 = vmul.f32 %v2730, %v3646
      %v3661 = vmul.f32 %v2731, %v3646
      %v3662 = vmul.f32 %v2732, %v3646
      %v3663 = vmul.f32 %v2733, %v3646
      %v3664 = vmul.f32 %v2734, %v3646
      %v3665 = vmul.f32 %v2735, %v3646
      %v3666 = vmul.f32 %v2736, %v3646
      %v3667 = vmul.f32 %v2737, %v3646
      %v3668 = vmul.f32 %v2738, %v3646
      %v3669 = vmul.f32 %v2739, %v3646
      %v3670 = vmul.f32 %v2740, %v3646
      %v3671 = vmul.f32 %v2741, %v3646
      %v3672 = vmul.f32 %v2742, %v3646
      %v3673 = vmul.f32 %v2743, %v3646
      %v3674 = vmul.f32 %v2744, %v3646
      %v3675 = vmul.f32 %v2745, %v3646
      %v3676 = vmul.f32 %v2746, %v3646
      %v3677 = vmul.f32 %v2747, %v3646
      %v3678 = vmul.f32 %v2748, %v3646
      %v3679 = vmul.f32 %v2749, %v3646
      %v3680 = vmul.f32 %v2750, %v3646
      %v3681 = vmul.f32 %v2751, %v3646
      %v3682 = vmul.f32 %v2752, %v3646
      %v3683 = vmul.f32 %v2753, %v3646
      %v3684 = vmul.f32 %v2754, %v3646
      %v3685 = vmul.f32 %v2755, %v3646
      %v3686 = vmul.f32 %v2756, %v3646
      %v3687 = vmul.f32 %v2757, %v3646
      %v3688 = vmul.f32 %v2758, %v3646
      %v3689 = vmul.f32 %v2759, %v3646
      %v3690 = vmul.f32 %v2760, %v3646
      %v3691 = vmul.f32 %v2761, %v3646
      %v3692 = vmul.f32 %v2762, %v3646
      %v3693 = vmul.f32 %v2763, %v3646
      %v3694 = vmul.f32 %v2764, %v3646
      %v3743 = vrot.slane %v3647, 2
      %v3744 = vrot.slane %v3648, 2
      %v3745 = vsel %vm924, %v3743, %v3744
      %v3746 = vrot.slane %v3649, 2
      %v3747 = vsel %vm924, %v3744, %v3746
      %v3748 = vrot.slane %v3650, 2
      %v3749 = vrot.slane %v3651, 2
      %v3750 = vsel %vm924, %v3748, %v3749
      %v3751 = vrot.slane %v3652, 2
      %v3752 = vsel %vm924, %v3749, %v3751
      %v3753 = vrot.slane %v3653, 2
      %v3754 = vrot.slane %v3654, 2
      %v3755 = vsel %vm924, %v3753, %v3754
      %v3756 = vrot.slane %v3655, 2
      %v3757 = vsel %vm924, %v3754, %v3756
      %v3758 = vrot.slane %v3656, 2
      %v3759 = vrot.slane %v3657, 2
      %v3760 = vsel %vm924, %v3758, %v3759
      %v3761 = vrot.slane %v3658, 2
      %v3762 = vsel %vm924, %v3759, %v3761
      %v3763 = vrot.slane %v3659, 2
      %v3764 = vrot.slane %v3660, 2
      %v3765 = vsel %vm924, %v3763, %v3764
      %v3766 = vrot.slane %v3661, 2
      %v3767 = vsel %vm924, %v3764, %v3766
      %v3768 = vrot.slane %v3662, 2
      %v3769 = vrot.slane %v3663, 2
      %v3770 = vsel %vm924, %v3768, %v3769
      %v3771 = vrot.slane %v3664, 2
      %v3772 = vsel %vm924, %v3769, %v3771
      %v3773 = vrot.slane %v3665, 2
      %v3774 = vrot.slane %v3666, 2
      %v3775 = vsel %vm924, %v3773, %v3774
      %v3776 = vrot.slane %v3667, 2
      %v3777 = vsel %vm924, %v3774, %v3776
      %v3778 = vrot.slane %v3668, 2
      %v3779 = vrot.slane %v3669, 2
      %v3780 = vsel %vm924, %v3778, %v3779
      %v3781 = vrot.slane %v3670, 2
      %v3782 = vsel %vm924, %v3779, %v3781
      %v3783 = vrot.slane %v3671, 2
      %v3784 = vrot.slane %v3672, 2
      %v3785 = vsel %vm924, %v3783, %v3784
      %v3786 = vrot.slane %v3673, 2
      %v3787 = vsel %vm924, %v3784, %v3786
      %v3788 = vrot.slane %v3674, 2
      %v3789 = vrot.slane %v3675, 2
      %v3790 = vsel %vm924, %v3788, %v3789
      %v3791 = vrot.slane %v3676, 2
      %v3792 = vsel %vm924, %v3789, %v3791
      %v3793 = vrot.slane %v3677, 2
      %v3794 = vrot.slane %v3678, 2
      %v3795 = vsel %vm924, %v3793, %v3794
      %v3796 = vrot.slane %v3679, 2
      %v3797 = vsel %vm924, %v3794, %v3796
      %v3798 = vrot.slane %v3680, 2
      %v3799 = vrot.slane %v3681, 2
      %v3800 = vsel %vm924, %v3798, %v3799
      %v3801 = vrot.slane %v3682, 2
      %v3802 = vsel %vm924, %v3799, %v3801
      %v3803 = vrot.slane %v3683, 2
      %v3804 = vrot.slane %v3684, 2
      %v3805 = vsel %vm924, %v3803, %v3804
      %v3806 = vrot.slane %v3685, 2
      %v3807 = vsel %vm924, %v3804, %v3806
      %v3808 = vrot.slane %v3686, 2
      %v3809 = vrot.slane %v3687, 2
      %v3810 = vsel %vm924, %v3808, %v3809
      %v3811 = vrot.slane %v3688, 2
      %v3812 = vsel %vm924, %v3809, %v3811
      %v3813 = vrot.slane %v3689, 2
      %v3814 = vrot.slane %v3690, 2
      %v3815 = vsel %vm924, %v3813, %v3814
      %v3816 = vrot.slane %v3691, 2
      %v3817 = vsel %vm924, %v3814, %v3816
      %v3818 = vrot.slane %v3692, 2
      %v3819 = vrot.slane %v3693, 2
      %v3820 = vsel %vm924, %v3818, %v3819
      %v3821 = vrot.slane %v3694, 2
      %v3822 = vsel %vm924, %v3819, %v3821
      %v3855 = vadd.f32 %v3610, %v3745
      %v3856 = vadd.f32 %v3611, %v3747
      %v3857 = vadd.f32 %v3612, %v3750
      %v3858 = vadd.f32 %v3613, %v3752
      %v3859 = vadd.f32 %v3614, %v3755
      %v3860 = vadd.f32 %v3615, %v3757
      %v3861 = vadd.f32 %v3616, %v3760
      %v3862 = vadd.f32 %v3617, %v3762
      %v3863 = vadd.f32 %v3618, %v3765
      %v3864 = vadd.f32 %v3619, %v3767
      %v3865 = vadd.f32 %v3620, %v3770
      %v3866 = vadd.f32 %v3621, %v3772
      %v3867 = vadd.f32 %v3622, %v3775
      %v3868 = vadd.f32 %v3623, %v3777
      %v3869 = vadd.f32 %v3624, %v3780
      %v3870 = vadd.f32 %v3625, %v3782
      %v3871 = vadd.f32 %v3626, %v3785
      %v3872 = vadd.f32 %v3627, %v3787
      %v3873 = vadd.f32 %v3628, %v3790
      %v3874 = vadd.f32 %v3629, %v3792
      %v3875 = vadd.f32 %v3630, %v3795
      %v3876 = vadd.f32 %v3631, %v3797
      %v3877 = vadd.f32 %v3632, %v3800
      %v3878 = vadd.f32 %v3633, %v3802
      %v3879 = vadd.f32 %v3634, %v3805
      %v3880 = vadd.f32 %v3635, %v3807
      %v3881 = vadd.f32 %v3636, %v3810
      %v3882 = vadd.f32 %v3637, %v3812
      %v3883 = vadd.f32 %v3638, %v3815
      %v3884 = vadd.f32 %v3639, %v3817
      %v3885 = vadd.f32 %v3640, %v3820
      %v3886 = vadd.f32 %v3641, %v3822
      %s3887 = scalar_lea.vmem %s5, 8
      %v3888 = vld [vmem:[%s3887] sm:$0x1]
      %v3889 = vlaneseq
      %v3890 = vshrl.u32 %v3889, 7
      %v3891 = vsub.s32 0, %v3890
      %v3892 = vrot.slane %v3888, %v3891
      %v3893 = vmul.f32 %v2720, %v3892
      %v3894 = vmul.f32 %v2721, %v3892
      %v3895 = vmul.f32 %v2723, %v3892
      %v3896 = vmul.f32 %v2724, %v3892
      %v3897 = vmul.f32 %v2726, %v3892
      %v3898 = vmul.f32 %v2727, %v3892
      %v3899 = vmul.f32 %v2729, %v3892
      %v3900 = vmul.f32 %v2730, %v3892
      %v3901 = vmul.f32 %v2732, %v3892
      %v3902 = vmul.f32 %v2733, %v3892
      %v3903 = vmul.f32 %v2735, %v3892
      %v3904 = vmul.f32 %v2736, %v3892
      %v3905 = vmul.f32 %v2738, %v3892
      %v3906 = vmul.f32 %v2739, %v3892
      %v3907 = vmul.f32 %v2741, %v3892
      %v3908 = vmul.f32 %v2742, %v3892
      %v3909 = vmul.f32 %v2744, %v3892
      %v3910 = vmul.f32 %v2745, %v3892
      %v3911 = vmul.f32 %v2747, %v3892
      %v3912 = vmul.f32 %v2748, %v3892
      %v3913 = vmul.f32 %v2750, %v3892
      %v3914 = vmul.f32 %v2751, %v3892
      %v3915 = vmul.f32 %v2753, %v3892
      %v3916 = vmul.f32 %v2754, %v3892
      %v3917 = vmul.f32 %v2756, %v3892
      %v3918 = vmul.f32 %v2757, %v3892
      %v3919 = vmul.f32 %v2759, %v3892
      %v3920 = vmul.f32 %v2760, %v3892
      %v3921 = vmul.f32 %v2762, %v3892
      %v3922 = vmul.f32 %v2763, %v3892
      %v3923 = vmul.f32 %v2765, %v3892
      %v3924 = vmul.f32 %v2766, %v3892
      %v3925 = vadd.f32 %v3855, %v3893
      %v3926 = vadd.f32 %v3856, %v3894
      %v3927 = vadd.f32 %v3857, %v3895
      %v3928 = vadd.f32 %v3858, %v3896
      %v3929 = vadd.f32 %v3859, %v3897
      %v3930 = vadd.f32 %v3860, %v3898
      %v3931 = vadd.f32 %v3861, %v3899
      %v3932 = vadd.f32 %v3862, %v3900
      %v3933 = vadd.f32 %v3863, %v3901
      %v3934 = vadd.f32 %v3864, %v3902
      %v3935 = vadd.f32 %v3865, %v3903
      %v3936 = vadd.f32 %v3866, %v3904
      %v3937 = vadd.f32 %v3867, %v3905
      %v3938 = vadd.f32 %v3868, %v3906
      %v3939 = vadd.f32 %v3869, %v3907
      %v3940 = vadd.f32 %v3870, %v3908
      %v3941 = vadd.f32 %v3871, %v3909
      %v3942 = vadd.f32 %v3872, %v3910
      %v3943 = vadd.f32 %v3873, %v3911
      %v3944 = vadd.f32 %v3874, %v3912
      %v3945 = vadd.f32 %v3875, %v3913
      %v3946 = vadd.f32 %v3876, %v3914
      %v3947 = vadd.f32 %v3877, %v3915
      %v3948 = vadd.f32 %v3878, %v3916
      %v3949 = vadd.f32 %v3879, %v3917
      %v3950 = vadd.f32 %v3880, %v3918
      %v3951 = vadd.f32 %v3881, %v3919
      %v3952 = vadd.f32 %v3882, %v3920
      %v3953 = vadd.f32 %v3883, %v3921
      %v3954 = vadd.f32 %v3884, %v3922
      %v3955 = vadd.f32 %v3885, %v3923
      %v3956 = vadd.f32 %v3886, %v3924
      %v3957 = vld [vmem:[%s3887 + $0x1] sm:$0x1]
      %v3958 = vlaneseq
      %v3959 = vshrl.u32 %v3958, 7
      %v3960 = vsub.s32 0, %v3959
      %v3961 = vrot.slane %v3957, %v3960
      %v3962 = vmul.f32 %v2720, %v3961
      %v3963 = vmul.f32 %v2721, %v3961
      %v3964 = vmul.f32 %v2722, %v3961
      %v3965 = vmul.f32 %v2723, %v3961
      %v3966 = vmul.f32 %v2724, %v3961
      %v3967 = vmul.f32 %v2725, %v3961
      %v3968 = vmul.f32 %v2726, %v3961
      %v3969 = vmul.f32 %v2727, %v3961
      %v3970 = vmul.f32 %v2728, %v3961
      %v3971 = vmul.f32 %v2729, %v3961
      %v3972 = vmul.f32 %v2730, %v3961
      %v3973 = vmul.f32 %v2731, %v3961
      %v3974 = vmul.f32 %v2732, %v3961
      %v3975 = vmul.f32 %v2733, %v3961
      %v3976 = vmul.f32 %v2734, %v3961
      %v3977 = vmul.f32 %v2735, %v3961
      %v3978 = vmul.f32 %v2736, %v3961
      %v3979 = vmul.f32 %v2737, %v3961
      %v3980 = vmul.f32 %v2738, %v3961
      %v3981 = vmul.f32 %v2739, %v3961
      %v3982 = vmul.f32 %v2740, %v3961
      %v3983 = vmul.f32 %v2741, %v3961
      %v3984 = vmul.f32 %v2742, %v3961
      %v3985 = vmul.f32 %v2743, %v3961
      %v3986 = vmul.f32 %v2744, %v3961
      %v3987 = vmul.f32 %v2745, %v3961
      %v3988 = vmul.f32 %v2746, %v3961
      %v3989 = vmul.f32 %v2747, %v3961
      %v3990 = vmul.f32 %v2748, %v3961
      %v3991 = vmul.f32 %v2749, %v3961
      %v3992 = vmul.f32 %v2750, %v3961
      %v3993 = vmul.f32 %v2751, %v3961
      %v3994 = vmul.f32 %v2752, %v3961
      %v3995 = vmul.f32 %v2753, %v3961
      %v3996 = vmul.f32 %v2754, %v3961
      %v3997 = vmul.f32 %v2755, %v3961
      %v3998 = vmul.f32 %v2756, %v3961
      %v3999 = vmul.f32 %v2757, %v3961
      %v4000 = vmul.f32 %v2758, %v3961
      %v4001 = vmul.f32 %v2759, %v3961
      %v4002 = vmul.f32 %v2760, %v3961
      %v4003 = vmul.f32 %v2761, %v3961
      %v4004 = vmul.f32 %v2762, %v3961
      %v4005 = vmul.f32 %v2763, %v3961
      %v4006 = vmul.f32 %v2764, %v3961
      %v4007 = vmul.f32 %v2765, %v3961
      %v4008 = vmul.f32 %v2766, %v3961
      %v4009 = vmul.f32 %v2767, %v3961
      %v4058 = vrot.slane %v3962, 1
      %v4059 = vrot.slane %v3963, 1
      %v4060 = vsel %vm678, %v4058, %v4059
      %v4061 = vrot.slane %v3964, 1
      %v4062 = vsel %vm678, %v4059, %v4061
      %v4063 = vrot.slane %v3965, 1
      %v4064 = vrot.slane %v3966, 1
      %v4065 = vsel %vm678, %v4063, %v4064
      %v4066 = vrot.slane %v3967, 1
      %v4067 = vsel %vm678, %v4064, %v4066
      %v4068 = vrot.slane %v3968, 1
      %v4069 = vrot.slane %v3969, 1
      %v4070 = vsel %vm678, %v4068, %v4069
      %v4071 = vrot.slane %v3970, 1
      %v4072 = vsel %vm678, %v4069, %v4071
      %v4073 = vrot.slane %v3971, 1
      %v4074 = vrot.slane %v3972, 1
      %v4075 = vsel %vm678, %v4073, %v4074
      %v4076 = vrot.slane %v3973, 1
      %v4077 = vsel %vm678, %v4074, %v4076
      %v4078 = vrot.slane %v3974, 1
      %v4079 = vrot.slane %v3975, 1
      %v4080 = vsel %vm678, %v4078, %v4079
      %v4081 = vrot.slane %v3976, 1
      %v4082 = vsel %vm678, %v4079, %v4081
      %v4083 = vrot.slane %v3977, 1
      %v4084 = vrot.slane %v3978, 1
      %v4085 = vsel %vm678, %v4083, %v4084
      %v4086 = vrot.slane %v3979, 1
      %v4087 = vsel %vm678, %v4084, %v4086
      %v4088 = vrot.slane %v3980, 1
      %v4089 = vrot.slane %v3981, 1
      %v4090 = vsel %vm678, %v4088, %v4089
      %v4091 = vrot.slane %v3982, 1
      %v4092 = vsel %vm678, %v4089, %v4091
      %v4093 = vrot.slane %v3983, 1
      %v4094 = vrot.slane %v3984, 1
      %v4095 = vsel %vm678, %v4093, %v4094
      %v4096 = vrot.slane %v3985, 1
      %v4097 = vsel %vm678, %v4094, %v4096
      %v4098 = vrot.slane %v3986, 1
      %v4099 = vrot.slane %v3987, 1
      %v4100 = vsel %vm678, %v4098, %v4099
      %v4101 = vrot.slane %v3988, 1
      %v4102 = vsel %vm678, %v4099, %v4101
      %v4103 = vrot.slane %v3989, 1
      %v4104 = vrot.slane %v3990, 1
      %v4105 = vsel %vm678, %v4103, %v4104
      %v4106 = vrot.slane %v3991, 1
      %v4107 = vsel %vm678, %v4104, %v4106
      %v4108 = vrot.slane %v3992, 1
      %v4109 = vrot.slane %v3993, 1
      %v4110 = vsel %vm678, %v4108, %v4109
      %v4111 = vrot.slane %v3994, 1
      %v4112 = vsel %vm678, %v4109, %v4111
      %v4113 = vrot.slane %v3995, 1
      %v4114 = vrot.slane %v3996, 1
      %v4115 = vsel %vm678, %v4113, %v4114
      %v4116 = vrot.slane %v3997, 1
      %v4117 = vsel %vm678, %v4114, %v4116
      %v4118 = vrot.slane %v3998, 1
      %v4119 = vrot.slane %v3999, 1
      %v4120 = vsel %vm678, %v4118, %v4119
      %v4121 = vrot.slane %v4000, 1
      %v4122 = vsel %vm678, %v4119, %v4121
      %v4123 = vrot.slane %v4001, 1
      %v4124 = vrot.slane %v4002, 1
      %v4125 = vsel %vm678, %v4123, %v4124
      %v4126 = vrot.slane %v4003, 1
      %v4127 = vsel %vm678, %v4124, %v4126
      %v4128 = vrot.slane %v4004, 1
      %v4129 = vrot.slane %v4005, 1
      %v4130 = vsel %vm678, %v4128, %v4129
      %v4131 = vrot.slane %v4006, 1
      %v4132 = vsel %vm678, %v4129, %v4131
      %v4133 = vrot.slane %v4007, 1
      %v4134 = vrot.slane %v4008, 1
      %v4135 = vsel %vm678, %v4133, %v4134
      %v4136 = vrot.slane %v4009, 1
      %v4137 = vsel %vm678, %v4134, %v4136
      %v4170 = vadd.f32 %v3925, %v4060
      %v4171 = vadd.f32 %v3926, %v4062
      %v4172 = vadd.f32 %v3927, %v4065
      %v4173 = vadd.f32 %v3928, %v4067
      %v4174 = vadd.f32 %v3929, %v4070
      %v4175 = vadd.f32 %v3930, %v4072
      %v4176 = vadd.f32 %v3931, %v4075
      %v4177 = vadd.f32 %v3932, %v4077
      %v4178 = vadd.f32 %v3933, %v4080
      %v4179 = vadd.f32 %v3934, %v4082
      %v4180 = vadd.f32 %v3935, %v4085
      %v4181 = vadd.f32 %v3936, %v4087
      %v4182 = vadd.f32 %v3937, %v4090
      %v4183 = vadd.f32 %v3938, %v4092
      %v4184 = vadd.f32 %v3939, %v4095
      %v4185 = vadd.f32 %v3940, %v4097
      %v4186 = vadd.f32 %v3941, %v4100
      %v4187 = vadd.f32 %v3942, %v4102
      %v4188 = vadd.f32 %v3943, %v4105
      %v4189 = vadd.f32 %v3944, %v4107
      %v4190 = vadd.f32 %v3945, %v4110
      %v4191 = vadd.f32 %v3946, %v4112
      %v4192 = vadd.f32 %v3947, %v4115
      %v4193 = vadd.f32 %v3948, %v4117
      %v4194 = vadd.f32 %v3949, %v4120
      %v4195 = vadd.f32 %v3950, %v4122
      %v4196 = vadd.f32 %v3951, %v4125
      %v4197 = vadd.f32 %v3952, %v4127
      %v4198 = vadd.f32 %v3953, %v4130
      %v4199 = vadd.f32 %v3954, %v4132
      %v4200 = vadd.f32 %v3955, %v4135
      %v4201 = vadd.f32 %v3956, %v4137
      %v4202 = vld [vmem:[%s3887 + $0x2] sm:$0x1]
      %v4203 = vlaneseq
      %v4204 = vshrl.u32 %v4203, 7
      %v4205 = vsub.s32 0, %v4204
      %v4206 = vrot.slane %v4202, %v4205
      %v4207 = vmul.f32 %v2720, %v4206
      %v4208 = vmul.f32 %v2721, %v4206
      %v4209 = vmul.f32 %v2722, %v4206
      %v4210 = vmul.f32 %v2723, %v4206
      %v4211 = vmul.f32 %v2724, %v4206
      %v4212 = vmul.f32 %v2725, %v4206
      %v4213 = vmul.f32 %v2726, %v4206
      %v4214 = vmul.f32 %v2727, %v4206
      %v4215 = vmul.f32 %v2728, %v4206
      %v4216 = vmul.f32 %v2729, %v4206
      %v4217 = vmul.f32 %v2730, %v4206
      %v4218 = vmul.f32 %v2731, %v4206
      %v4219 = vmul.f32 %v2732, %v4206
      %v4220 = vmul.f32 %v2733, %v4206
      %v4221 = vmul.f32 %v2734, %v4206
      %v4222 = vmul.f32 %v2735, %v4206
      %v4223 = vmul.f32 %v2736, %v4206
      %v4224 = vmul.f32 %v2737, %v4206
      %v4225 = vmul.f32 %v2738, %v4206
      %v4226 = vmul.f32 %v2739, %v4206
      %v4227 = vmul.f32 %v2740, %v4206
      %v4228 = vmul.f32 %v2741, %v4206
      %v4229 = vmul.f32 %v2742, %v4206
      %v4230 = vmul.f32 %v2743, %v4206
      %v4231 = vmul.f32 %v2744, %v4206
      %v4232 = vmul.f32 %v2745, %v4206
      %v4233 = vmul.f32 %v2746, %v4206
      %v4234 = vmul.f32 %v2747, %v4206
      %v4235 = vmul.f32 %v2748, %v4206
      %v4236 = vmul.f32 %v2749, %v4206
      %v4237 = vmul.f32 %v2750, %v4206
      %v4238 = vmul.f32 %v2751, %v4206
      %v4239 = vmul.f32 %v2752, %v4206
      %v4240 = vmul.f32 %v2753, %v4206
      %v4241 = vmul.f32 %v2754, %v4206
      %v4242 = vmul.f32 %v2755, %v4206
      %v4243 = vmul.f32 %v2756, %v4206
      %v4244 = vmul.f32 %v2757, %v4206
      %v4245 = vmul.f32 %v2758, %v4206
      %v4246 = vmul.f32 %v2759, %v4206
      %v4247 = vmul.f32 %v2760, %v4206
      %v4248 = vmul.f32 %v2761, %v4206
      %v4249 = vmul.f32 %v2762, %v4206
      %v4250 = vmul.f32 %v2763, %v4206
      %v4251 = vmul.f32 %v2764, %v4206
      %v4252 = vmul.f32 %v2765, %v4206
      %v4253 = vmul.f32 %v2766, %v4206
      %v4254 = vmul.f32 %v2767, %v4206
      %v4303 = vrot.slane %v4207, 2
      %v4304 = vrot.slane %v4208, 2
      %v4305 = vsel %vm924, %v4303, %v4304
      %v4306 = vrot.slane %v4209, 2
      %v4307 = vsel %vm924, %v4304, %v4306
      %v4308 = vrot.slane %v4210, 2
      %v4309 = vrot.slane %v4211, 2
      %v4310 = vsel %vm924, %v4308, %v4309
      %v4311 = vrot.slane %v4212, 2
      %v4312 = vsel %vm924, %v4309, %v4311
      %v4313 = vrot.slane %v4213, 2
      %v4314 = vrot.slane %v4214, 2
      %v4315 = vsel %vm924, %v4313, %v4314
      %v4316 = vrot.slane %v4215, 2
      %v4317 = vsel %vm924, %v4314, %v4316
      %v4318 = vrot.slane %v4216, 2
      %v4319 = vrot.slane %v4217, 2
      %v4320 = vsel %vm924, %v4318, %v4319
      %v4321 = vrot.slane %v4218, 2
      %v4322 = vsel %vm924, %v4319, %v4321
      %v4323 = vrot.slane %v4219, 2
      %v4324 = vrot.slane %v4220, 2
      %v4325 = vsel %vm924, %v4323, %v4324
      %v4326 = vrot.slane %v4221, 2
      %v4327 = vsel %vm924, %v4324, %v4326
      %v4328 = vrot.slane %v4222, 2
      %v4329 = vrot.slane %v4223, 2
      %v4330 = vsel %vm924, %v4328, %v4329
      %v4331 = vrot.slane %v4224, 2
      %v4332 = vsel %vm924, %v4329, %v4331
      %v4333 = vrot.slane %v4225, 2
      %v4334 = vrot.slane %v4226, 2
      %v4335 = vsel %vm924, %v4333, %v4334
      %v4336 = vrot.slane %v4227, 2
      %v4337 = vsel %vm924, %v4334, %v4336
      %v4338 = vrot.slane %v4228, 2
      %v4339 = vrot.slane %v4229, 2
      %v4340 = vsel %vm924, %v4338, %v4339
      %v4341 = vrot.slane %v4230, 2
      %v4342 = vsel %vm924, %v4339, %v4341
      %v4343 = vrot.slane %v4231, 2
      %v4344 = vrot.slane %v4232, 2
      %v4345 = vsel %vm924, %v4343, %v4344
      %v4346 = vrot.slane %v4233, 2
      %v4347 = vsel %vm924, %v4344, %v4346
      %v4348 = vrot.slane %v4234, 2
      %v4349 = vrot.slane %v4235, 2
      %v4350 = vsel %vm924, %v4348, %v4349
      %v4351 = vrot.slane %v4236, 2
      %v4352 = vsel %vm924, %v4349, %v4351
      %v4353 = vrot.slane %v4237, 2
      %v4354 = vrot.slane %v4238, 2
      %v4355 = vsel %vm924, %v4353, %v4354
      %v4356 = vrot.slane %v4239, 2
      %v4357 = vsel %vm924, %v4354, %v4356
      %v4358 = vrot.slane %v4240, 2
      %v4359 = vrot.slane %v4241, 2
      %v4360 = vsel %vm924, %v4358, %v4359
      %v4361 = vrot.slane %v4242, 2
      %v4362 = vsel %vm924, %v4359, %v4361
      %v4363 = vrot.slane %v4243, 2
      %v4364 = vrot.slane %v4244, 2
      %v4365 = vsel %vm924, %v4363, %v4364
      %v4366 = vrot.slane %v4245, 2
      %v4367 = vsel %vm924, %v4364, %v4366
      %v4368 = vrot.slane %v4246, 2
      %v4369 = vrot.slane %v4247, 2
      %v4370 = vsel %vm924, %v4368, %v4369
      %v4371 = vrot.slane %v4248, 2
      %v4372 = vsel %vm924, %v4369, %v4371
      %v4373 = vrot.slane %v4249, 2
      %v4374 = vrot.slane %v4250, 2
      %v4375 = vsel %vm924, %v4373, %v4374
      %v4376 = vrot.slane %v4251, 2
      %v4377 = vsel %vm924, %v4374, %v4376
      %v4378 = vrot.slane %v4252, 2
      %v4379 = vrot.slane %v4253, 2
      %v4380 = vsel %vm924, %v4378, %v4379
      %v4381 = vrot.slane %v4254, 2
      %v4382 = vsel %vm924, %v4379, %v4381
      %v4415 = vadd.f32 %v4170, %v4305
      %v4416 = vadd.f32 %v4171, %v4307
      %v4417 = vadd.f32 %v4172, %v4310
      %v4418 = vadd.f32 %v4173, %v4312
      %v4419 = vadd.f32 %v4174, %v4315
      %v4420 = vadd.f32 %v4175, %v4317
      %v4421 = vadd.f32 %v4176, %v4320
      %v4422 = vadd.f32 %v4177, %v4322
      %v4423 = vadd.f32 %v4178, %v4325
      %v4424 = vadd.f32 %v4179, %v4327
      %v4425 = vadd.f32 %v4180, %v4330
      %v4426 = vadd.f32 %v4181, %v4332
      %v4427 = vadd.f32 %v4182, %v4335
      %v4428 = vadd.f32 %v4183, %v4337
      %v4429 = vadd.f32 %v4184, %v4340
      %v4430 = vadd.f32 %v4185, %v4342
      %v4431 = vadd.f32 %v4186, %v4345
      %v4432 = vadd.f32 %v4187, %v4347
      %v4433 = vadd.f32 %v4188, %v4350
      %v4434 = vadd.f32 %v4189, %v4352
      %v4435 = vadd.f32 %v4190, %v4355
      %v4436 = vadd.f32 %v4191, %v4357
      %v4437 = vadd.f32 %v4192, %v4360
      %v4438 = vadd.f32 %v4193, %v4362
      %v4439 = vadd.f32 %v4194, %v4365
      %v4440 = vadd.f32 %v4195, %v4367
      %v4441 = vadd.f32 %v4196, %v4370
      %v4442 = vadd.f32 %v4197, %v4372
      %v4443 = vadd.f32 %v4198, %v4375
      %v4444 = vadd.f32 %v4199, %v4377
      %v4445 = vadd.f32 %v4200, %v4380
      %v4446 = vadd.f32 %v4201, %v4382
      %v4447 = vld [vmem:[%s6] sm:$0x1]
      %v4449 = vlaneseq
      %v4450 = vshrl.u32 %v4449, 7
      %v4451 = vsub.s32 0, %v4450
      %v4452 = vrot.slane %v4447, %v4451
      %v4454 = vadd.f32 %v4415, %v4452
      %v4455 = vadd.f32 %v4416, %v4452
      %v4456 = vadd.f32 %v4417, %v4452
      %v4457 = vadd.f32 %v4418, %v4452
      %v4458 = vadd.f32 %v4419, %v4452
      %v4459 = vadd.f32 %v4420, %v4452
      %v4460 = vadd.f32 %v4421, %v4452
      %v4461 = vadd.f32 %v4422, %v4452
      %v4462 = vadd.f32 %v4423, %v4452
      %v4463 = vadd.f32 %v4424, %v4452
      %v4464 = vadd.f32 %v4425, %v4452
      %v4465 = vadd.f32 %v4426, %v4452
      %v4466 = vadd.f32 %v4427, %v4452
      %v4467 = vadd.f32 %v4428, %v4452
      %v4468 = vadd.f32 %v4429, %v4452
      %v4469 = vadd.f32 %v4430, %v4452
      %v4470 = vadd.f32 %v4431, %v4452
      %v4471 = vadd.f32 %v4432, %v4452
      %v4472 = vadd.f32 %v4433, %v4452
      %v4473 = vadd.f32 %v4434, %v4452
      %v4474 = vadd.f32 %v4435, %v4452
      %v4475 = vadd.f32 %v4436, %v4452
      %v4476 = vadd.f32 %v4437, %v4452
      %v4477 = vadd.f32 %v4438, %v4452
      %v4478 = vadd.f32 %v4439, %v4452
      %v4479 = vadd.f32 %v4440, %v4452
      %v4480 = vadd.f32 %v4441, %v4452
      %v4481 = vadd.f32 %v4442, %v4452
      %v4482 = vadd.f32 %v4443, %v4452
      %v4483 = vadd.f32 %v4444, %v4452
      %v4484 = vadd.f32 %v4445, %v4452
      %v4485 = vadd.f32 %v4446, %v4452
      %v4486 = vmax.f32 %v4454, 0.0
      %v4487 = vmax.f32 %v4455, 0.0
      %v4488 = vmax.f32 %v4456, 0.0
      %v4489 = vmax.f32 %v4457, 0.0
      %v4490 = vmax.f32 %v4458, 0.0
      %v4491 = vmax.f32 %v4459, 0.0
      %v4492 = vmax.f32 %v4460, 0.0
      %v4493 = vmax.f32 %v4461, 0.0
      %v4494 = vmax.f32 %v4462, 0.0
      %v4495 = vmax.f32 %v4463, 0.0
      %v4496 = vmax.f32 %v4464, 0.0
      %v4497 = vmax.f32 %v4465, 0.0
      %v4498 = vmax.f32 %v4466, 0.0
      %v4499 = vmax.f32 %v4467, 0.0
      %v4500 = vmax.f32 %v4468, 0.0
      %v4501 = vmax.f32 %v4469, 0.0
      %v4502 = vmax.f32 %v4470, 0.0
      %v4503 = vmax.f32 %v4471, 0.0
      %v4504 = vmax.f32 %v4472, 0.0
      %v4505 = vmax.f32 %v4473, 0.0
      %v4506 = vmax.f32 %v4474, 0.0
      %v4507 = vmax.f32 %v4475, 0.0
      %v4508 = vmax.f32 %v4476, 0.0
      %v4509 = vmax.f32 %v4477, 0.0
      %v4510 = vmax.f32 %v4478, 0.0
      %v4511 = vmax.f32 %v4479, 0.0
      %v4512 = vmax.f32 %v4480, 0.0
      %v4513 = vmax.f32 %v4481, 0.0
      %v4514 = vmax.f32 %v4482, 0.0
      %v4515 = vmax.f32 %v4483, 0.0
      %v4516 = vmax.f32 %v4484, 0.0
      %v4517 = vmax.f32 %v4485, 0.0
      %v4518 = vld [vmem:[%s7] sm:$0xff]
      %v4519 = vld [vmem:[%s8] sm:$0x1]
      %v4521 = vlaneseq
      %v4522 = vshrl.u32 %v4521, 7
      %v4523 = vsub.s32 0, %v4522
      %v4524 = vrot.slane %v4519, %v4523
      %v4527 = vsel %vm2625, %v4486, 0
      %v4530 = vsel %vm2625, %v4487, 0
      %v4533 = vsel %vm2625, %v4488, 0
      %v4536 = vsel %vm2625, %v4489, 0
      %v4539 = vsel %vm2625, %v4490, 0
      %v4542 = vsel %vm2625, %v4491, 0
      %v4545 = vsel %vm2625, %v4492, 0
      %v4548 = vsel %vm2625, %v4493, 0
      %v4551 = vsel %vm2625, %v4494, 0
      %v4554 = vsel %vm2625, %v4495, 0
      %v4557 = vsel %vm2625, %v4496, 0
      %v4560 = vsel %vm2625, %v4497, 0
      %v4563 = vsel %vm2625, %v4498, 0
      %v4566 = vsel %vm2625, %v4499, 0
      %v4569 = vsel %vm2625, %v4500, 0
      %v4572 = vsel %vm2625, %v4501, 0
      %v4575 = vsel %vm2625, %v4502, 0
      %v4578 = vsel %vm2625, %v4503, 0
      %v4581 = vsel %vm2625, %v4504, 0
      %v4584 = vsel %vm2625, %v4505, 0
      %v4587 = vsel %vm2625, %v4506, 0
      %v4590 = vsel %vm2625, %v4507, 0
      %v4593 = vsel %vm2625, %v4508, 0
      %v4596 = vsel %vm2625, %v4509, 0
      %v4599 = vsel %vm2625, %v4510, 0
      %v4602 = vsel %vm2625, %v4511, 0
      %v4605 = vsel %vm2625, %v4512, 0
      %v4608 = vsel %vm2625, %v4513, 0
      %v4611 = vsel %vm2625, %v4514, 0
      %v4614 = vsel %vm2625, %v4515, 0
      %v4617 = vsel %vm2625, %v4516, 0
      %v4620 = vsel %vm2625, %v4517, 0
      %4622 = vmatprep.subr.mxu0 0.0
      %4623 = vmatpush1.msra.mxu0 0.0
      %4624 = vmatprep.subr.mxu0 0.0
      %4625 = vmatpush1.msra.mxu0 0.0
      %4626 = vmatprep.subr.mxu0 0.0
      %4627 = vmatpush1.msra.mxu0 0.0
      %4628 = vmatprep.subr.mxu0 0.0
      %4629 = vmatpush1.msra.mxu0 0.0
      %4630 = vmatprep.subr.mxu0 0.0
      %4631 = vmatpush1.msra.mxu0 0.0
      %4632 = vmatprep.subr.mxu0 0.0
      %4633 = vmatpush1.msra.mxu0 0.0
      %4634 = vmatprep.subr.mxu0 0.0
      %4635 = vmatpush1.msra.mxu0 0.0
      %4636 = vmatprep.subr.mxu0 0.0
      %4637 = vmatpush1.msra.mxu0 0.0
      %4638 = vmatprep.subr.mxu0 0.0
      %4639 = vmatpush1.msra.mxu0 0.0
      %4640 = vmatprep.subr.mxu0 0.0
      %4641 = vmatpush1.msra.mxu0 0.0
      %4642 = vmatprep.subr.mxu0 0.0
      %4643 = vmatpush1.msra.mxu0 0.0
      %4644 = vmatprep.subr.mxu0 0.0
      %4645 = vmatpush1.msra.mxu0 0.0
      %4646 = vmatprep.subr.mxu0 0.0
      %4647 = vmatpush1.msra.mxu0 0.0
      %4648 = vmatprep.subr.mxu0 0.0
      %4649 = vmatpush1.msra.mxu0 0.0
      %4650 = vmatprep.subr.mxu0 0.0
      %4651 = vmatpush1.msra.mxu0 0.0
      %4652 = vmatprep.subr.mxu0 0.0
      %4653 = vmatpush1.msra.mxu0 %v4518
      %4654 = vmatprep.subr.mxu0 0.0
      %4655 = vmatpush2.msra.mxu0 0.0
      %4656 = vmatprep.subr.mxu0 0.0
      %4657 = vmatpush2.msra.mxu0 0.0
      %4658 = vmatprep.subr.mxu0 0.0
      %4659 = vmatpush2.msra.mxu0 0.0
      %4660 = vmatprep.subr.mxu0 0.0
      %4661 = vmatpush2.msra.mxu0 0.0
      %4662 = vmatprep.subr.mxu0 0.0
      %4663 = vmatpush2.msra.mxu0 0.0
      %4664 = vmatprep.subr.mxu0 0.0
      %4665 = vmatpush2.msra.mxu0 0.0
      %4666 = vmatprep.subr.mxu0 0.0
      %4667 = vmatpush2.msra.mxu0 0.0
      %4668 = vmatprep.subr.mxu0 0.0
      %4669 = vmatpush2.msra.mxu0 0.0
      %4670 = vmatprep.subr.mxu0 0.0
      %4671 = vmatpush2.msra.mxu0 0.0
      %4672 = vmatprep.subr.mxu0 0.0
      %4673 = vmatpush2.msra.mxu0 0.0
      %4674 = vmatprep.subr.mxu0 0.0
      %4675 = vmatpush2.msra.mxu0 0.0
      %4676 = vmatprep.subr.mxu0 0.0
      %4677 = vmatpush2.msra.mxu0 0.0
      %4678 = vmatprep.subr.mxu0 0.0
      %4679 = vmatpush2.msra.mxu0 0.0
      %4680 = vmatprep.subr.mxu0 0.0
      %4681 = vmatpush2.msra.mxu0 0.0
      %4682 = vmatprep.subr.mxu0 0.0
      %4683 = vmatpush2.msra.mxu0 0.0
      %4684 = vmatprep.subr.mxu0 0.0
      %4685 = vmatpush2.msra.mxu0 0.0
      %4686 = vmatprep.mubr.f32.mxu0 0.0
      %4687 = vmatmul.mubr.f32.gmra.mxu0 %v4527
      %v4688 = vpop.f32.mrf.mxu0
      %v4689 = vadd.f32 %v4524, %v4688
      %v4690 = vpop.f32.mrf.mxu0
      %4691 = vmatprep.mubr.f32.mxu0 0.0
      %4692 = vmatmul.mubr.f32.gmra.mxu0 %v4530
      %v4693 = vpop.f32.mrf.mxu0
      %v4694 = vadd.f32 %v4524, %v4693
      %v4695 = vpop.f32.mrf.mxu0
      %4696 = vmatprep.mubr.f32.mxu0 0.0
      %4697 = vmatmul.mubr.f32.gmra.mxu0 %v4533
      %v4698 = vpop.f32.mrf.mxu0
      %v4699 = vadd.f32 %v4524, %v4698
      %v4700 = vpop.f32.mrf.mxu0
      %4701 = vmatprep.mubr.f32.mxu0 0.0
      %4702 = vmatmul.mubr.f32.gmra.mxu0 %v4536
      %v4703 = vpop.f32.mrf.mxu0
      %v4704 = vadd.f32 %v4524, %v4703
      %v4705 = vpop.f32.mrf.mxu0
      %4706 = vmatprep.mubr.f32.mxu0 0.0
      %4707 = vmatmul.mubr.f32.gmra.mxu0 %v4539
      %v4708 = vpop.f32.mrf.mxu0
      %v4709 = vadd.f32 %v4524, %v4708
      %v4710 = vpop.f32.mrf.mxu0
      %4711 = vmatprep.mubr.f32.mxu0 0.0
      %4712 = vmatmul.mubr.f32.gmra.mxu0 %v4542
      %v4713 = vpop.f32.mrf.mxu0
      %v4714 = vadd.f32 %v4524, %v4713
      %v4715 = vpop.f32.mrf.mxu0
      %4716 = vmatprep.mubr.f32.mxu0 0.0
      %4717 = vmatmul.mubr.f32.gmra.mxu0 %v4545
      %v4718 = vpop.f32.mrf.mxu0
      %v4719 = vadd.f32 %v4524, %v4718
      %v4720 = vpop.f32.mrf.mxu0
      %4721 = vmatprep.mubr.f32.mxu0 0.0
      %4722 = vmatmul.mubr.f32.gmra.mxu0 %v4548
      %v4723 = vpop.f32.mrf.mxu0
      %v4724 = vadd.f32 %v4524, %v4723
      %v4725 = vpop.f32.mrf.mxu0
      %4726 = vmatprep.mubr.f32.mxu0 0.0
      %4727 = vmatmul.mubr.f32.gmra.mxu0 %v4551
      %v4728 = vpop.f32.mrf.mxu0
      %v4729 = vadd.f32 %v4524, %v4728
      %v4730 = vpop.f32.mrf.mxu0
      %4731 = vmatprep.mubr.f32.mxu0 0.0
      %4732 = vmatmul.mubr.f32.gmra.mxu0 %v4554
      %v4733 = vpop.f32.mrf.mxu0
      %v4734 = vadd.f32 %v4524, %v4733
      %v4735 = vpop.f32.mrf.mxu0
      %4736 = vmatprep.mubr.f32.mxu0 0.0
      %4737 = vmatmul.mubr.f32.gmra.mxu0 %v4557
      %v4738 = vpop.f32.mrf.mxu0
      %v4739 = vadd.f32 %v4524, %v4738
      %v4740 = vpop.f32.mrf.mxu0
      %4741 = vmatprep.mubr.f32.mxu0 0.0
      %4742 = vmatmul.mubr.f32.gmra.mxu0 %v4560
      %v4743 = vpop.f32.mrf.mxu0
      %v4744 = vadd.f32 %v4524, %v4743
      %v4745 = vpop.f32.mrf.mxu0
      %4746 = vmatprep.mubr.f32.mxu0 0.0
      %4747 = vmatmul.mubr.f32.gmra.mxu0 %v4563
      %v4748 = vpop.f32.mrf.mxu0
      %v4749 = vadd.f32 %v4524, %v4748
      %v4750 = vpop.f32.mrf.mxu0
      %4751 = vmatprep.mubr.f32.mxu0 0.0
      %4752 = vmatmul.mubr.f32.gmra.mxu0 %v4566
      %v4753 = vpop.f32.mrf.mxu0
      %v4754 = vadd.f32 %v4524, %v4753
      %v4755 = vpop.f32.mrf.mxu0
      %4756 = vmatprep.mubr.f32.mxu0 0.0
      %4757 = vmatmul.mubr.f32.gmra.mxu0 %v4569
      %v4758 = vpop.f32.mrf.mxu0
      %v4759 = vadd.f32 %v4524, %v4758
      %v4760 = vpop.f32.mrf.mxu0
      %4761 = vmatprep.mubr.f32.mxu0 0.0
      %4762 = vmatmul.mubr.f32.gmra.mxu0 %v4572
      %v4763 = vpop.f32.mrf.mxu0
      %v4764 = vadd.f32 %v4524, %v4763
      %v4765 = vpop.f32.mrf.mxu0
      %4766 = vmatprep.mubr.f32.mxu0 0.0
      %4767 = vmatmul.mubr.f32.gmra.mxu0 %v4575
      %v4768 = vpop.f32.mrf.mxu0
      %v4769 = vadd.f32 %v4524, %v4768
      %v4770 = vpop.f32.mrf.mxu0
      %4771 = vmatprep.mubr.f32.mxu0 0.0
      %4772 = vmatmul.mubr.f32.gmra.mxu0 %v4578
      %v4773 = vpop.f32.mrf.mxu0
      %v4774 = vadd.f32 %v4524, %v4773
      %v4775 = vpop.f32.mrf.mxu0
      %4776 = vmatprep.mubr.f32.mxu0 0.0
      %4777 = vmatmul.mubr.f32.gmra.mxu0 %v4581
      %v4778 = vpop.f32.mrf.mxu0
      %v4779 = vadd.f32 %v4524, %v4778
      %v4780 = vpop.f32.mrf.mxu0
      %4781 = vmatprep.mubr.f32.mxu0 0.0
      %4782 = vmatmul.mubr.f32.gmra.mxu0 %v4584
      %v4783 = vpop.f32.mrf.mxu0
      %v4784 = vadd.f32 %v4524, %v4783
      %v4785 = vpop.f32.mrf.mxu0
      %4786 = vmatprep.mubr.f32.mxu0 0.0
      %4787 = vmatmul.mubr.f32.gmra.mxu0 %v4587
      %v4788 = vpop.f32.mrf.mxu0
      %v4789 = vadd.f32 %v4524, %v4788
      %v4790 = vpop.f32.mrf.mxu0
      %4791 = vmatprep.mubr.f32.mxu0 0.0
      %4792 = vmatmul.mubr.f32.gmra.mxu0 %v4590
      %v4793 = vpop.f32.mrf.mxu0
      %v4794 = vadd.f32 %v4524, %v4793
      %v4795 = vpop.f32.mrf.mxu0
      %4796 = vmatprep.mubr.f32.mxu0 0.0
      %4797 = vmatmul.mubr.f32.gmra.mxu0 %v4593
      %v4798 = vpop.f32.mrf.mxu0
      %v4799 = vadd.f32 %v4524, %v4798
      %v4800 = vpop.f32.mrf.mxu0
      %4801 = vmatprep.mubr.f32.mxu0 0.0
      %4802 = vmatmul.mubr.f32.gmra.mxu0 %v4596
      %v4803 = vpop.f32.mrf.mxu0
      %v4804 = vadd.f32 %v4524, %v4803
      %v4805 = vpop.f32.mrf.mxu0
      %4806 = vmatprep.mubr.f32.mxu0 0.0
      %4807 = vmatmul.mubr.f32.gmra.mxu0 %v4599
      %v4808 = vpop.f32.mrf.mxu0
      %v4809 = vadd.f32 %v4524, %v4808
      %v4810 = vpop.f32.mrf.mxu0
      %4811 = vmatprep.mubr.f32.mxu0 0.0
      %4812 = vmatmul.mubr.f32.gmra.mxu0 %v4602
      %v4813 = vpop.f32.mrf.mxu0
      %v4814 = vadd.f32 %v4524, %v4813
      %v4815 = vpop.f32.mrf.mxu0
      %4816 = vmatprep.mubr.f32.mxu0 0.0
      %4817 = vmatmul.mubr.f32.gmra.mxu0 %v4605
      %v4818 = vpop.f32.mrf.mxu0
      %v4819 = vadd.f32 %v4524, %v4818
      %v4820 = vpop.f32.mrf.mxu0
      %4821 = vmatprep.mubr.f32.mxu0 0.0
      %4822 = vmatmul.mubr.f32.gmra.mxu0 %v4608
      %v4823 = vpop.f32.mrf.mxu0
      %v4824 = vadd.f32 %v4524, %v4823
      %v4825 = vpop.f32.mrf.mxu0
      %4826 = vmatprep.mubr.f32.mxu0 0.0
      %4827 = vmatmul.mubr.f32.gmra.mxu0 %v4611
      %v4828 = vpop.f32.mrf.mxu0
      %v4829 = vadd.f32 %v4524, %v4828
      %v4830 = vpop.f32.mrf.mxu0
      %4831 = vmatprep.mubr.f32.mxu0 0.0
      %4832 = vmatmul.mubr.f32.gmra.mxu0 %v4614
      %v4833 = vpop.f32.mrf.mxu0
      %v4834 = vadd.f32 %v4524, %v4833
      %v4835 = vpop.f32.mrf.mxu0
      %4836 = vmatprep.mubr.f32.mxu0 0.0
      %4837 = vmatmul.mubr.f32.gmra.mxu0 %v4617
      %v4838 = vpop.f32.mrf.mxu0
      %v4839 = vadd.f32 %v4524, %v4838
      %v4840 = vpop.f32.mrf.mxu0
      %4841 = vmatprep.mubr.f32.mxu0 0.0
      %4842 = vmatmul.mubr.f32.gmra.mxu0 %v4620
      %v4843 = vpop.f32.mrf.mxu0
      %v4844 = vadd.f32 %v4524, %v4843
      %v4845 = vpop.f32.mrf.mxu0
      %4846 = vdwg.mxu0
      %v4847 = vmax.f32 %v4689, 0.0
      %v4848 = vmax.f32 %v4694, 0.0
      %v4849 = vmax.f32 %v4699, 0.0
      %v4850 = vmax.f32 %v4704, 0.0
      %v4851 = vmax.f32 %v4709, 0.0
      %v4852 = vmax.f32 %v4714, 0.0
      %v4853 = vmax.f32 %v4719, 0.0
      %v4854 = vmax.f32 %v4724, 0.0
      %v4855 = vmax.f32 %v4729, 0.0
      %v4856 = vmax.f32 %v4734, 0.0
      %v4857 = vmax.f32 %v4739, 0.0
      %v4858 = vmax.f32 %v4744, 0.0
      %v4859 = vmax.f32 %v4749, 0.0
      %v4860 = vmax.f32 %v4754, 0.0
      %v4861 = vmax.f32 %v4759, 0.0
      %v4862 = vmax.f32 %v4764, 0.0
      %v4863 = vmax.f32 %v4769, 0.0
      %v4864 = vmax.f32 %v4774, 0.0
      %v4865 = vmax.f32 %v4779, 0.0
      %v4866 = vmax.f32 %v4784, 0.0
      %v4867 = vmax.f32 %v4789, 0.0
      %v4868 = vmax.f32 %v4794, 0.0
      %v4869 = vmax.f32 %v4799, 0.0
      %v4870 = vmax.f32 %v4804, 0.0
      %v4871 = vmax.f32 %v4809, 0.0
      %v4872 = vmax.f32 %v4814, 0.0
      %v4873 = vmax.f32 %v4819, 0.0
      %v4874 = vmax.f32 %v4824, 0.0
      %v4875 = vmax.f32 %v4829, 0.0
      %v4876 = vmax.f32 %v4834, 0.0
      %v4877 = vmax.f32 %v4839, 0.0
      %v4878 = vmax.f32 %v4844, 0.0
      %4879 = vst.msk [vmem:[%s332] sm:$0xff] %vm2625, %v4847
      %4880 = vst.msk [vmem:[%s332 + $0x8] sm:$0xff] %vm2625, %v4848
      %4881 = vst.msk [vmem:[%s332 + $0x10] sm:$0xff] %vm2625, %v4849
      %4882 = vst.msk [vmem:[%s332 + $0x18] sm:$0xff] %vm2625, %v4850
      %4883 = vst.msk [vmem:[%s332 + $0x20] sm:$0xff] %vm2625, %v4851
      %4884 = vst.msk [vmem:[%s332 + $0x28] sm:$0xff] %vm2625, %v4852
      %4885 = vst.msk [vmem:[%s332 + $0x30] sm:$0xff] %vm2625, %v4853
      %4886 = vst.msk [vmem:[%s332 + $0x38] sm:$0xff] %vm2625, %v4854
      %4887 = vst.msk [vmem:[%s332 + $0x40] sm:$0xff] %vm2625, %v4855
      %4888 = vst.msk [vmem:[%s332 + $0x48] sm:$0xff] %vm2625, %v4856
      %4889 = vst.msk [vmem:[%s332 + $0x50] sm:$0xff] %vm2625, %v4857
      %4890 = vst.msk [vmem:[%s332 + $0x58] sm:$0xff] %vm2625, %v4858
      %4891 = vst.msk [vmem:[%s332 + $0x60] sm:$0xff] %vm2625, %v4859
      %4892 = vst.msk [vmem:[%s332 + $0x68] sm:$0xff] %vm2625, %v4860
      %4893 = vst.msk [vmem:[%s332 + $0x70] sm:$0xff] %vm2625, %v4861
      %4894 = vst.msk [vmem:[%s332 + $0x78] sm:$0xff] %vm2625, %v4862
      %4895 = vst.msk [vmem:[%s332 + $0x80] sm:$0xff] %vm2625, %v4863
      %4896 = vst.msk [vmem:[%s332 + $0x88] sm:$0xff] %vm2625, %v4864
      %4897 = vst.msk [vmem:[%s332 + $0x90] sm:$0xff] %vm2625, %v4865
      %4898 = vst.msk [vmem:[%s332 + $0x98] sm:$0xff] %vm2625, %v4866
      %4899 = vst.msk [vmem:[%s332 + $0xa0] sm:$0xff] %vm2625, %v4867
      %4900 = vst.msk [vmem:[%s332 + $0xa8] sm:$0xff] %vm2625, %v4868
      %4901 = vst.msk [vmem:[%s332 + $0xb0] sm:$0xff] %vm2625, %v4869
      %4902 = vst.msk [vmem:[%s332 + $0xb8] sm:$0xff] %vm2625, %v4870
      %4903 = vst.msk [vmem:[%s332 + $0xc0] sm:$0xff] %vm2625, %v4871
      %4904 = vst.msk [vmem:[%s332 + $0xc8] sm:$0xff] %vm2625, %v4872
      %4905 = vst.msk [vmem:[%s332 + $0xd0] sm:$0xff] %vm2625, %v4873
      %4906 = vst.msk [vmem:[%s332 + $0xd8] sm:$0xff] %vm2625, %v4874
      %4907 = vst.msk [vmem:[%s332 + $0xe0] sm:$0xff] %vm2625, %v4875
      %4908 = vst.msk [vmem:[%s332 + $0xe8] sm:$0xff] %vm2625, %v4876
      %4909 = vst.msk [vmem:[%s332 + $0xf0] sm:$0xff] %vm2625, %v4877
      %4910 = vst.msk [vmem:[%s332 + $0xf8] sm:$0xff] %vm2625, %v4878
      %p4911 = scmp.lt.s32.totalorder %s20, 1
      %s4912 = scalar_select %p4911, %s20, 1
      %s4913 = smul.addr %s4912, 32
      %s4914 = smul.addr %s4913, 8
      %s4915 = scalar_lea.vmem %s9, %s4914
      // Predicated region
      $region57: #{double_dsconv_forward.1} parent=55 // pred_check
        %p4916 = pneg %p232
      $region58: #{double_dsconv_forward.1} parent=55 // pred_check_branch
        %4918 = sbr.rel (%p4916) target = $region60
      $region59: #{double_dsconv_forward.1} parent=55 // pred_region
        _
      $region60: #{double_dsconv_forward.1} parent=55 // pred_fallthru
        _
    $region56: #{double_dsconv_forward.1} parent=5 // pred_fallthru
      _
    %p4919 = scmp.le.s32.totalorder 2, %s15
    // Predicated region
    $region61: #{double_dsconv_forward.1} parent=5 // pred_check
      %p4920 = pneg %p4919
    $region62: #{double_dsconv_forward.1} parent=5 // pred_check_branch
      %4922 = sbr.rel (%p4920) target = $region64
    $region63: #{double_dsconv_forward.1} parent=5 // pred_region
      %s4923 = ssub.s32 %s15, 2
      // Predicated region
      $region65: #{double_dsconv_forward.1} parent=63 // pred_check
        %p4924 = pneg %p238
      $region66: #{double_dsconv_forward.1} parent=63 // pred_check_branch
        %4926 = sbr.rel (%p4924) target = $region68
      $region67: #{double_dsconv_forward.1} parent=63 // pred_region
        %p4927 = scmp.lt.s32.totalorder %s21, 1
        %s4928 = scalar_select %p4927, %s21, 1
        %s4929 = smul.addr %s4928, 32
        %s4930 = smul.addr %s4929, 8
        %s4931 = scalar_lea.vmem %s9, %s4930
      $region68: #{double_dsconv_forward.1} parent=63 // pred_fallthru
        _
    $region64: #{double_dsconv_forward.1} parent=5 // pred_fallthru
      _
  $region6: #{double_dsconv_forward.1} parent=0 // loop_footer
    %s19 = sadd.s32 1, %s15
  $region7: #{double_dsconv_forward.1} parent=0 // loop_footer_branch
    %14 = sbr.rel target = $region3
  $region8: #{double_dsconv_forward.1} parent=0 // loop_exit
    _

</llo_original>
